<compile_context>
chip_gen: v7x
topology: tpu7x:2x2x1
jax: 0.10.0
libtpu: 0.0.40
codegen_flags: <defaults>
</compile_context>

<pallas_src>
import functools

import jax
import jax.numpy as jnp
from jax.experimental import pallas as pl
from jax.experimental.pallas import tpu as pltpu


# -----------------------------------------------------------------------------
# Pallas kernel: whole encoder + autoregressive decoder recurrence in one call.
# Everything (sequence, weights, states) lives in VMEM; no grid, full blocks.
# Specialized to input_size == output_size == 1 (the module's defaults, and the
# only configuration for which the original PyTorch forward is well-defined,
# since the decoder feeds its own output back as input).
# -----------------------------------------------------------------------------
def _seq2seq_kernel(
    x_ref,        # (S, B, 1)   f32   encoder input sequence (B = padded batch)
    h0_ref,       # (1, B, Hp)  f32   initial LSTM hidden (H zero-padded to Hp)
    c0_ref,       # (1, B, Hp)  f32   initial LSTM cell
    wih_e_ref,    # (1, 4Hp)    f32   LSTM W_ih (row form, input_size == 1)
    whh_e_ref,    # (Hp, 4Hp)   bf16  LSTM W_hh^T (per-gate padded)
    b_e_ref,      # (1, 4Hp)    f32   LSTM b_ih + b_hh
    wih_d_ref,    # (1, Hp)     f32   RNN  W_ih (row form, input_size == 1)
    wdec_ref,     # (Hp, 2Hp)   f32   [ RNN W_hh^T | w_lin replicated columns ]
    b_d_ref,      # (1, Hp)     f32   RNN  b_ih + b_hh
    blin_ref,     # (1, 1)      f32   Linear bias
    out_ref,      # (P, B, Hp)  f32   y replicated across lanes (lane 0 = output)
    xw_ref,       # VMEM scratch (S, B, 4Hp) f32 -- hoisted x-projection
):
  S = x_ref.shape[0]
  P = out_ref.shape[0]
  Hp = whh_e_ref.shape[0]

  # ---- hoisted input-side encoder projection (pure VPU; input_size == 1) ----
  xw_ref[...] = (
      x_ref[...] * wih_e_ref[...][None, :, :] + b_e_ref[...][None, :, :]
  )

  def _sigmoid(v):
    # sigmoid(x) = 0.5*tanh(0.5*x) + 0.5 : one EUP push instead of exp + recip.
    return 0.5 * jnp.tanh(0.5 * v) + 0.5

  # ---------------- LSTM encoder (PyTorch gate order: i, f, g, o) ------------
  # Fully unrolled (static, short trip count) so the LLO scheduler can overlap
  # EUP (tanh), VPU gate math and the single MXU matmul per step.
  h = h0_ref[0]                                             # (B, Hp) f32
  c = c0_ref[0]                                             # (B, Hp) f32
  for t in range(S):
    gates = xw_ref[t] + jnp.dot(                            # (B, 4Hp) f32 acc
        h.astype(jnp.bfloat16), whh_e_ref[...],
        preferred_element_type=jnp.float32)
    i_g = _sigmoid(gates[:, 0 * Hp:1 * Hp])
    f_g = _sigmoid(gates[:, 1 * Hp:2 * Hp])
    g_g = jnp.tanh(gates[:, 2 * Hp:3 * Hp])
    o_g = _sigmoid(gates[:, 3 * Hp:4 * Hp])
    c = f_g * c + i_g * g_g
    h = o_g * jnp.tanh(c)

  # ------- vanilla-RNN (tanh) decoder + fused Linear + ReLU, autoregressive --
  # Per step, a single (B, Hp) x (Hp, 2Hp) matmul yields both the recurrent
  # term (lanes [0, Hp)) and the previous step's Linear-head dot product
  # replicated over lanes [Hp, 2Hp)), so no XLU reduce/broadcast sits on the
  # serial chain.  y_{s-1} (replicated) feeds the step-s input projection as a
  # pure VPU multiply.
  wih_d = wih_d_ref[...]                                    # (1, Hp)
  b_d = b_d_ref[...]                                        # (1, Hp)
  blin = blin_ref[...]                                      # (1, 1)

  ys = []
  for s in range(P):                                        # fully unrolled
    fused = jnp.dot(h, wdec_ref[...],
                    preferred_element_type=jnp.float32)     # (B, 2Hp) f32
    if s == 0:
      x_proj = x_ref[S - 1] * wih_d                         # (B,1)*(1,Hp)
    else:
      y_rep = jnp.maximum(fused[:, Hp:2 * Hp] + blin, 0.0)  # y_{s-1}, replicated
      ys.append(y_rep)
      x_proj = y_rep * wih_d                                # pure VPU
    h = jnp.tanh(fused[:, 0:Hp] + x_proj + b_d)

  # Final step's Linear head: one extra (narrow) matmul against the w_lin block.
  last = jnp.dot(h, wdec_ref[:, Hp:2 * Hp],
                 preferred_element_type=jnp.float32)        # (B, Hp)
  ys.append(jnp.maximum(last + blin, 0.0))

  # Lane-dense stores, after the unrolled serial region.
  for s in range(P):
    out_ref[s] = ys[s]


# -----------------------------------------------------------------------------
# One-time parameter plumbing: pad H to 128-lane multiple, transpose, fuse
# biases, replicate w_lin into the augmented decoder weight, cast encoder W_hh
# to bf16.  Call once and reuse the result across forward calls.
# -----------------------------------------------------------------------------
def _pad_to(x, target, axis):
  pad = target - x.shape[axis]
  if pad == 0:
    return x
  widths = [(0, 0)] * x.ndim
  widths[axis] = (0, pad)
  return jnp.pad(x, widths)


def prepare_params(params):
  H = params["whh_enc"].shape[1]
  in_size = params["wih_enc"].shape[1]
  out_size = params["w_lin"].shape[0]
  # The autoregressive decoder feeds its output back as input, so the module is
  # only well-defined for input_size == output_size; the kernel additionally
  # specializes the degenerate (K=1 / N=1) projections to VPU ops.
  assert in_size == 1 and out_size == 1, (
      "kernel is specialized to input_size == output_size == 1 "
      f"(got input_size={in_size}, output_size={out_size})")

  Hp = -(-H // 128) * 128        # e.g. module default H=200 -> Hp=256

  def pad_gates_vec(v):          # (4H,) -> (1, 4Hp), zero-padded per gate
    v = v.reshape(4, H).astype(jnp.float32)
    return _pad_to(v, Hp, 1).reshape(1, 4 * Hp)

  # ----- encoder (LSTM) -----
  wih_e = pad_gates_vec(params["wih_enc"].reshape(4 * H))
  b_e = pad_gates_vec(params["bih_enc"] + params["bhh_enc"])
  whh = params["whh_enc"].reshape(4, H, H).astype(jnp.float32)   # [gate,out,in]
  whh = _pad_to(_pad_to(whh, Hp, 1), Hp, 2)                      # (4, Hp, Hp)
  whh_e = (jnp.transpose(whh, (2, 0, 1))                         # [in,gate,out]
           .reshape(Hp, 4 * Hp).astype(jnp.bfloat16))

  # ----- decoder (RNN) + fused Linear head -----
  wih_d = _pad_to(params["wih_dec"].reshape(1, H).astype(jnp.float32), Hp, 1)
  b_d = _pad_to((params["bih_dec"] + params["bhh_dec"])
                .reshape(1, H).astype(jnp.float32), Hp, 1)
  whh_d = _pad_to(_pad_to(params["whh_dec"].T.astype(jnp.float32), Hp, 0),
                  Hp, 1)                                          # (Hp, Hp)
  wlin = _pad_to(params["w_lin"].reshape(1, H).astype(jnp.float32), Hp, 1)
  wlin_rep = jnp.broadcast_to(wlin.reshape(Hp, 1), (Hp, Hp))      # cols == w_lin
  wdec = jnp.concatenate([whh_d, wlin_rep], axis=1)               # (Hp, 2Hp) f32
  blin = params["b_lin"].reshape(1, 1).astype(jnp.float32)

  return {"wih_e": wih_e, "whh_e": whh_e, "b_e": b_e,
          "wih_d": wih_d, "wdec": wdec, "b_d": b_d, "blin": blin}


# -----------------------------------------------------------------------------
# Forward wrapper: batch/H padding of activations + pallas_call.
# -----------------------------------------------------------------------------
@functools.partial(jax.jit, static_argnames=("pred_length",))
def lstm_seq2seq_forward(input_seq, hidden_cell, prepared, pred_length):
  h0, c0 = hidden_cell
  seq_len, batch, in_size = input_seq.shape
  assert in_size == 1
  Hp = prepared["whh_e"].shape[0]
  H = h0.shape[-1]

  # Pad batch up to a full 8-row f32 sublane tile and hidden up to Hp.  Padded
  # rows/lanes compute junk-but-finite data (padded hidden lanes provably stay
  # exactly zero) and are sliced away below.
  b_pad = max(8, -(-batch // 8) * 8)
  pad_b = b_pad - batch
  x = jnp.pad(input_seq.astype(jnp.float32), ((0, 0), (0, pad_b), (0, 0)))
  h0p = jnp.pad(h0.astype(jnp.float32), ((0, 0), (0, pad_b), (0, Hp - H)))
  c0p = jnp.pad(c0.astype(jnp.float32), ((0, 0), (0, pad_b), (0, Hp - H)))

  args = (x, h0p, c0p,
          prepared["wih_e"], prepared["whh_e"], prepared["b_e"],
          prepared["wih_d"], prepared["wdec"], prepared["b_d"],
          prepared["blin"])

  vmem = pl.BlockSpec(memory_space=pltpu.MemorySpace.VMEM)
  out = pl.pallas_call(
      _seq2seq_kernel,
      out_shape=jax.ShapeDtypeStruct((pred_length, b_pad, Hp), jnp.float32),
      in_specs=[vmem] * len(args),
      out_specs=vmem,
      scratch_shapes=[pltpu.VMEM((seq_len, b_pad, 4 * Hp), jnp.float32)],
  )(*args)
  # NOTE(v7x): no grid axis / second-TensorCore sharding is added on purpose —
  # at b_pad=8 rows the recurrence is latency-bound and splitting it would only
  # duplicate the serial chain.  Total VMEM footprint (<2 MiB) is far below the
  # 64 MiB v7x limit, so no re-tiling is needed either.
  #
  # y is replicated across the Hp lanes; lane 0 of the first `batch` rows is
  # the module's (pred_length, batch, 1) output.
  return out[:, :batch, :1]


# -----------------------------------------------------------------------------
# Pure-JAX f32 reference (mirrors the PyTorch forward exactly) for verification.
# -----------------------------------------------------------------------------
def reference_forward(input_seq, hidden_cell, params, pred_length):
  h0, c0 = hidden_cell
  H = params["whh_enc"].shape[1]
  h, c = h0[0], c0[0]
  for t in range(input_seq.shape[0]):
    x_t = input_seq[t]
    gates = (x_t @ params["wih_enc"].T + params["bih_enc"]
             + h @ params["whh_enc"].T + params["bhh_enc"])
    i_g = jax.nn.sigmoid(gates[:, 0 * H:1 * H])
    f_g = jax.nn.sigmoid(gates[:, 1 * H:2 * H])
    g_g = jnp.tanh(gates[:, 2 * H:3 * H])
    o_g = jax.nn.sigmoid(gates[:, 3 * H:4 * H])
    c = f_g * c + i_g * g_g
    h = o_g * jnp.tanh(c)
  dec_in = input_seq[-1]
  h_dec = h
  preds = []
  for _ in range(pred_length):
    h_dec = jnp.tanh(dec_in @ params["wih_dec"].T + params["bih_dec"]
                     + h_dec @ params["whh_dec"].T + params["bhh_dec"])
    y = jnp.maximum(h_dec @ params["w_lin"].T + params["b_lin"], 0.0)
    preds.append(y)
    dec_in = y
  return jnp.stack(preds, axis=0)


# -----------------------------------------------------------------------------
# Deterministic parameter init (PyTorch-style uniform(-1/sqrt(H), 1/sqrt(H))).
# -----------------------------------------------------------------------------
def init_params(key, input_size, hidden, output_size):
  k = 1.0 / jnp.sqrt(jnp.float32(hidden))
  keys = jax.random.split(key, 10)
  u = lambda kk, shape: jax.random.uniform(kk, shape, jnp.float32, -k, k)
  return {
      "wih_enc": u(keys[0], (4 * hidden, input_size)),
      "whh_enc": u(keys[1], (4 * hidden, hidden)),
      "bih_enc": u(keys[2], (4 * hidden,)),
      "bhh_enc": u(keys[3], (4 * hidden,)),
      "wih_dec": u(keys[4], (hidden, input_size)),
      "whh_dec": u(keys[5], (hidden, hidden)),
      "bih_dec": u(keys[6], (hidden,)),
      "bhh_dec": u(keys[7], (hidden,)),
      "w_lin":   u(keys[8], (output_size, hidden)),
      "b_lin":   u(keys[9], (output_size,)),
  }


if __name__ == "__main__":
  # Module defaults: input_size=output_size=1, hidden_layer_size=200 (exercises
  # the H -> 256 lane padding path), small sequence.
  input_size, output_size, hidden = 1, 1, 200
  seq_len, batch, pred_length = 8, 2, 4

  root = jax.random.PRNGKey(0)
  k_param, k_x = jax.random.split(root)
  params = init_params(k_param, input_size, hidden, output_size)

  input_seq = jax.random.normal(k_x, (seq_len, batch, input_size), jnp.float32)
  h0 = jnp.zeros((1, batch, hidden), jnp.float32)
  c0 = jnp.zeros((1, batch, hidden), jnp.float32)
  hidden_cell = (h0, c0)

  prepared = prepare_params(params)   # one-time weight plumbing, reused per call
  out = lstm_seq2seq_forward(input_seq, hidden_cell, prepared, pred_length)
  out = jax.block_until_ready(out)

  ref = reference_forward(input_seq, hidden_cell, params, pred_length)
  assert out.shape == (pred_length, batch, output_size), out.shape
  # Encoder recurrent matmuls run in bf16 (f32 accumulation) over 8 serial
  # steps at H=200; tolerance widened accordingly.  Structural errors would be
  # O(0.1+), so this is still a real check.
  assert jnp.allclose(out, ref, atol=5e-2, rtol=5e-2), (
      f"max abs err {jnp.max(jnp.abs(out - ref))}")

  print("KERNEL_OK")
</pallas_src>

<mosaic_0001>
module attributes {stable_mosaic.version = 11 : i64} {
  func.func @_seq2seq_kernel(%arg0: memref<8x8x1xf32, #tpu.memory_space<vmem>>, %arg1: memref<1x8x256xf32, #tpu.memory_space<vmem>>, %arg2: memref<1x8x256xf32, #tpu.memory_space<vmem>>, %arg3: memref<1x1024xf32, #tpu.memory_space<vmem>>, %arg4: memref<256x1024xbf16, #tpu.memory_space<vmem>>, %arg5: memref<1x1024xf32, #tpu.memory_space<vmem>>, %arg6: memref<1x256xf32, #tpu.memory_space<vmem>>, %arg7: memref<256x512xf32, #tpu.memory_space<vmem>>, %arg8: memref<1x256xf32, #tpu.memory_space<vmem>>, %arg9: memref<1x1xf32, #tpu.memory_space<vmem>>, %arg10: memref<4x8x256xf32, #tpu.memory_space<vmem>>, %arg11: memref<8x8x1024xf32, #tpu.memory_space<vmem>>) attributes {dimension_semantics = [], scalar_prefetch = 0 : i64, scratch_operands = 1 : i64, tpu.core_type = #tpu.core_type<tc>} {
    %c0 = arith.constant 0 : index
    %c0_0 = arith.constant 0 : index
    %c0_1 = arith.constant 0 : index
    %0 = vector.load %arg0[%c0, %c0_0, %c0_1] : memref<8x8x1xf32, #tpu.memory_space<vmem>>, vector<8x8x1xf32>
    %c0_2 = arith.constant 0 : index
    %c0_3 = arith.constant 0 : index
    %1 = vector.load %arg3[%c0_2, %c0_3] : memref<1x1024xf32, #tpu.memory_space<vmem>>, vector<1x1024xf32>
    %2 = vector.shape_cast %1 : vector<1x1024xf32> to vector<1x1x1024xf32>
    %3 = vector.broadcast %0 : vector<8x8x1xf32> to vector<8x8x1024xf32>
    %4 = vector.broadcast %2 : vector<1x1x1024xf32> to vector<8x8x1024xf32>
    %5 = arith.mulf %3, %4 : vector<8x8x1024xf32>
    %c0_4 = arith.constant 0 : index
    %c0_5 = arith.constant 0 : index
    %6 = vector.load %arg5[%c0_4, %c0_5] : memref<1x1024xf32, #tpu.memory_space<vmem>>, vector<1x1024xf32>
    %7 = vector.shape_cast %6 : vector<1x1024xf32> to vector<1x1x1024xf32>
    %8 = vector.broadcast %7 : vector<1x1x1024xf32> to vector<8x8x1024xf32>
    %9 = arith.addf %5, %8 : vector<8x8x1024xf32>
    %c0_6 = arith.constant 0 : index
    %c0_7 = arith.constant 0 : index
    %c0_8 = arith.constant 0 : index
    %10 = vector.load %arg11[%c0_6, %c0_7, %c0_8] : memref<8x8x1024xf32, #tpu.memory_space<vmem>>, vector<8x8x1024xf32>
    tpu.vector_store %arg11[%c0_6, %c0_7, %c0_8], %9 {strides = array<i32>} : memref<8x8x1024xf32, #tpu.memory_space<vmem>>, vector<8x8x1024xf32>,
    %c0_9 = arith.constant 0 : index
    %c0_10 = arith.constant 0 : index
    %c0_11 = arith.constant 0 : index
    %11 = vector.load %arg1[%c0_9, %c0_10, %c0_11] : memref<1x8x256xf32, #tpu.memory_space<vmem>>, vector<1x8x256xf32>
    %12 = vector.shape_cast %11 : vector<1x8x256xf32> to vector<8x256xf32>
    %c0_12 = arith.constant 0 : index
    %c0_13 = arith.constant 0 : index
    %c0_14 = arith.constant 0 : index
    %13 = vector.load %arg2[%c0_12, %c0_13, %c0_14] : memref<1x8x256xf32, #tpu.memory_space<vmem>>, vector<1x8x256xf32>
    %14 = vector.shape_cast %13 : vector<1x8x256xf32> to vector<8x256xf32>
    %c0_15 = arith.constant 0 : index
    %c0_16 = arith.constant 0 : index
    %c0_17 = arith.constant 0 : index
    %15 = vector.load %arg11[%c0_15, %c0_16, %c0_17] : memref<8x8x1024xf32, #tpu.memory_space<vmem>>, vector<1x8x1024xf32>
    %16 = vector.shape_cast %15 : vector<1x8x1024xf32> to vector<8x1024xf32>
    %17 = arith.truncf %12 : vector<8x256xf32> to vector<8x256xbf16>
    %c0_18 = arith.constant 0 : index
    %c0_19 = arith.constant 0 : index
    %18 = vector.load %arg4[%c0_18, %c0_19] : memref<256x1024xbf16, #tpu.memory_space<vmem>>, vector<256x1024xbf16>
    %cst = arith.constant dense<0.000000e+00> : vector<8x1024xf32>
    %19 = tpu.matmul %17, %18, %cst {dimension_numbers = #tpu.dot_dimension_numbers<[1], [0], [0], [1], [0, 0, 1, 1], [], []>} : vector<8x256xbf16>, vector<256x1024xbf16>, vector<8x1024xf32> -> vector<8x1024xf32>
    %20 = arith.addf %16, %19 : vector<8x1024xf32>
    %21 = vector.extract_strided_slice %20 {offsets = [0, 0], sizes = [8, 256], strides = [1, 1]} : vector<8x1024xf32> to vector<8x256xf32>
    %cst_20 = arith.constant 5.000000e-01 : f32
    %22 = vector.broadcast %cst_20 : f32 to vector<8x256xf32>
    %23 = arith.mulf %22, %21 : vector<8x256xf32>
    %24 = math.tanh %23 : vector<8x256xf32>
    %cst_21 = arith.constant 5.000000e-01 : f32
    %25 = vector.broadcast %cst_21 : f32 to vector<8x256xf32>
    %26 = arith.mulf %25, %24 : vector<8x256xf32>
    %cst_22 = arith.constant 5.000000e-01 : f32
    %27 = vector.broadcast %cst_22 : f32 to vector<8x256xf32>
    %28 = arith.addf %26, %27 : vector<8x256xf32>
    %29 = vector.extract_strided_slice %20 {offsets = [0, 256], sizes = [8, 256], strides = [1, 1]} : vector<8x1024xf32> to vector<8x256xf32>
    %cst_23 = arith.constant 5.000000e-01 : f32
    %30 = vector.broadcast %cst_23 : f32 to vector<8x256xf32>
    %31 = arith.mulf %30, %29 : vector<8x256xf32>
    %32 = math.tanh %31 : vector<8x256xf32>
    %cst_24 = arith.constant 5.000000e-01 : f32
    %33 = vector.broadcast %cst_24 : f32 to vector<8x256xf32>
    %34 = arith.mulf %33, %32 : vector<8x256xf32>
    %cst_25 = arith.constant 5.000000e-01 : f32
    %35 = vector.broadcast %cst_25 : f32 to vector<8x256xf32>
    %36 = arith.addf %34, %35 : vector<8x256xf32>
    %37 = vector.extract_strided_slice %20 {offsets = [0, 512], sizes = [8, 256], strides = [1, 1]} : vector<8x1024xf32> to vector<8x256xf32>
    %38 = math.tanh %37 : vector<8x256xf32>
    %39 = vector.extract_strided_slice %20 {offsets = [0, 768], sizes = [8, 256], strides = [1, 1]} : vector<8x1024xf32> to vector<8x256xf32>
    %cst_26 = arith.constant 5.000000e-01 : f32
    %40 = vector.broadcast %cst_26 : f32 to vector<8x256xf32>
    %41 = arith.mulf %40, %39 : vector<8x256xf32>
    %42 = math.tanh %41 : vector<8x256xf32>
    %cst_27 = arith.constant 5.000000e-01 : f32
    %43 = vector.broadcast %cst_27 : f32 to vector<8x256xf32>
    %44 = arith.mulf %43, %42 : vector<8x256xf32>
    %cst_28 = arith.constant 5.000000e-01 : f32
    %45 = vector.broadcast %cst_28 : f32 to vector<8x256xf32>
    %46 = arith.addf %44, %45 : vector<8x256xf32>
    %47 = arith.mulf %36, %14 : vector<8x256xf32>
    %48 = arith.mulf %28, %38 : vector<8x256xf32>
    %49 = arith.addf %47, %48 : vector<8x256xf32>
    %50 = math.tanh %49 : vector<8x256xf32>
    %51 = arith.mulf %46, %50 : vector<8x256xf32>
    %c1 = arith.constant 1 : index
    %c0_29 = arith.constant 0 : index
    %c0_30 = arith.constant 0 : index
    %52 = vector.load %arg11[%c1, %c0_29, %c0_30] : memref<8x8x1024xf32, #tpu.memory_space<vmem>>, vector<1x8x1024xf32>
    %53 = vector.shape_cast %52 : vector<1x8x1024xf32> to vector<8x1024xf32>
    %54 = arith.truncf %51 : vector<8x256xf32> to vector<8x256xbf16>
    %c0_31 = arith.constant 0 : index
    %c0_32 = arith.constant 0 : index
    %55 = vector.load %arg4[%c0_31, %c0_32] : memref<256x1024xbf16, #tpu.memory_space<vmem>>, vector<256x1024xbf16>
    %cst_33 = arith.constant dense<0.000000e+00> : vector<8x1024xf32>
    %56 = tpu.matmul %54, %55, %cst_33 {dimension_numbers = #tpu.dot_dimension_numbers<[1], [0], [0], [1], [0, 0, 1, 1], [], []>} : vector<8x256xbf16>, vector<256x1024xbf16>, vector<8x1024xf32> -> vector<8x1024xf32>
    %57 = arith.addf %53, %56 : vector<8x1024xf32>
    %58 = vector.extract_strided_slice %57 {offsets = [0, 0], sizes = [8, 256], strides = [1, 1]} : vector<8x1024xf32> to vector<8x256xf32>
    %cst_34 = arith.constant 5.000000e-01 : f32
    %59 = vector.broadcast %cst_34 : f32 to vector<8x256xf32>
    %60 = arith.mulf %59, %58 : vector<8x256xf32>
    %61 = math.tanh %60 : vector<8x256xf32>
    %cst_35 = arith.constant 5.000000e-01 : f32
    %62 = vector.broadcast %cst_35 : f32 to vector<8x256xf32>
    %63 = arith.mulf %62, %61 : vector<8x256xf32>
    %cst_36 = arith.constant 5.000000e-01 : f32
    %64 = vector.broadcast %cst_36 : f32 to vector<8x256xf32>
    %65 = arith.addf %63, %64 : vector<8x256xf32>
    %66 = vector.extract_strided_slice %57 {offsets = [0, 256], sizes = [8, 256], strides = [1, 1]} : vector<8x1024xf32> to vector<8x256xf32>
    %cst_37 = arith.constant 5.000000e-01 : f32
    %67 = vector.broadcast %cst_37 : f32 to vector<8x256xf32>
    %68 = arith.mulf %67, %66 : vector<8x256xf32>
    %69 = math.tanh %68 : vector<8x256xf32>
    %cst_38 = arith.constant 5.000000e-01 : f32
    %70 = vector.broadcast %cst_38 : f32 to vector<8x256xf32>
    %71 = arith.mulf %70, %69 : vector<8x256xf32>
    %cst_39 = arith.constant 5.000000e-01 : f32
    %72 = vector.broadcast %cst_39 : f32 to vector<8x256xf32>
    %73 = arith.addf %71, %72 : vector<8x256xf32>
    %74 = vector.extract_strided_slice %57 {offsets = [0, 512], sizes = [8, 256], strides = [1, 1]} : vector<8x1024xf32> to vector<8x256xf32>
    %75 = math.tanh %74 : vector<8x256xf32>
    %76 = vector.extract_strided_slice %57 {offsets = [0, 768], sizes = [8, 256], strides = [1, 1]} : vector<8x1024xf32> to vector<8x256xf32>
    %cst_40 = arith.constant 5.000000e-01 : f32
    %77 = vector.broadcast %cst_40 : f32 to vector<8x256xf32>
    %78 = arith.mulf %77, %76 : vector<8x256xf32>
    %79 = math.tanh %78 : vector<8x256xf32>
    %cst_41 = arith.constant 5.000000e-01 : f32
    %80 = vector.broadcast %cst_41 : f32 to vector<8x256xf32>
    %81 = arith.mulf %80, %79 : vector<8x256xf32>
    %cst_42 = arith.constant 5.000000e-01 : f32
    %82 = vector.broadcast %cst_42 : f32 to vector<8x256xf32>
    %83 = arith.addf %81, %82 : vector<8x256xf32>
    %84 = arith.mulf %73, %49 : vector<8x256xf32>
    %85 = arith.mulf %65, %75 : vector<8x256xf32>
    %86 = arith.addf %84, %85 : vector<8x256xf32>
    %87 = math.tanh %86 : vector<8x256xf32>
    %88 = arith.mulf %83, %87 : vector<8x256xf32>
    %c2 = arith.constant 2 : index
    %c0_43 = arith.constant 0 : index
    %c0_44 = arith.constant 0 : index
    %89 = vector.load %arg11[%c2, %c0_43, %c0_44] : memref<8x8x1024xf32, #tpu.memory_space<vmem>>, vector<1x8x1024xf32>
    %90 = vector.shape_cast %89 : vector<1x8x1024xf32> to vector<8x1024xf32>
    %91 = arith.truncf %88 : vector<8x256xf32> to vector<8x256xbf16>
    %c0_45 = arith.constant 0 : index
    %c0_46 = arith.constant 0 : index
    %92 = vector.load %arg4[%c0_45, %c0_46] : memref<256x1024xbf16, #tpu.memory_space<vmem>>, vector<256x1024xbf16>
    %cst_47 = arith.constant dense<0.000000e+00> : vector<8x1024xf32>
    %93 = tpu.matmul %91, %92, %cst_47 {dimension_numbers = #tpu.dot_dimension_numbers<[1], [0], [0], [1], [0, 0, 1, 1], [], []>} : vector<8x256xbf16>, vector<256x1024xbf16>, vector<8x1024xf32> -> vector<8x1024xf32>
    %94 = arith.addf %90, %93 : vector<8x1024xf32>
    %95 = vector.extract_strided_slice %94 {offsets = [0, 0], sizes = [8, 256], strides = [1, 1]} : vector<8x1024xf32> to vector<8x256xf32>
    %cst_48 = arith.constant 5.000000e-01 : f32
    %96 = vector.broadcast %cst_48 : f32 to vector<8x256xf32>
    %97 = arith.mulf %96, %95 : vector<8x256xf32>
    %98 = math.tanh %97 : vector<8x256xf32>
    %cst_49 = arith.constant 5.000000e-01 : f32
    %99 = vector.broadcast %cst_49 : f32 to vector<8x256xf32>
    %100 = arith.mulf %99, %98 : vector<8x256xf32>
    %cst_50 = arith.constant 5.000000e-01 : f32
    %101 = vector.broadcast %cst_50 : f32 to vector<8x256xf32>
    %102 = arith.addf %100, %101 : vector<8x256xf32>
    %103 = vector.extract_strided_slice %94 {offsets = [0, 256], sizes = [8, 256], strides = [1, 1]} : vector<8x1024xf32> to vector<8x256xf32>
    %cst_51 = arith.constant 5.000000e-01 : f32
    %104 = vector.broadcast %cst_51 : f32 to vector<8x256xf32>
    %105 = arith.mulf %104, %103 : vector<8x256xf32>
    %106 = math.tanh %105 : vector<8x256xf32>
    %cst_52 = arith.constant 5.000000e-01 : f32
    %107 = vector.broadcast %cst_52 : f32 to vector<8x256xf32>
    %108 = arith.mulf %107, %106 : vector<8x256xf32>
    %cst_53 = arith.constant 5.000000e-01 : f32
    %109 = vector.broadcast %cst_53 : f32 to vector<8x256xf32>
    %110 = arith.addf %108, %109 : vector<8x256xf32>
    %111 = vector.extract_strided_slice %94 {offsets = [0, 512], sizes = [8, 256], strides = [1, 1]} : vector<8x1024xf32> to vector<8x256xf32>
    %112 = math.tanh %111 : vector<8x256xf32>
    %113 = vector.extract_strided_slice %94 {offsets = [0, 768], sizes = [8, 256], strides = [1, 1]} : vector<8x1024xf32> to vector<8x256xf32>
    %cst_54 = arith.constant 5.000000e-01 : f32
    %114 = vector.broadcast %cst_54 : f32 to vector<8x256xf32>
    %115 = arith.mulf %114, %113 : vector<8x256xf32>
    %116 = math.tanh %115 : vector<8x256xf32>
    %cst_55 = arith.constant 5.000000e-01 : f32
    %117 = vector.broadcast %cst_55 : f32 to vector<8x256xf32>
    %118 = arith.mulf %117, %116 : vector<8x256xf32>
    %cst_56 = arith.constant 5.000000e-01 : f32
    %119 = vector.broadcast %cst_56 : f32 to vector<8x256xf32>
    %120 = arith.addf %118, %119 : vector<8x256xf32>
    %121 = arith.mulf %110, %86 : vector<8x256xf32>
    %122 = arith.mulf %102, %112 : vector<8x256xf32>
    %123 = arith.addf %121, %122 : vector<8x256xf32>
    %124 = math.tanh %123 : vector<8x256xf32>
    %125 = arith.mulf %120, %124 : vector<8x256xf32>
    %c3 = arith.constant 3 : index
    %c0_57 = arith.constant 0 : index
    %c0_58 = arith.constant 0 : index
    %126 = vector.load %arg11[%c3, %c0_57, %c0_58] : memref<8x8x1024xf32, #tpu.memory_space<vmem>>, vector<1x8x1024xf32>
    %127 = vector.shape_cast %126 : vector<1x8x1024xf32> to vector<8x1024xf32>
    %128 = arith.truncf %125 : vector<8x256xf32> to vector<8x256xbf16>
    %c0_59 = arith.constant 0 : index
    %c0_60 = arith.constant 0 : index
    %129 = vector.load %arg4[%c0_59, %c0_60] : memref<256x1024xbf16, #tpu.memory_space<vmem>>, vector<256x1024xbf16>
    %cst_61 = arith.constant dense<0.000000e+00> : vector<8x1024xf32>
    %130 = tpu.matmul %128, %129, %cst_61 {dimension_numbers = #tpu.dot_dimension_numbers<[1], [0], [0], [1], [0, 0, 1, 1], [], []>} : vector<8x256xbf16>, vector<256x1024xbf16>, vector<8x1024xf32> -> vector<8x1024xf32>
    %131 = arith.addf %127, %130 : vector<8x1024xf32>
    %132 = vector.extract_strided_slice %131 {offsets = [0, 0], sizes = [8, 256], strides = [1, 1]} : vector<8x1024xf32> to vector<8x256xf32>
    %cst_62 = arith.constant 5.000000e-01 : f32
    %133 = vector.broadcast %cst_62 : f32 to vector<8x256xf32>
    %134 = arith.mulf %133, %132 : vector<8x256xf32>
    %135 = math.tanh %134 : vector<8x256xf32>
    %cst_63 = arith.constant 5.000000e-01 : f32
    %136 = vector.broadcast %cst_63 : f32 to vector<8x256xf32>
    %137 = arith.mulf %136, %135 : vector<8x256xf32>
    %cst_64 = arith.constant 5.000000e-01 : f32
    %138 = vector.broadcast %cst_64 : f32 to vector<8x256xf32>
    %139 = arith.addf %137, %138 : vector<8x256xf32>
    %140 = vector.extract_strided_slice %131 {offsets = [0, 256], sizes = [8, 256], strides = [1, 1]} : vector<8x1024xf32> to vector<8x256xf32>
    %cst_65 = arith.constant 5.000000e-01 : f32
    %141 = vector.broadcast %cst_65 : f32 to vector<8x256xf32>
    %142 = arith.mulf %141, %140 : vector<8x256xf32>
    %143 = math.tanh %142 : vector<8x256xf32>
    %cst_66 = arith.constant 5.000000e-01 : f32
    %144 = vector.broadcast %cst_66 : f32 to vector<8x256xf32>
    %145 = arith.mulf %144, %143 : vector<8x256xf32>
    %cst_67 = arith.constant 5.000000e-01 : f32
    %146 = vector.broadcast %cst_67 : f32 to vector<8x256xf32>
    %147 = arith.addf %145, %146 : vector<8x256xf32>
    %148 = vector.extract_strided_slice %131 {offsets = [0, 512], sizes = [8, 256], strides = [1, 1]} : vector<8x1024xf32> to vector<8x256xf32>
    %149 = math.tanh %148 : vector<8x256xf32>
    %150 = vector.extract_strided_slice %131 {offsets = [0, 768], sizes = [8, 256], strides = [1, 1]} : vector<8x1024xf32> to vector<8x256xf32>
    %cst_68 = arith.constant 5.000000e-01 : f32
    %151 = vector.broadcast %cst_68 : f32 to vector<8x256xf32>
    %152 = arith.mulf %151, %150 : vector<8x256xf32>
    %153 = math.tanh %152 : vector<8x256xf32>
    %cst_69 = arith.constant 5.000000e-01 : f32
    %154 = vector.broadcast %cst_69 : f32 to vector<8x256xf32>
    %155 = arith.mulf %154, %153 : vector<8x256xf32>
    %cst_70 = arith.constant 5.000000e-01 : f32
    %156 = vector.broadcast %cst_70 : f32 to vector<8x256xf32>
    %157 = arith.addf %155, %156 : vector<8x256xf32>
    %158 = arith.mulf %147, %123 : vector<8x256xf32>
    %159 = arith.mulf %139, %149 : vector<8x256xf32>
    %160 = arith.addf %158, %159 : vector<8x256xf32>
    %161 = math.tanh %160 : vector<8x256xf32>
    %162 = arith.mulf %157, %161 : vector<8x256xf32>
    %c4 = arith.constant 4 : index
    %c0_71 = arith.constant 0 : index
    %c0_72 = arith.constant 0 : index
    %163 = vector.load %arg11[%c4, %c0_71, %c0_72] : memref<8x8x1024xf32, #tpu.memory_space<vmem>>, vector<1x8x1024xf32>
    %164 = vector.shape_cast %163 : vector<1x8x1024xf32> to vector<8x1024xf32>
    %165 = arith.truncf %162 : vector<8x256xf32> to vector<8x256xbf16>
    %c0_73 = arith.constant 0 : index
    %c0_74 = arith.constant 0 : index
    %166 = vector.load %arg4[%c0_73, %c0_74] : memref<256x1024xbf16, #tpu.memory_space<vmem>>, vector<256x1024xbf16>
    %cst_75 = arith.constant dense<0.000000e+00> : vector<8x1024xf32>
    %167 = tpu.matmul %165, %166, %cst_75 {dimension_numbers = #tpu.dot_dimension_numbers<[1], [0], [0], [1], [0, 0, 1, 1], [], []>} : vector<8x256xbf16>, vector<256x1024xbf16>, vector<8x1024xf32> -> vector<8x1024xf32>
    %168 = arith.addf %164, %167 : vector<8x1024xf32>
    %169 = vector.extract_strided_slice %168 {offsets = [0, 0], sizes = [8, 256], strides = [1, 1]} : vector<8x1024xf32> to vector<8x256xf32>
    %cst_76 = arith.constant 5.000000e-01 : f32
    %170 = vector.broadcast %cst_76 : f32 to vector<8x256xf32>
    %171 = arith.mulf %170, %169 : vector<8x256xf32>
    %172 = math.tanh %171 : vector<8x256xf32>
    %cst_77 = arith.constant 5.000000e-01 : f32
    %173 = vector.broadcast %cst_77 : f32 to vector<8x256xf32>
    %174 = arith.mulf %173, %172 : vector<8x256xf32>
    %cst_78 = arith.constant 5.000000e-01 : f32
    %175 = vector.broadcast %cst_78 : f32 to vector<8x256xf32>
    %176 = arith.addf %174, %175 : vector<8x256xf32>
    %177 = vector.extract_strided_slice %168 {offsets = [0, 256], sizes = [8, 256], strides = [1, 1]} : vector<8x1024xf32> to vector<8x256xf32>
    %cst_79 = arith.constant 5.000000e-01 : f32
    %178 = vector.broadcast %cst_79 : f32 to vector<8x256xf32>
    %179 = arith.mulf %178, %177 : vector<8x256xf32>
    %180 = math.tanh %179 : vector<8x256xf32>
    %cst_80 = arith.constant 5.000000e-01 : f32
    %181 = vector.broadcast %cst_80 : f32 to vector<8x256xf32>
    %182 = arith.mulf %181, %180 : vector<8x256xf32>
    %cst_81 = arith.constant 5.000000e-01 : f32
    %183 = vector.broadcast %cst_81 : f32 to vector<8x256xf32>
    %184 = arith.addf %182, %183 : vector<8x256xf32>
    %185 = vector.extract_strided_slice %168 {offsets = [0, 512], sizes = [8, 256], strides = [1, 1]} : vector<8x1024xf32> to vector<8x256xf32>
    %186 = math.tanh %185 : vector<8x256xf32>
    %187 = vector.extract_strided_slice %168 {offsets = [0, 768], sizes = [8, 256], strides = [1, 1]} : vector<8x1024xf32> to vector<8x256xf32>
    %cst_82 = arith.constant 5.000000e-01 : f32
    %188 = vector.broadcast %cst_82 : f32 to vector<8x256xf32>
    %189 = arith.mulf %188, %187 : vector<8x256xf32>
    %190 = math.tanh %189 : vector<8x256xf32>
    %cst_83 = arith.constant 5.000000e-01 : f32
    %191 = vector.broadcast %cst_83 : f32 to vector<8x256xf32>
    %192 = arith.mulf %191, %190 : vector<8x256xf32>
    %cst_84 = arith.constant 5.000000e-01 : f32
    %193 = vector.broadcast %cst_84 : f32 to vector<8x256xf32>
    %194 = arith.addf %192, %193 : vector<8x256xf32>
    %195 = arith.mulf %184, %160 : vector<8x256xf32>
    %196 = arith.mulf %176, %186 : vector<8x256xf32>
    %197 = arith.addf %195, %196 : vector<8x256xf32>
    %198 = math.tanh %197 : vector<8x256xf32>
    %199 = arith.mulf %194, %198 : vector<8x256xf32>
    %c5 = arith.constant 5 : index
    %c0_85 = arith.constant 0 : index
    %c0_86 = arith.constant 0 : index
    %200 = vector.load %arg11[%c5, %c0_85, %c0_86] : memref<8x8x1024xf32, #tpu.memory_space<vmem>>, vector<1x8x1024xf32>
    %201 = vector.shape_cast %200 : vector<1x8x1024xf32> to vector<8x1024xf32>
    %202 = arith.truncf %199 : vector<8x256xf32> to vector<8x256xbf16>
    %c0_87 = arith.constant 0 : index
    %c0_88 = arith.constant 0 : index
    %203 = vector.load %arg4[%c0_87, %c0_88] : memref<256x1024xbf16, #tpu.memory_space<vmem>>, vector<256x1024xbf16>
    %cst_89 = arith.constant dense<0.000000e+00> : vector<8x1024xf32>
    %204 = tpu.matmul %202, %203, %cst_89 {dimension_numbers = #tpu.dot_dimension_numbers<[1], [0], [0], [1], [0, 0, 1, 1], [], []>} : vector<8x256xbf16>, vector<256x1024xbf16>, vector<8x1024xf32> -> vector<8x1024xf32>
    %205 = arith.addf %201, %204 : vector<8x1024xf32>
    %206 = vector.extract_strided_slice %205 {offsets = [0, 0], sizes = [8, 256], strides = [1, 1]} : vector<8x1024xf32> to vector<8x256xf32>
    %cst_90 = arith.constant 5.000000e-01 : f32
    %207 = vector.broadcast %cst_90 : f32 to vector<8x256xf32>
    %208 = arith.mulf %207, %206 : vector<8x256xf32>
    %209 = math.tanh %208 : vector<8x256xf32>
    %cst_91 = arith.constant 5.000000e-01 : f32
    %210 = vector.broadcast %cst_91 : f32 to vector<8x256xf32>
    %211 = arith.mulf %210, %209 : vector<8x256xf32>
    %cst_92 = arith.constant 5.000000e-01 : f32
    %212 = vector.broadcast %cst_92 : f32 to vector<8x256xf32>
    %213 = arith.addf %211, %212 : vector<8x256xf32>
    %214 = vector.extract_strided_slice %205 {offsets = [0, 256], sizes = [8, 256], strides = [1, 1]} : vector<8x1024xf32> to vector<8x256xf32>
    %cst_93 = arith.constant 5.000000e-01 : f32
    %215 = vector.broadcast %cst_93 : f32 to vector<8x256xf32>
    %216 = arith.mulf %215, %214 : vector<8x256xf32>
    %217 = math.tanh %216 : vector<8x256xf32>
    %cst_94 = arith.constant 5.000000e-01 : f32
    %218 = vector.broadcast %cst_94 : f32 to vector<8x256xf32>
    %219 = arith.mulf %218, %217 : vector<8x256xf32>
    %cst_95 = arith.constant 5.000000e-01 : f32
    %220 = vector.broadcast %cst_95 : f32 to vector<8x256xf32>
    %221 = arith.addf %219, %220 : vector<8x256xf32>
    %222 = vector.extract_strided_slice %205 {offsets = [0, 512], sizes = [8, 256], strides = [1, 1]} : vector<8x1024xf32> to vector<8x256xf32>
    %223 = math.tanh %222 : vector<8x256xf32>
    %224 = vector.extract_strided_slice %205 {offsets = [0, 768], sizes = [8, 256], strides = [1, 1]} : vector<8x1024xf32> to vector<8x256xf32>
    %cst_96 = arith.constant 5.000000e-01 : f32
    %225 = vector.broadcast %cst_96 : f32 to vector<8x256xf32>
    %226 = arith.mulf %225, %224 : vector<8x256xf32>
    %227 = math.tanh %226 : vector<8x256xf32>
    %cst_97 = arith.constant 5.000000e-01 : f32
    %228 = vector.broadcast %cst_97 : f32 to vector<8x256xf32>
    %229 = arith.mulf %228, %227 : vector<8x256xf32>
    %cst_98 = arith.constant 5.000000e-01 : f32
    %230 = vector.broadcast %cst_98 : f32 to vector<8x256xf32>
    %231 = arith.addf %229, %230 : vector<8x256xf32>
    %232 = arith.mulf %221, %197 : vector<8x256xf32>
    %233 = arith.mulf %213, %223 : vector<8x256xf32>
    %234 = arith.addf %232, %233 : vector<8x256xf32>
    %235 = math.tanh %234 : vector<8x256xf32>
    %236 = arith.mulf %231, %235 : vector<8x256xf32>
    %c6 = arith.constant 6 : index
    %c0_99 = arith.constant 0 : index
    %c0_100 = arith.constant 0 : index
    %237 = vector.load %arg11[%c6, %c0_99, %c0_100] : memref<8x8x1024xf32, #tpu.memory_space<vmem>>, vector<1x8x1024xf32>
    %238 = vector.shape_cast %237 : vector<1x8x1024xf32> to vector<8x1024xf32>
    %239 = arith.truncf %236 : vector<8x256xf32> to vector<8x256xbf16>
    %c0_101 = arith.constant 0 : index
    %c0_102 = arith.constant 0 : index
    %240 = vector.load %arg4[%c0_101, %c0_102] : memref<256x1024xbf16, #tpu.memory_space<vmem>>, vector<256x1024xbf16>
    %cst_103 = arith.constant dense<0.000000e+00> : vector<8x1024xf32>
    %241 = tpu.matmul %239, %240, %cst_103 {dimension_numbers = #tpu.dot_dimension_numbers<[1], [0], [0], [1], [0, 0, 1, 1], [], []>} : vector<8x256xbf16>, vector<256x1024xbf16>, vector<8x1024xf32> -> vector<8x1024xf32>
    %242 = arith.addf %238, %241 : vector<8x1024xf32>
    %243 = vector.extract_strided_slice %242 {offsets = [0, 0], sizes = [8, 256], strides = [1, 1]} : vector<8x1024xf32> to vector<8x256xf32>
    %cst_104 = arith.constant 5.000000e-01 : f32
    %244 = vector.broadcast %cst_104 : f32 to vector<8x256xf32>
    %245 = arith.mulf %244, %243 : vector<8x256xf32>
    %246 = math.tanh %245 : vector<8x256xf32>
    %cst_105 = arith.constant 5.000000e-01 : f32
    %247 = vector.broadcast %cst_105 : f32 to vector<8x256xf32>
    %248 = arith.mulf %247, %246 : vector<8x256xf32>
    %cst_106 = arith.constant 5.000000e-01 : f32
    %249 = vector.broadcast %cst_106 : f32 to vector<8x256xf32>
    %250 = arith.addf %248, %249 : vector<8x256xf32>
    %251 = vector.extract_strided_slice %242 {offsets = [0, 256], sizes = [8, 256], strides = [1, 1]} : vector<8x1024xf32> to vector<8x256xf32>
    %cst_107 = arith.constant 5.000000e-01 : f32
    %252 = vector.broadcast %cst_107 : f32 to vector<8x256xf32>
    %253 = arith.mulf %252, %251 : vector<8x256xf32>
    %254 = math.tanh %253 : vector<8x256xf32>
    %cst_108 = arith.constant 5.000000e-01 : f32
    %255 = vector.broadcast %cst_108 : f32 to vector<8x256xf32>
    %256 = arith.mulf %255, %254 : vector<8x256xf32>
    %cst_109 = arith.constant 5.000000e-01 : f32
    %257 = vector.broadcast %cst_109 : f32 to vector<8x256xf32>
    %258 = arith.addf %256, %257 : vector<8x256xf32>
    %259 = vector.extract_strided_slice %242 {offsets = [0, 512], sizes = [8, 256], strides = [1, 1]} : vector<8x1024xf32> to vector<8x256xf32>
    %260 = math.tanh %259 : vector<8x256xf32>
    %261 = vector.extract_strided_slice %242 {offsets = [0, 768], sizes = [8, 256], strides = [1, 1]} : vector<8x1024xf32> to vector<8x256xf32>
    %cst_110 = arith.constant 5.000000e-01 : f32
    %262 = vector.broadcast %cst_110 : f32 to vector<8x256xf32>
    %263 = arith.mulf %262, %261 : vector<8x256xf32>
    %264 = math.tanh %263 : vector<8x256xf32>
    %cst_111 = arith.constant 5.000000e-01 : f32
    %265 = vector.broadcast %cst_111 : f32 to vector<8x256xf32>
    %266 = arith.mulf %265, %264 : vector<8x256xf32>
    %cst_112 = arith.constant 5.000000e-01 : f32
    %267 = vector.broadcast %cst_112 : f32 to vector<8x256xf32>
    %268 = arith.addf %266, %267 : vector<8x256xf32>
    %269 = arith.mulf %258, %234 : vector<8x256xf32>
    %270 = arith.mulf %250, %260 : vector<8x256xf32>
    %271 = arith.addf %269, %270 : vector<8x256xf32>
    %272 = math.tanh %271 : vector<8x256xf32>
    %273 = arith.mulf %268, %272 : vector<8x256xf32>
    %c7 = arith.constant 7 : index
    %c0_113 = arith.constant 0 : index
    %c0_114 = arith.constant 0 : index
    %274 = vector.load %arg11[%c7, %c0_113, %c0_114] : memref<8x8x1024xf32, #tpu.memory_space<vmem>>, vector<1x8x1024xf32>
    %275 = vector.shape_cast %274 : vector<1x8x1024xf32> to vector<8x1024xf32>
    %276 = arith.truncf %273 : vector<8x256xf32> to vector<8x256xbf16>
    %c0_115 = arith.constant 0 : index
    %c0_116 = arith.constant 0 : index
    %277 = vector.load %arg4[%c0_115, %c0_116] : memref<256x1024xbf16, #tpu.memory_space<vmem>>, vector<256x1024xbf16>
    %cst_117 = arith.constant dense<0.000000e+00> : vector<8x1024xf32>
    %278 = tpu.matmul %276, %277, %cst_117 {dimension_numbers = #tpu.dot_dimension_numbers<[1], [0], [0], [1], [0, 0, 1, 1], [], []>} : vector<8x256xbf16>, vector<256x1024xbf16>, vector<8x1024xf32> -> vector<8x1024xf32>
    %279 = arith.addf %275, %278 : vector<8x1024xf32>
    %280 = vector.extract_strided_slice %279 {offsets = [0, 0], sizes = [8, 256], strides = [1, 1]} : vector<8x1024xf32> to vector<8x256xf32>
    %cst_118 = arith.constant 5.000000e-01 : f32
    %281 = vector.broadcast %cst_118 : f32 to vector<8x256xf32>
    %282 = arith.mulf %281, %280 : vector<8x256xf32>
    %283 = math.tanh %282 : vector<8x256xf32>
    %cst_119 = arith.constant 5.000000e-01 : f32
    %284 = vector.broadcast %cst_119 : f32 to vector<8x256xf32>
    %285 = arith.mulf %284, %283 : vector<8x256xf32>
    %cst_120 = arith.constant 5.000000e-01 : f32
    %286 = vector.broadcast %cst_120 : f32 to vector<8x256xf32>
    %287 = arith.addf %285, %286 : vector<8x256xf32>
    %288 = vector.extract_strided_slice %279 {offsets = [0, 256], sizes = [8, 256], strides = [1, 1]} : vector<8x1024xf32> to vector<8x256xf32>
    %cst_121 = arith.constant 5.000000e-01 : f32
    %289 = vector.broadcast %cst_121 : f32 to vector<8x256xf32>
    %290 = arith.mulf %289, %288 : vector<8x256xf32>
    %291 = math.tanh %290 : vector<8x256xf32>
    %cst_122 = arith.constant 5.000000e-01 : f32
    %292 = vector.broadcast %cst_122 : f32 to vector<8x256xf32>
    %293 = arith.mulf %292, %291 : vector<8x256xf32>
    %cst_123 = arith.constant 5.000000e-01 : f32
    %294 = vector.broadcast %cst_123 : f32 to vector<8x256xf32>
    %295 = arith.addf %293, %294 : vector<8x256xf32>
    %296 = vector.extract_strided_slice %279 {offsets = [0, 512], sizes = [8, 256], strides = [1, 1]} : vector<8x1024xf32> to vector<8x256xf32>
    %297 = math.tanh %296 : vector<8x256xf32>
    %298 = vector.extract_strided_slice %279 {offsets = [0, 768], sizes = [8, 256], strides = [1, 1]} : vector<8x1024xf32> to vector<8x256xf32>
    %cst_124 = arith.constant 5.000000e-01 : f32
    %299 = vector.broadcast %cst_124 : f32 to vector<8x256xf32>
    %300 = arith.mulf %299, %298 : vector<8x256xf32>
    %301 = math.tanh %300 : vector<8x256xf32>
    %cst_125 = arith.constant 5.000000e-01 : f32
    %302 = vector.broadcast %cst_125 : f32 to vector<8x256xf32>
    %303 = arith.mulf %302, %301 : vector<8x256xf32>
    %cst_126 = arith.constant 5.000000e-01 : f32
    %304 = vector.broadcast %cst_126 : f32 to vector<8x256xf32>
    %305 = arith.addf %303, %304 : vector<8x256xf32>
    %306 = arith.mulf %295, %271 : vector<8x256xf32>
    %307 = arith.mulf %287, %297 : vector<8x256xf32>
    %308 = arith.addf %306, %307 : vector<8x256xf32>
    %309 = math.tanh %308 : vector<8x256xf32>
    %310 = arith.mulf %305, %309 : vector<8x256xf32>
    %c0_127 = arith.constant 0 : index
    %c0_128 = arith.constant 0 : index
    %311 = vector.load %arg6[%c0_127, %c0_128] : memref<1x256xf32, #tpu.memory_space<vmem>>, vector<1x256xf32>
    %c0_129 = arith.constant 0 : index
    %c0_130 = arith.constant 0 : index
    %312 = vector.load %arg8[%c0_129, %c0_130] : memref<1x256xf32, #tpu.memory_space<vmem>>, vector<1x256xf32>
    %c0_131 = arith.constant 0 : index
    %c0_132 = arith.constant 0 : index
    %313 = vector.load %arg9[%c0_131, %c0_132] : memref<1x1xf32, #tpu.memory_space<vmem>>, vector<1x1xf32>
    %c0_133 = arith.constant 0 : index
    %c0_134 = arith.constant 0 : index
    %314 = vector.load %arg7[%c0_133, %c0_134] : memref<256x512xf32, #tpu.memory_space<vmem>>, vector<256x512xf32>
    %cst_135 = arith.constant dense<0.000000e+00> : vector<8x512xf32>
    %315 = tpu.matmul %310, %314, %cst_135 {dimension_numbers = #tpu.dot_dimension_numbers<[1], [0], [0], [1], [0, 0, 1, 1], [], []>} : vector<8x256xf32>, vector<256x512xf32>, vector<8x512xf32> -> vector<8x512xf32>
    %c7_136 = arith.constant 7 : index
    %c0_137 = arith.constant 0 : index
    %c0_138 = arith.constant 0 : index
    %316 = vector.load %arg0[%c7_136, %c0_137, %c0_138] : memref<8x8x1xf32, #tpu.memory_space<vmem>>, vector<1x8x1xf32>
    %317 = vector.shape_cast %316 : vector<1x8x1xf32> to vector<8x1xf32>
    %318 = vector.broadcast %317 : vector<8x1xf32> to vector<8x256xf32>
    %319 = vector.broadcast %311 : vector<1x256xf32> to vector<8x256xf32>
    %320 = arith.mulf %318, %319 : vector<8x256xf32>
    %321 = vector.extract_strided_slice %315 {offsets = [0, 0], sizes = [8, 256], strides = [1, 1]} : vector<8x512xf32> to vector<8x256xf32>
    %322 = arith.addf %321, %320 : vector<8x256xf32>
    %323 = vector.broadcast %312 : vector<1x256xf32> to vector<8x256xf32>
    %324 = arith.addf %322, %323 : vector<8x256xf32>
    %325 = math.tanh %324 : vector<8x256xf32>
    %c0_139 = arith.constant 0 : index
    %c0_140 = arith.constant 0 : index
    %326 = vector.load %arg7[%c0_139, %c0_140] : memref<256x512xf32, #tpu.memory_space<vmem>>, vector<256x512xf32>
    %cst_141 = arith.constant dense<0.000000e+00> : vector<8x512xf32>
    %327 = tpu.matmul %325, %326, %cst_141 {dimension_numbers = #tpu.dot_dimension_numbers<[1], [0], [0], [1], [0, 0, 1, 1], [], []>} : vector<8x256xf32>, vector<256x512xf32>, vector<8x512xf32> -> vector<8x512xf32>
    %328 = vector.extract_strided_slice %327 {offsets = [0, 256], sizes = [8, 256], strides = [1, 1]} : vector<8x512xf32> to vector<8x256xf32>
    %329 = vector.broadcast %313 : vector<1x1xf32> to vector<8x256xf32>
    %330 = arith.addf %328, %329 : vector<8x256xf32>
    %cst_142 = arith.constant 0.000000e+00 : f32
    %331 = vector.broadcast %cst_142 : f32 to vector<8x256xf32>
    %332 = arith.maximumf %330, %331 : vector<8x256xf32>
    %333 = vector.broadcast %311 : vector<1x256xf32> to vector<8x256xf32>
    %334 = arith.mulf %332, %333 : vector<8x256xf32>
    %335 = vector.extract_strided_slice %327 {offsets = [0, 0], sizes = [8, 256], strides = [1, 1]} : vector<8x512xf32> to vector<8x256xf32>
    %336 = arith.addf %335, %334 : vector<8x256xf32>
    %337 = vector.broadcast %312 : vector<1x256xf32> to vector<8x256xf32>
    %338 = arith.addf %336, %337 : vector<8x256xf32>
    %339 = math.tanh %338 : vector<8x256xf32>
    %c0_143 = arith.constant 0 : index
    %c0_144 = arith.constant 0 : index
    %340 = vector.load %arg7[%c0_143, %c0_144] : memref<256x512xf32, #tpu.memory_space<vmem>>, vector<256x512xf32>
    %cst_145 = arith.constant dense<0.000000e+00> : vector<8x512xf32>
    %341 = tpu.matmul %339, %340, %cst_145 {dimension_numbers = #tpu.dot_dimension_numbers<[1], [0], [0], [1], [0, 0, 1, 1], [], []>} : vector<8x256xf32>, vector<256x512xf32>, vector<8x512xf32> -> vector<8x512xf32>
    %342 = vector.extract_strided_slice %341 {offsets = [0, 256], sizes = [8, 256], strides = [1, 1]} : vector<8x512xf32> to vector<8x256xf32>
    %343 = vector.broadcast %313 : vector<1x1xf32> to vector<8x256xf32>
    %344 = arith.addf %342, %343 : vector<8x256xf32>
    %cst_146 = arith.constant 0.000000e+00 : f32
    %345 = vector.broadcast %cst_146 : f32 to vector<8x256xf32>
    %346 = arith.maximumf %344, %345 : vector<8x256xf32>
    %347 = vector.broadcast %311 : vector<1x256xf32> to vector<8x256xf32>
    %348 = arith.mulf %346, %347 : vector<8x256xf32>
    %349 = vector.extract_strided_slice %341 {offsets = [0, 0], sizes = [8, 256], strides = [1, 1]} : vector<8x512xf32> to vector<8x256xf32>
    %350 = arith.addf %349, %348 : vector<8x256xf32>
    %351 = vector.broadcast %312 : vector<1x256xf32> to vector<8x256xf32>
    %352 = arith.addf %350, %351 : vector<8x256xf32>
    %353 = math.tanh %352 : vector<8x256xf32>
    %c0_147 = arith.constant 0 : index
    %c0_148 = arith.constant 0 : index
    %354 = vector.load %arg7[%c0_147, %c0_148] : memref<256x512xf32, #tpu.memory_space<vmem>>, vector<256x512xf32>
    %cst_149 = arith.constant dense<0.000000e+00> : vector<8x512xf32>
    %355 = tpu.matmul %353, %354, %cst_149 {dimension_numbers = #tpu.dot_dimension_numbers<[1], [0], [0], [1], [0, 0, 1, 1], [], []>} : vector<8x256xf32>, vector<256x512xf32>, vector<8x512xf32> -> vector<8x512xf32>
    %356 = vector.extract_strided_slice %355 {offsets = [0, 256], sizes = [8, 256], strides = [1, 1]} : vector<8x512xf32> to vector<8x256xf32>
    %357 = vector.broadcast %313 : vector<1x1xf32> to vector<8x256xf32>
    %358 = arith.addf %356, %357 : vector<8x256xf32>
    %cst_150 = arith.constant 0.000000e+00 : f32
    %359 = vector.broadcast %cst_150 : f32 to vector<8x256xf32>
    %360 = arith.maximumf %358, %359 : vector<8x256xf32>
    %361 = vector.broadcast %311 : vector<1x256xf32> to vector<8x256xf32>
    %362 = arith.mulf %360, %361 : vector<8x256xf32>
    %363 = vector.extract_strided_slice %355 {offsets = [0, 0], sizes = [8, 256], strides = [1, 1]} : vector<8x512xf32> to vector<8x256xf32>
    %364 = arith.addf %363, %362 : vector<8x256xf32>
    %365 = vector.broadcast %312 : vector<1x256xf32> to vector<8x256xf32>
    %366 = arith.addf %364, %365 : vector<8x256xf32>
    %367 = math.tanh %366 : vector<8x256xf32>
    %c0_151 = arith.constant 0 : index
    %c256 = arith.constant 256 : index
    %368 = vector.load %arg7[%c0_151, %c256] : memref<256x512xf32, #tpu.memory_space<vmem>>, vector<256x256xf32>
    %cst_152 = arith.constant dense<0.000000e+00> : vector<8x256xf32>
    %369 = tpu.matmul %367, %368, %cst_152 {dimension_numbers = #tpu.dot_dimension_numbers<[1], [0], [0], [1], [0, 0, 1, 1], [], []>} : vector<8x256xf32>, vector<256x256xf32>, vector<8x256xf32> -> vector<8x256xf32>
    %370 = vector.broadcast %313 : vector<1x1xf32> to vector<8x256xf32>
    %371 = arith.addf %369, %370 : vector<8x256xf32>
    %cst_153 = arith.constant 0.000000e+00 : f32
    %372 = vector.broadcast %cst_153 : f32 to vector<8x256xf32>
    %373 = arith.maximumf %371, %372 : vector<8x256xf32>
    %c0_154 = arith.constant 0 : index
    %c0_155 = arith.constant 0 : index
    %c0_156 = arith.constant 0 : index
    %374 = vector.load %arg10[%c0_154, %c0_155, %c0_156] : memref<4x8x256xf32, #tpu.memory_space<vmem>>, vector<1x8x256xf32>
    %375 = vector.shape_cast %374 : vector<1x8x256xf32> to vector<8x256xf32>
    %376 = vector.shape_cast %332 : vector<8x256xf32> to vector<1x8x256xf32>
    tpu.vector_store %arg10[%c0_154, %c0_155, %c0_156], %376 {strides = array<i32>} : memref<4x8x256xf32, #tpu.memory_space<vmem>>, vector<1x8x256xf32>,
    %c1_157 = arith.constant 1 : index
    %c0_158 = arith.constant 0 : index
    %c0_159 = arith.constant 0 : index
    %377 = vector.load %arg10[%c1_157, %c0_158, %c0_159] : memref<4x8x256xf32, #tpu.memory_space<vmem>>, vector<1x8x256xf32>
    %378 = vector.shape_cast %377 : vector<1x8x256xf32> to vector<8x256xf32>
    %379 = vector.shape_cast %346 : vector<8x256xf32> to vector<1x8x256xf32>
    tpu.vector_store %arg10[%c1_157, %c0_158, %c0_159], %379 {strides = array<i32>} : memref<4x8x256xf32, #tpu.memory_space<vmem>>, vector<1x8x256xf32>,
    %c2_160 = arith.constant 2 : index
    %c0_161 = arith.constant 0 : index
    %c0_162 = arith.constant 0 : index
    %380 = vector.load %arg10[%c2_160, %c0_161, %c0_162] : memref<4x8x256xf32, #tpu.memory_space<vmem>>, vector<1x8x256xf32>
    %381 = vector.shape_cast %380 : vector<1x8x256xf32> to vector<8x256xf32>
    %382 = vector.shape_cast %360 : vector<8x256xf32> to vector<1x8x256xf32>
    tpu.vector_store %arg10[%c2_160, %c0_161, %c0_162], %382 {strides = array<i32>} : memref<4x8x256xf32, #tpu.memory_space<vmem>>, vector<1x8x256xf32>,
    %c3_163 = arith.constant 3 : index
    %c0_164 = arith.constant 0 : index
    %c0_165 = arith.constant 0 : index
    %383 = vector.load %arg10[%c3_163, %c0_164, %c0_165] : memref<4x8x256xf32, #tpu.memory_space<vmem>>, vector<1x8x256xf32>
    %384 = vector.shape_cast %383 : vector<1x8x256xf32> to vector<8x256xf32>
    %385 = vector.shape_cast %373 : vector<8x256xf32> to vector<1x8x256xf32>
    tpu.vector_store %arg10[%c3_163, %c0_164, %c0_165], %385 {strides = array<i32>} : memref<4x8x256xf32, #tpu.memory_space<vmem>>, vector<1x8x256xf32>,
    return
  }
}

</mosaic_0001>

<llo_original>
// kernel: lstm_seq2seq_forward.1
$region0: #{lstm_seq2seq_forward.1}
  #allocation0 [shape = 'u32[]', space=smem, size = 0x4, offset = 0x4, fixed_abs, tag = 'smem constant byte address 0x4 - core index']
  #allocation1 [shape = 'u32[144,128]{1,0:T(1,128)}', space=vmem, size = 0x12000, scoped, tag = 'internal scratch']
  #allocation2 [shape = 'f32[8,8,1024]{2,1,0:T(8,128)}', space=vmem, size = 0x40000, scoped, tag = 'scratch operand']
  #allocation3 [shape = 'f32[1,1]{1,0:T(1,128)S(1)}', space=vmem, size = 0x200, scoped, tag = 'scoped memory for lstm_seq2seq_forward.1']
  %s0 = inlined_call_operand.vmem [shape: f32[8,8,1], index: 0, kind: input, shape index: {}]
  %s1 = inlined_call_operand.vmem [shape: f32[1,8,256], index: 1, kind: input, shape index: {}]
  %s2 = inlined_call_operand.vmem [shape: f32[1,8,256], index: 2, kind: input, shape index: {}]
  %s3 = inlined_call_operand.vmem [shape: f32[1,1024], index: 3, kind: input, shape index: {}]
  %s4 = inlined_call_operand.hbm [shape: bf16[256,1024], index: 4, kind: input, shape index: {}]
  %s5 = inlined_call_operand.vmem [shape: f32[1,1024], index: 5, kind: input, shape index: {}]
  %s6 = inlined_call_operand.vmem [shape: f32[1,256], index: 6, kind: input, shape index: {}]
  %s7 = inlined_call_operand.hbm [shape: f32[256,512], index: 7, kind: input, shape index: {}]
  %s8 = inlined_call_operand.vmem [shape: f32[1,256], index: 8, kind: input, shape index: {}]
  %s9 = inlined_call_operand.<no memory space> [shape: f32[1,1], index: 9, kind: input, shape index: {}]
  %s10 = inlined_call_operand.vmem [shape: f32[4,8,256], index: 10, kind: output, shape index: {}]
  %s11 = sld [smem:[#allocation0]]
  $region58: #{lstm_seq2seq_forward.1} parent=0
    _
  %s13 = ssub.s32 1, %s11
  %s14 = scalar_select 0, %s13, %s11
  %v15 = vstv %s9
  %16 = vst [vmem:[#allocation3] sm:$0x1] %v15
  $region1: #{lstm_seq2seq_forward.1} parent=0
    #allocation4 [shape = 'u8[524288]{0}', space=vmem, size = 0x80000, scoped, tag = 'input window, operand 4, single buffered']
    #allocation5 [shape = 's32[1]{0}', space=sflag, size = 0x4, scoped, tag = 'scoped memory for lstm_seq2seq_forward.1']
    #allocation6 [shape = 'u8[524288]{0}', space=vmem, size = 0x80000, scoped, tag = 'input window, operand 7, single buffered']
    #allocation7 [shape = 's32[1]{0}', space=sflag, size = 0x4, scoped, tag = 'scoped memory for lstm_seq2seq_forward.1']
    %17 = vsyncpa [#allocation5], 0
    %18 = vsyncpa [#allocation7], 0
    // Predicated region
    $region2: #{lstm_seq2seq_forward.1} parent=1 // pred_check
      _
    $region3: #{lstm_seq2seq_forward.1} parent=1 // pred_check_branch
      %20 = sbr.rel (0) target = $region5
    $region4: #{lstm_seq2seq_forward.1} parent=1 // pred_region
      _
    $region5: #{lstm_seq2seq_forward.1} parent=1 // pred_fallthru
      _
    // Predicated region
    $region6: #{lstm_seq2seq_forward.1} parent=1 // pred_check
      _
    $region7: #{lstm_seq2seq_forward.1} parent=1 // pred_check_branch
      %22 = sbr.rel (0) target = $region9
    $region8: #{lstm_seq2seq_forward.1} parent=1 // pred_region
      _
    $region9: #{lstm_seq2seq_forward.1} parent=1 // pred_fallthru
      _
    // Predicated region
    $region10: #{lstm_seq2seq_forward.1} parent=1 // pred_check
      _
    $region11: #{lstm_seq2seq_forward.1} parent=1 // pred_check_branch
      %24 = sbr.rel (0) target = $region13
    $region12: #{lstm_seq2seq_forward.1} parent=1 // pred_region
      _
    $region13: #{lstm_seq2seq_forward.1} parent=1 // pred_fallthru
      _
    // Predicated region
    $region14: #{lstm_seq2seq_forward.1} parent=1 // pred_check
      _
    $region15: #{lstm_seq2seq_forward.1} parent=1 // pred_check_branch
      %26 = sbr.rel (0) target = $region17
    $region16: #{lstm_seq2seq_forward.1} parent=1 // pred_region
      _
    $region17: #{lstm_seq2seq_forward.1} parent=1 // pred_fallthru
      _
    // Predicated region
    $region18: #{lstm_seq2seq_forward.1} parent=1 // pred_check
      _
    $region19: #{lstm_seq2seq_forward.1} parent=1 // pred_check_branch
      %28 = sbr.rel (0) target = $region21
    $region20: #{lstm_seq2seq_forward.1} parent=1 // pred_region
      %s30 = ssub.s32 16384, 16384
      %31 = vsyncadd [#allocation5], %s30
      %s32 = sshll.u32 [#allocation4], 4
      %s33 = int_to_ptr.vmem [resolvable:$true] %s32
      %38 = dma.hbm_to_vmem [thread:$0]  %s4, 16384, %s33, [#allocation5], 512, 512, 32
    $region21: #{lstm_seq2seq_forward.1} parent=1 // pred_fallthru
      _
    // Predicated region
    $region22: #{lstm_seq2seq_forward.1} parent=1 // pred_check
      _
    $region23: #{lstm_seq2seq_forward.1} parent=1 // pred_check_branch
      %40 = sbr.rel (0) target = $region25
    $region24: #{lstm_seq2seq_forward.1} parent=1 // pred_region
      _
    $region25: #{lstm_seq2seq_forward.1} parent=1 // pred_fallthru
      _
    // Predicated region
    $region26: #{lstm_seq2seq_forward.1} parent=1 // pred_check
      _
    $region27: #{lstm_seq2seq_forward.1} parent=1 // pred_check_branch
      %42 = sbr.rel (0) target = $region29
    $region28: #{lstm_seq2seq_forward.1} parent=1 // pred_region
      _
    $region29: #{lstm_seq2seq_forward.1} parent=1 // pred_fallthru
      _
    // Predicated region
    $region30: #{lstm_seq2seq_forward.1} parent=1 // pred_check
      _
    $region31: #{lstm_seq2seq_forward.1} parent=1 // pred_check_branch
      %44 = sbr.rel (0) target = $region33
    $region32: #{lstm_seq2seq_forward.1} parent=1 // pred_region
      %s46 = ssub.s32 16384, 16384
      %47 = vsyncadd [#allocation7], %s46
      %s48 = sshll.u32 [#allocation6], 4
      %s49 = int_to_ptr.vmem [resolvable:$true] %s48
      %54 = dma.hbm_to_vmem [thread:$0]  %s7, 16384, %s49, [#allocation7], 512, 512, 32
    $region33: #{lstm_seq2seq_forward.1} parent=1 // pred_fallthru
      _
    // Predicated region
    $region34: #{lstm_seq2seq_forward.1} parent=1 // pred_check
      _
    $region35: #{lstm_seq2seq_forward.1} parent=1 // pred_check_branch
      %56 = sbr.rel (0) target = $region37
    $region36: #{lstm_seq2seq_forward.1} parent=1 // pred_region
      _
    $region37: #{lstm_seq2seq_forward.1} parent=1 // pred_fallthru
      _
    // Predicated region
    $region38: #{lstm_seq2seq_forward.1} parent=1 // pred_check
      _
    $region39: #{lstm_seq2seq_forward.1} parent=1 // pred_check_branch
      %58 = sbr.rel (0) target = $region41
    $region40: #{lstm_seq2seq_forward.1} parent=1 // pred_region
      _
    $region41: #{lstm_seq2seq_forward.1} parent=1 // pred_fallthru
      _
    // Predicated region
    $region42: #{lstm_seq2seq_forward.1} parent=1 // pred_check
      _
    $region43: #{lstm_seq2seq_forward.1} parent=1 // pred_check_branch
      %60 = sbr.rel (0) target = $region45
    $region44: #{lstm_seq2seq_forward.1} parent=1 // pred_region
      %61 = dma.done [#allocation5], 16384
    $region45: #{lstm_seq2seq_forward.1} parent=1 // pred_fallthru
      _
    // Predicated region
    $region46: #{lstm_seq2seq_forward.1} parent=1 // pred_check
      _
    $region47: #{lstm_seq2seq_forward.1} parent=1 // pred_check_branch
      %63 = sbr.rel (0) target = $region49
    $region48: #{lstm_seq2seq_forward.1} parent=1 // pred_region
      %64 = dma.done [#allocation7], 16384
    $region49: #{lstm_seq2seq_forward.1} parent=1 // pred_fallthru
      _
    %v65 = vld [vmem:[%s0] sm:$0xff]
    %v66 = vld [vmem:[%s0 + $0x8] sm:$0xff]
    %v67 = vld [vmem:[%s0 + $0x10] sm:$0xff]
    %v68 = vld [vmem:[%s0 + $0x18] sm:$0xff]
    %v69 = vld [vmem:[%s0 + $0x20] sm:$0xff]
    %v70 = vld [vmem:[%s0 + $0x28] sm:$0xff]
    %v71 = vld [vmem:[%s0 + $0x30] sm:$0xff]
    %v72 = vld [vmem:[%s0 + $0x38] sm:$0xff]
    %v73 = vld [vmem:[%s3] sm:$0xff]
    %75 = vset.pattern.permute.xlu0 0
    %76 = vperm.xlu0 %75, %v65
    %v77 = vpop.permute.xlu0 %76
    %80 = vset.pattern.permute.xlu0 0
    %81 = vperm.xlu0 %80, %v66
    %v82 = vpop.permute.xlu0 %81
    %85 = vset.pattern.permute.xlu0 0
    %86 = vperm.xlu0 %85, %v67
    %v87 = vpop.permute.xlu0 %86
    %90 = vset.pattern.permute.xlu0 0
    %91 = vperm.xlu0 %90, %v68
    %v92 = vpop.permute.xlu0 %91
    %95 = vset.pattern.permute.xlu0 0
    %96 = vperm.xlu0 %95, %v69
    %v97 = vpop.permute.xlu0 %96
    %100 = vset.pattern.permute.xlu0 0
    %101 = vperm.xlu0 %100, %v70
    %v102 = vpop.permute.xlu0 %101
    %105 = vset.pattern.permute.xlu0 0
    %106 = vperm.xlu0 %105, %v71
    %v107 = vpop.permute.xlu0 %106
    %110 = vset.pattern.permute.xlu0 0
    %111 = vperm.xlu0 %110, %v72
    %v112 = vpop.permute.xlu0 %111
    %v115 = vlaneseq
    %v116 = vshrl.u32 %v115, 7
    %v117 = vsub.s32 0, %v116
    %v118 = vrot.slane %v73, %v117
    %v119 = vlaneseq
    %v120 = vshrl.u32 %v119, 7
    %v121 = vsub.s32 1, %v120
    %v122 = vrot.slane %v73, %v121
    %v123 = vlaneseq
    %v124 = vshrl.u32 %v123, 7
    %v125 = vsub.s32 2, %v124
    %v126 = vrot.slane %v73, %v125
    %v127 = vlaneseq
    %v128 = vshrl.u32 %v127, 7
    %v129 = vsub.s32 3, %v128
    %v130 = vrot.slane %v73, %v129
    %v131 = vlaneseq
    %v132 = vshrl.u32 %v131, 7
    %v133 = vsub.s32 4, %v132
    %v134 = vrot.slane %v73, %v133
    %v135 = vlaneseq
    %v136 = vshrl.u32 %v135, 7
    %v137 = vsub.s32 5, %v136
    %v138 = vrot.slane %v73, %v137
    %v139 = vlaneseq
    %v140 = vshrl.u32 %v139, 7
    %v141 = vsub.s32 6, %v140
    %v142 = vrot.slane %v73, %v141
    %v143 = vlaneseq
    %v144 = vshrl.u32 %v143, 7
    %v145 = vsub.s32 7, %v144
    %v146 = vrot.slane %v73, %v145
    %v155 = vmul.f32 %v77, %v118
    %v156 = vmul.f32 %v77, %v122
    %v157 = vmul.f32 %v77, %v126
    %v158 = vmul.f32 %v77, %v130
    %v159 = vmul.f32 %v77, %v134
    %v160 = vmul.f32 %v77, %v138
    %v161 = vmul.f32 %v77, %v142
    %v162 = vmul.f32 %v77, %v146
    %v163 = vmul.f32 %v82, %v118
    %v164 = vmul.f32 %v82, %v122
    %v165 = vmul.f32 %v82, %v126
    %v166 = vmul.f32 %v82, %v130
    %v167 = vmul.f32 %v82, %v134
    %v168 = vmul.f32 %v82, %v138
    %v169 = vmul.f32 %v82, %v142
    %v170 = vmul.f32 %v82, %v146
    %v171 = vmul.f32 %v87, %v118
    %v172 = vmul.f32 %v87, %v122
    %v173 = vmul.f32 %v87, %v126
    %v174 = vmul.f32 %v87, %v130
    %v175 = vmul.f32 %v87, %v134
    %v176 = vmul.f32 %v87, %v138
    %v177 = vmul.f32 %v87, %v142
    %v178 = vmul.f32 %v87, %v146
    %v179 = vmul.f32 %v92, %v118
    %v180 = vmul.f32 %v92, %v122
    %v181 = vmul.f32 %v92, %v126
    %v182 = vmul.f32 %v92, %v130
    %v183 = vmul.f32 %v92, %v134
    %v184 = vmul.f32 %v92, %v138
    %v185 = vmul.f32 %v92, %v142
    %v186 = vmul.f32 %v92, %v146
    %v187 = vmul.f32 %v97, %v118
    %v188 = vmul.f32 %v97, %v122
    %v189 = vmul.f32 %v97, %v126
    %v190 = vmul.f32 %v97, %v130
    %v191 = vmul.f32 %v97, %v134
    %v192 = vmul.f32 %v97, %v138
    %v193 = vmul.f32 %v97, %v142
    %v194 = vmul.f32 %v97, %v146
    %v195 = vmul.f32 %v102, %v118
    %v196 = vmul.f32 %v102, %v122
    %v197 = vmul.f32 %v102, %v126
    %v198 = vmul.f32 %v102, %v130
    %v199 = vmul.f32 %v102, %v134
    %v200 = vmul.f32 %v102, %v138
    %v201 = vmul.f32 %v102, %v142
    %v202 = vmul.f32 %v102, %v146
    %v203 = vmul.f32 %v107, %v118
    %v204 = vmul.f32 %v107, %v122
    %v205 = vmul.f32 %v107, %v126
    %v206 = vmul.f32 %v107, %v130
    %v207 = vmul.f32 %v107, %v134
    %v208 = vmul.f32 %v107, %v138
    %v209 = vmul.f32 %v107, %v142
    %v210 = vmul.f32 %v107, %v146
    %v211 = vmul.f32 %v112, %v118
    %v212 = vmul.f32 %v112, %v122
    %v213 = vmul.f32 %v112, %v126
    %v214 = vmul.f32 %v112, %v130
    %v215 = vmul.f32 %v112, %v134
    %v216 = vmul.f32 %v112, %v138
    %v217 = vmul.f32 %v112, %v142
    %v218 = vmul.f32 %v112, %v146
    %v219 = vld [vmem:[%s5] sm:$0xff]
    %v221 = vlaneseq
    %v222 = vshrl.u32 %v221, 7
    %v223 = vsub.s32 0, %v222
    %v224 = vrot.slane %v219, %v223
    %v225 = vlaneseq
    %v226 = vshrl.u32 %v225, 7
    %v227 = vsub.s32 1, %v226
    %v228 = vrot.slane %v219, %v227
    %v229 = vlaneseq
    %v230 = vshrl.u32 %v229, 7
    %v231 = vsub.s32 2, %v230
    %v232 = vrot.slane %v219, %v231
    %v233 = vlaneseq
    %v234 = vshrl.u32 %v233, 7
    %v235 = vsub.s32 3, %v234
    %v236 = vrot.slane %v219, %v235
    %v237 = vlaneseq
    %v238 = vshrl.u32 %v237, 7
    %v239 = vsub.s32 4, %v238
    %v240 = vrot.slane %v219, %v239
    %v241 = vlaneseq
    %v242 = vshrl.u32 %v241, 7
    %v243 = vsub.s32 5, %v242
    %v244 = vrot.slane %v219, %v243
    %v245 = vlaneseq
    %v246 = vshrl.u32 %v245, 7
    %v247 = vsub.s32 6, %v246
    %v248 = vrot.slane %v219, %v247
    %v249 = vlaneseq
    %v250 = vshrl.u32 %v249, 7
    %v251 = vsub.s32 7, %v250
    %v252 = vrot.slane %v219, %v251
    %v261 = vadd.f32 %v155, %v224
    %v262 = vadd.f32 %v156, %v228
    %v263 = vadd.f32 %v157, %v232
    %v264 = vadd.f32 %v158, %v236
    %v265 = vadd.f32 %v159, %v240
    %v266 = vadd.f32 %v160, %v244
    %v267 = vadd.f32 %v161, %v248
    %v268 = vadd.f32 %v162, %v252
    %v269 = vadd.f32 %v163, %v224
    %v270 = vadd.f32 %v164, %v228
    %v271 = vadd.f32 %v165, %v232
    %v272 = vadd.f32 %v166, %v236
    %v273 = vadd.f32 %v167, %v240
    %v274 = vadd.f32 %v168, %v244
    %v275 = vadd.f32 %v169, %v248
    %v276 = vadd.f32 %v170, %v252
    %v277 = vadd.f32 %v171, %v224
    %v278 = vadd.f32 %v172, %v228
    %v279 = vadd.f32 %v173, %v232
    %v280 = vadd.f32 %v174, %v236
    %v281 = vadd.f32 %v175, %v240
    %v282 = vadd.f32 %v176, %v244
    %v283 = vadd.f32 %v177, %v248
    %v284 = vadd.f32 %v178, %v252
    %v285 = vadd.f32 %v179, %v224
    %v286 = vadd.f32 %v180, %v228
    %v287 = vadd.f32 %v181, %v232
    %v288 = vadd.f32 %v182, %v236
    %v289 = vadd.f32 %v183, %v240
    %v290 = vadd.f32 %v184, %v244
    %v291 = vadd.f32 %v185, %v248
    %v292 = vadd.f32 %v186, %v252
    %v293 = vadd.f32 %v187, %v224
    %v294 = vadd.f32 %v188, %v228
    %v295 = vadd.f32 %v189, %v232
    %v296 = vadd.f32 %v190, %v236
    %v297 = vadd.f32 %v191, %v240
    %v298 = vadd.f32 %v192, %v244
    %v299 = vadd.f32 %v193, %v248
    %v300 = vadd.f32 %v194, %v252
    %v301 = vadd.f32 %v195, %v224
    %v302 = vadd.f32 %v196, %v228
    %v303 = vadd.f32 %v197, %v232
    %v304 = vadd.f32 %v198, %v236
    %v305 = vadd.f32 %v199, %v240
    %v306 = vadd.f32 %v200, %v244
    %v307 = vadd.f32 %v201, %v248
    %v308 = vadd.f32 %v202, %v252
    %v309 = vadd.f32 %v203, %v224
    %v310 = vadd.f32 %v204, %v228
    %v311 = vadd.f32 %v205, %v232
    %v312 = vadd.f32 %v206, %v236
    %v313 = vadd.f32 %v207, %v240
    %v314 = vadd.f32 %v208, %v244
    %v315 = vadd.f32 %v209, %v248
    %v316 = vadd.f32 %v210, %v252
    %v317 = vadd.f32 %v211, %v224
    %v318 = vadd.f32 %v212, %v228
    %v319 = vadd.f32 %v213, %v232
    %v320 = vadd.f32 %v214, %v236
    %v321 = vadd.f32 %v215, %v240
    %v322 = vadd.f32 %v216, %v244
    %v323 = vadd.f32 %v217, %v248
    %v324 = vadd.f32 %v218, %v252
    %325 = vst [vmem:[#allocation2] sm:$0xff] %v261
    %326 = vst [vmem:[#allocation2 + $0x8] sm:$0xff] %v262
    %327 = vst [vmem:[#allocation2 + $0x10] sm:$0xff] %v263
    %328 = vst [vmem:[#allocation2 + $0x18] sm:$0xff] %v264
    %329 = vst [vmem:[#allocation2 + $0x20] sm:$0xff] %v265
    %330 = vst [vmem:[#allocation2 + $0x28] sm:$0xff] %v266
    %331 = vst [vmem:[#allocation2 + $0x30] sm:$0xff] %v267
    %332 = vst [vmem:[#allocation2 + $0x38] sm:$0xff] %v268
    %333 = vst [vmem:[#allocation2 + $0x40] sm:$0xff] %v269
    %334 = vst [vmem:[#allocation2 + $0x48] sm:$0xff] %v270
    %335 = vst [vmem:[#allocation2 + $0x50] sm:$0xff] %v271
    %336 = vst [vmem:[#allocation2 + $0x58] sm:$0xff] %v272
    %337 = vst [vmem:[#allocation2 + $0x60] sm:$0xff] %v273
    %338 = vst [vmem:[#allocation2 + $0x68] sm:$0xff] %v274
    %339 = vst [vmem:[#allocation2 + $0x70] sm:$0xff] %v275
    %340 = vst [vmem:[#allocation2 + $0x78] sm:$0xff] %v276
    %341 = vst [vmem:[#allocation2 + $0x80] sm:$0xff] %v277
    %342 = vst [vmem:[#allocation2 + $0x88] sm:$0xff] %v278
    %343 = vst [vmem:[#allocation2 + $0x90] sm:$0xff] %v279
    %344 = vst [vmem:[#allocation2 + $0x98] sm:$0xff] %v280
    %345 = vst [vmem:[#allocation2 + $0xa0] sm:$0xff] %v281
    %346 = vst [vmem:[#allocation2 + $0xa8] sm:$0xff] %v282
    %347 = vst [vmem:[#allocation2 + $0xb0] sm:$0xff] %v283
    %348 = vst [vmem:[#allocation2 + $0xb8] sm:$0xff] %v284
    %349 = vst [vmem:[#allocation2 + $0xc0] sm:$0xff] %v285
    %350 = vst [vmem:[#allocation2 + $0xc8] sm:$0xff] %v286
    %351 = vst [vmem:[#allocation2 + $0xd0] sm:$0xff] %v287
    %352 = vst [vmem:[#allocation2 + $0xd8] sm:$0xff] %v288
    %353 = vst [vmem:[#allocation2 + $0xe0] sm:$0xff] %v289
    %354 = vst [vmem:[#allocation2 + $0xe8] sm:$0xff] %v290
    %355 = vst [vmem:[#allocation2 + $0xf0] sm:$0xff] %v291
    %356 = vst [vmem:[#allocation2 + $0xf8] sm:$0xff] %v292
    %357 = vst [vmem:[#allocation2 + $0x100] sm:$0xff] %v293
    %358 = vst [vmem:[#allocation2 + $0x108] sm:$0xff] %v294
    %359 = vst [vmem:[#allocation2 + $0x110] sm:$0xff] %v295
    %360 = vst [vmem:[#allocation2 + $0x118] sm:$0xff] %v296
    %361 = vst [vmem:[#allocation2 + $0x120] sm:$0xff] %v297
    %362 = vst [vmem:[#allocation2 + $0x128] sm:$0xff] %v298
    %363 = vst [vmem:[#allocation2 + $0x130] sm:$0xff] %v299
    %364 = vst [vmem:[#allocation2 + $0x138] sm:$0xff] %v300
    %365 = vst [vmem:[#allocation2 + $0x140] sm:$0xff] %v301
    %366 = vst [vmem:[#allocation2 + $0x148] sm:$0xff] %v302
    %367 = vst [vmem:[#allocation2 + $0x150] sm:$0xff] %v303
    %368 = vst [vmem:[#allocation2 + $0x158] sm:$0xff] %v304
    %369 = vst [vmem:[#allocation2 + $0x160] sm:$0xff] %v305
    %370 = vst [vmem:[#allocation2 + $0x168] sm:$0xff] %v306
    %371 = vst [vmem:[#allocation2 + $0x170] sm:$0xff] %v307
    %372 = vst [vmem:[#allocation2 + $0x178] sm:$0xff] %v308
    %373 = vst [vmem:[#allocation2 + $0x180] sm:$0xff] %v309
    %374 = vst [vmem:[#allocation2 + $0x188] sm:$0xff] %v310
    %375 = vst [vmem:[#allocation2 + $0x190] sm:$0xff] %v311
    %376 = vst [vmem:[#allocation2 + $0x198] sm:$0xff] %v312
    %377 = vst [vmem:[#allocation2 + $0x1a0] sm:$0xff] %v313
    %378 = vst [vmem:[#allocation2 + $0x1a8] sm:$0xff] %v314
    %379 = vst [vmem:[#allocation2 + $0x1b0] sm:$0xff] %v315
    %380 = vst [vmem:[#allocation2 + $0x1b8] sm:$0xff] %v316
    %381 = vst [vmem:[#allocation2 + $0x1c0] sm:$0xff] %v317
    %382 = vst [vmem:[#allocation2 + $0x1c8] sm:$0xff] %v318
    %383 = vst [vmem:[#allocation2 + $0x1d0] sm:$0xff] %v319
    %384 = vst [vmem:[#allocation2 + $0x1d8] sm:$0xff] %v320
    %385 = vst [vmem:[#allocation2 + $0x1e0] sm:$0xff] %v321
    %386 = vst [vmem:[#allocation2 + $0x1e8] sm:$0xff] %v322
    %387 = vst [vmem:[#allocation2 + $0x1f0] sm:$0xff] %v323
    %388 = vst [vmem:[#allocation2 + $0x1f8] sm:$0xff] %v324
    %v389 = vld [vmem:[%s1] sm:$0xff]
    %v390 = vld [vmem:[%s1 + $0x8] sm:$0xff]
    %v391 = vld [vmem:[%s2] sm:$0xff]
    %v392 = vld [vmem:[%s2 + $0x8] sm:$0xff]
    %v393 = vld [vmem:[#allocation2] sm:$0xff]
    %v394 = vld [vmem:[#allocation2 + $0x8] sm:$0xff]
    %v395 = vld [vmem:[#allocation2 + $0x10] sm:$0xff]
    %v396 = vld [vmem:[#allocation2 + $0x18] sm:$0xff]
    %v397 = vld [vmem:[#allocation2 + $0x20] sm:$0xff]
    %v398 = vld [vmem:[#allocation2 + $0x28] sm:$0xff]
    %v399 = vld [vmem:[#allocation2 + $0x30] sm:$0xff]
    %v400 = vld [vmem:[#allocation2 + $0x38] sm:$0xff]
    %v401 = vpack.c.bf16 %v389, %v389
    %v402 = vpack.c.bf16 %v390, %v390
    %v403 = vld [vmem:[#allocation4] sm:$0xff]
    %v404 = vld [vmem:[#allocation4 + $0x8] sm:$0xff]
    %v405 = vld [vmem:[#allocation4 + $0x10] sm:$0xff]
    %v406 = vld [vmem:[#allocation4 + $0x18] sm:$0xff]
    %v407 = vld [vmem:[#allocation4 + $0x20] sm:$0xff]
    %v408 = vld [vmem:[#allocation4 + $0x28] sm:$0xff]
    %v409 = vld [vmem:[#allocation4 + $0x30] sm:$0xff]
    %v410 = vld [vmem:[#allocation4 + $0x38] sm:$0xff]
    %v411 = vld [vmem:[#allocation4 + $0x40] sm:$0xff]
    %v412 = vld [vmem:[#allocation4 + $0x48] sm:$0xff]
    %v413 = vld [vmem:[#allocation4 + $0x50] sm:$0xff]
    %v414 = vld [vmem:[#allocation4 + $0x58] sm:$0xff]
    %v415 = vld [vmem:[#allocation4 + $0x60] sm:$0xff]
    %v416 = vld [vmem:[#allocation4 + $0x68] sm:$0xff]
    %v417 = vld [vmem:[#allocation4 + $0x70] sm:$0xff]
    %v418 = vld [vmem:[#allocation4 + $0x78] sm:$0xff]
    %v419 = vld [vmem:[#allocation4 + $0x80] sm:$0xff]
    %v420 = vld [vmem:[#allocation4 + $0x88] sm:$0xff]
    %v421 = vld [vmem:[#allocation4 + $0x90] sm:$0xff]
    %v422 = vld [vmem:[#allocation4 + $0x98] sm:$0xff]
    %v423 = vld [vmem:[#allocation4 + $0xa0] sm:$0xff]
    %v424 = vld [vmem:[#allocation4 + $0xa8] sm:$0xff]
    %v425 = vld [vmem:[#allocation4 + $0xb0] sm:$0xff]
    %v426 = vld [vmem:[#allocation4 + $0xb8] sm:$0xff]
    %v427 = vld [vmem:[#allocation4 + $0xc0] sm:$0xff]
    %v428 = vld [vmem:[#allocation4 + $0xc8] sm:$0xff]
    %v429 = vld [vmem:[#allocation4 + $0xd0] sm:$0xff]
    %v430 = vld [vmem:[#allocation4 + $0xd8] sm:$0xff]
    %v431 = vld [vmem:[#allocation4 + $0xe0] sm:$0xff]
    %v432 = vld [vmem:[#allocation4 + $0xe8] sm:$0xff]
    %v433 = vld [vmem:[#allocation4 + $0xf0] sm:$0xff]
    %v434 = vld [vmem:[#allocation4 + $0xf8] sm:$0xff]
    %v435 = vld [vmem:[#allocation4 + $0x100] sm:$0xff]
    %v436 = vld [vmem:[#allocation4 + $0x108] sm:$0xff]
    %v437 = vld [vmem:[#allocation4 + $0x110] sm:$0xff]
    %v438 = vld [vmem:[#allocation4 + $0x118] sm:$0xff]
    %v439 = vld [vmem:[#allocation4 + $0x120] sm:$0xff]
    %v440 = vld [vmem:[#allocation4 + $0x128] sm:$0xff]
    %v441 = vld [vmem:[#allocation4 + $0x130] sm:$0xff]
    %v442 = vld [vmem:[#allocation4 + $0x138] sm:$0xff]
    %v443 = vld [vmem:[#allocation4 + $0x140] sm:$0xff]
    %v444 = vld [vmem:[#allocation4 + $0x148] sm:$0xff]
    %v445 = vld [vmem:[#allocation4 + $0x150] sm:$0xff]
    %v446 = vld [vmem:[#allocation4 + $0x158] sm:$0xff]
    %v447 = vld [vmem:[#allocation4 + $0x160] sm:$0xff]
    %v448 = vld [vmem:[#allocation4 + $0x168] sm:$0xff]
    %v449 = vld [vmem:[#allocation4 + $0x170] sm:$0xff]
    %v450 = vld [vmem:[#allocation4 + $0x178] sm:$0xff]
    %v451 = vld [vmem:[#allocation4 + $0x180] sm:$0xff]
    %v452 = vld [vmem:[#allocation4 + $0x188] sm:$0xff]
    %v453 = vld [vmem:[#allocation4 + $0x190] sm:$0xff]
    %v454 = vld [vmem:[#allocation4 + $0x198] sm:$0xff]
    %v455 = vld [vmem:[#allocation4 + $0x1a0] sm:$0xff]
    %v456 = vld [vmem:[#allocation4 + $0x1a8] sm:$0xff]
    %v457 = vld [vmem:[#allocation4 + $0x1b0] sm:$0xff]
    %v458 = vld [vmem:[#allocation4 + $0x1b8] sm:$0xff]
    %v459 = vld [vmem:[#allocation4 + $0x1c0] sm:$0xff]
    %v460 = vld [vmem:[#allocation4 + $0x1c8] sm:$0xff]
    %v461 = vld [vmem:[#allocation4 + $0x1d0] sm:$0xff]
    %v462 = vld [vmem:[#allocation4 + $0x1d8] sm:$0xff]
    %v463 = vld [vmem:[#allocation4 + $0x1e0] sm:$0xff]
    %v464 = vld [vmem:[#allocation4 + $0x1e8] sm:$0xff]
    %v465 = vld [vmem:[#allocation4 + $0x1f0] sm:$0xff]
    %v466 = vld [vmem:[#allocation4 + $0x1f8] sm:$0xff]
    %v467 = vld [vmem:[#allocation4 + $0x200] sm:$0xff]
    %v468 = vld [vmem:[#allocation4 + $0x208] sm:$0xff]
    %v469 = vld [vmem:[#allocation4 + $0x210] sm:$0xff]
    %v470 = vld [vmem:[#allocation4 + $0x218] sm:$0xff]
    %v471 = vld [vmem:[#allocation4 + $0x220] sm:$0xff]
    %v472 = vld [vmem:[#allocation4 + $0x228] sm:$0xff]
    %v473 = vld [vmem:[#allocation4 + $0x230] sm:$0xff]
    %v474 = vld [vmem:[#allocation4 + $0x238] sm:$0xff]
    %v475 = vld [vmem:[#allocation4 + $0x240] sm:$0xff]
    %v476 = vld [vmem:[#allocation4 + $0x248] sm:$0xff]
    %v477 = vld [vmem:[#allocation4 + $0x250] sm:$0xff]
    %v478 = vld [vmem:[#allocation4 + $0x258] sm:$0xff]
    %v479 = vld [vmem:[#allocation4 + $0x260] sm:$0xff]
    %v480 = vld [vmem:[#allocation4 + $0x268] sm:$0xff]
    %v481 = vld [vmem:[#allocation4 + $0x270] sm:$0xff]
    %v482 = vld [vmem:[#allocation4 + $0x278] sm:$0xff]
    %v483 = vld [vmem:[#allocation4 + $0x280] sm:$0xff]
    %v484 = vld [vmem:[#allocation4 + $0x288] sm:$0xff]
    %v485 = vld [vmem:[#allocation4 + $0x290] sm:$0xff]
    %v486 = vld [vmem:[#allocation4 + $0x298] sm:$0xff]
    %v487 = vld [vmem:[#allocation4 + $0x2a0] sm:$0xff]
    %v488 = vld [vmem:[#allocation4 + $0x2a8] sm:$0xff]
    %v489 = vld [vmem:[#allocation4 + $0x2b0] sm:$0xff]
    %v490 = vld [vmem:[#allocation4 + $0x2b8] sm:$0xff]
    %v491 = vld [vmem:[#allocation4 + $0x2c0] sm:$0xff]
    %v492 = vld [vmem:[#allocation4 + $0x2c8] sm:$0xff]
    %v493 = vld [vmem:[#allocation4 + $0x2d0] sm:$0xff]
    %v494 = vld [vmem:[#allocation4 + $0x2d8] sm:$0xff]
    %v495 = vld [vmem:[#allocation4 + $0x2e0] sm:$0xff]
    %v496 = vld [vmem:[#allocation4 + $0x2e8] sm:$0xff]
    %v497 = vld [vmem:[#allocation4 + $0x2f0] sm:$0xff]
    %v498 = vld [vmem:[#allocation4 + $0x2f8] sm:$0xff]
    %v499 = vld [vmem:[#allocation4 + $0x300] sm:$0xff]
    %v500 = vld [vmem:[#allocation4 + $0x308] sm:$0xff]
    %v501 = vld [vmem:[#allocation4 + $0x310] sm:$0xff]
    %v502 = vld [vmem:[#allocation4 + $0x318] sm:$0xff]
    %v503 = vld [vmem:[#allocation4 + $0x320] sm:$0xff]
    %v504 = vld [vmem:[#allocation4 + $0x328] sm:$0xff]
    %v505 = vld [vmem:[#allocation4 + $0x330] sm:$0xff]
    %v506 = vld [vmem:[#allocation4 + $0x338] sm:$0xff]
    %v507 = vld [vmem:[#allocation4 + $0x340] sm:$0xff]
    %v508 = vld [vmem:[#allocation4 + $0x348] sm:$0xff]
    %v509 = vld [vmem:[#allocation4 + $0x350] sm:$0xff]
    %v510 = vld [vmem:[#allocation4 + $0x358] sm:$0xff]
    %v511 = vld [vmem:[#allocation4 + $0x360] sm:$0xff]
    %v512 = vld [vmem:[#allocation4 + $0x368] sm:$0xff]
    %v513 = vld [vmem:[#allocation4 + $0x370] sm:$0xff]
    %v514 = vld [vmem:[#allocation4 + $0x378] sm:$0xff]
    %v515 = vld [vmem:[#allocation4 + $0x380] sm:$0xff]
    %v516 = vld [vmem:[#allocation4 + $0x388] sm:$0xff]
    %v517 = vld [vmem:[#allocation4 + $0x390] sm:$0xff]
    %v518 = vld [vmem:[#allocation4 + $0x398] sm:$0xff]
    %v519 = vld [vmem:[#allocation4 + $0x3a0] sm:$0xff]
    %v520 = vld [vmem:[#allocation4 + $0x3a8] sm:$0xff]
    %v521 = vld [vmem:[#allocation4 + $0x3b0] sm:$0xff]
    %v522 = vld [vmem:[#allocation4 + $0x3b8] sm:$0xff]
    %v523 = vld [vmem:[#allocation4 + $0x3c0] sm:$0xff]
    %v524 = vld [vmem:[#allocation4 + $0x3c8] sm:$0xff]
    %v525 = vld [vmem:[#allocation4 + $0x3d0] sm:$0xff]
    %v526 = vld [vmem:[#allocation4 + $0x3d8] sm:$0xff]
    %v527 = vld [vmem:[#allocation4 + $0x3e0] sm:$0xff]
    %v528 = vld [vmem:[#allocation4 + $0x3e8] sm:$0xff]
    %v529 = vld [vmem:[#allocation4 + $0x3f0] sm:$0xff]
    %v530 = vld [vmem:[#allocation4 + $0x3f8] sm:$0xff]
    %v659 = vunpack.c.l.b16 %v403
    %v660 = vunpack.c.h.b16 %v403
    %v661 = vunpack.c.l.b16 %v404
    %v662 = vunpack.c.h.b16 %v404
    %v663 = vunpack.c.l.b16 %v405
    %v664 = vunpack.c.h.b16 %v405
    %v665 = vunpack.c.l.b16 %v406
    %v666 = vunpack.c.h.b16 %v406
    %v667 = vunpack.c.l.b16 %v407
    %v668 = vunpack.c.h.b16 %v407
    %v669 = vunpack.c.l.b16 %v408
    %v670 = vunpack.c.h.b16 %v408
    %v671 = vunpack.c.l.b16 %v409
    %v672 = vunpack.c.h.b16 %v409
    %v673 = vunpack.c.l.b16 %v410
    %v674 = vunpack.c.h.b16 %v410
    %v675 = vunpack.c.l.b16 %v411
    %v676 = vunpack.c.h.b16 %v411
    %v677 = vunpack.c.l.b16 %v412
    %v678 = vunpack.c.h.b16 %v412
    %v679 = vunpack.c.l.b16 %v413
    %v680 = vunpack.c.h.b16 %v413
    %v681 = vunpack.c.l.b16 %v414
    %v682 = vunpack.c.h.b16 %v414
    %v683 = vunpack.c.l.b16 %v415
    %v684 = vunpack.c.h.b16 %v415
    %v685 = vunpack.c.l.b16 %v416
    %v686 = vunpack.c.h.b16 %v416
    %v687 = vunpack.c.l.b16 %v417
    %v688 = vunpack.c.h.b16 %v417
    %v689 = vunpack.c.l.b16 %v418
    %v690 = vunpack.c.h.b16 %v418
    %v691 = vunpack.c.l.b16 %v419
    %v692 = vunpack.c.h.b16 %v419
    %v693 = vunpack.c.l.b16 %v420
    %v694 = vunpack.c.h.b16 %v420
    %v695 = vunpack.c.l.b16 %v421
    %v696 = vunpack.c.h.b16 %v421
    %v697 = vunpack.c.l.b16 %v422
    %v698 = vunpack.c.h.b16 %v422
    %v699 = vunpack.c.l.b16 %v423
    %v700 = vunpack.c.h.b16 %v423
    %v701 = vunpack.c.l.b16 %v424
    %v702 = vunpack.c.h.b16 %v424
    %v703 = vunpack.c.l.b16 %v425
    %v704 = vunpack.c.h.b16 %v425
    %v705 = vunpack.c.l.b16 %v426
    %v706 = vunpack.c.h.b16 %v426
    %v707 = vunpack.c.l.b16 %v427
    %v708 = vunpack.c.h.b16 %v427
    %v709 = vunpack.c.l.b16 %v428
    %v710 = vunpack.c.h.b16 %v428
    %v711 = vunpack.c.l.b16 %v429
    %v712 = vunpack.c.h.b16 %v429
    %v713 = vunpack.c.l.b16 %v430
    %v714 = vunpack.c.h.b16 %v430
    %v715 = vunpack.c.l.b16 %v431
    %v716 = vunpack.c.h.b16 %v431
    %v717 = vunpack.c.l.b16 %v432
    %v718 = vunpack.c.h.b16 %v432
    %v719 = vunpack.c.l.b16 %v433
    %v720 = vunpack.c.h.b16 %v433
    %v721 = vunpack.c.l.b16 %v434
    %v722 = vunpack.c.h.b16 %v434
    %v723 = vunpack.c.l.b16 %v435
    %v724 = vunpack.c.h.b16 %v435
    %v725 = vunpack.c.l.b16 %v436
    %v726 = vunpack.c.h.b16 %v436
    %v727 = vunpack.c.l.b16 %v437
    %v728 = vunpack.c.h.b16 %v437
    %v729 = vunpack.c.l.b16 %v438
    %v730 = vunpack.c.h.b16 %v438
    %v731 = vunpack.c.l.b16 %v439
    %v732 = vunpack.c.h.b16 %v439
    %v733 = vunpack.c.l.b16 %v440
    %v734 = vunpack.c.h.b16 %v440
    %v735 = vunpack.c.l.b16 %v441
    %v736 = vunpack.c.h.b16 %v441
    %v737 = vunpack.c.l.b16 %v442
    %v738 = vunpack.c.h.b16 %v442
    %v739 = vunpack.c.l.b16 %v443
    %v740 = vunpack.c.h.b16 %v443
    %v741 = vunpack.c.l.b16 %v444
    %v742 = vunpack.c.h.b16 %v444
    %v743 = vunpack.c.l.b16 %v445
    %v744 = vunpack.c.h.b16 %v445
    %v745 = vunpack.c.l.b16 %v446
    %v746 = vunpack.c.h.b16 %v446
    %v747 = vunpack.c.l.b16 %v447
    %v748 = vunpack.c.h.b16 %v447
    %v749 = vunpack.c.l.b16 %v448
    %v750 = vunpack.c.h.b16 %v448
    %v751 = vunpack.c.l.b16 %v449
    %v752 = vunpack.c.h.b16 %v449
    %v753 = vunpack.c.l.b16 %v450
    %v754 = vunpack.c.h.b16 %v450
    %v755 = vunpack.c.l.b16 %v451
    %v756 = vunpack.c.h.b16 %v451
    %v757 = vunpack.c.l.b16 %v452
    %v758 = vunpack.c.h.b16 %v452
    %v759 = vunpack.c.l.b16 %v453
    %v760 = vunpack.c.h.b16 %v453
    %v761 = vunpack.c.l.b16 %v454
    %v762 = vunpack.c.h.b16 %v454
    %v763 = vunpack.c.l.b16 %v455
    %v764 = vunpack.c.h.b16 %v455
    %v765 = vunpack.c.l.b16 %v456
    %v766 = vunpack.c.h.b16 %v456
    %v767 = vunpack.c.l.b16 %v457
    %v768 = vunpack.c.h.b16 %v457
    %v769 = vunpack.c.l.b16 %v458
    %v770 = vunpack.c.h.b16 %v458
    %v771 = vunpack.c.l.b16 %v459
    %v772 = vunpack.c.h.b16 %v459
    %v773 = vunpack.c.l.b16 %v460
    %v774 = vunpack.c.h.b16 %v460
    %v775 = vunpack.c.l.b16 %v461
    %v776 = vunpack.c.h.b16 %v461
    %v777 = vunpack.c.l.b16 %v462
    %v778 = vunpack.c.h.b16 %v462
    %v779 = vunpack.c.l.b16 %v463
    %v780 = vunpack.c.h.b16 %v463
    %v781 = vunpack.c.l.b16 %v464
    %v782 = vunpack.c.h.b16 %v464
    %v783 = vunpack.c.l.b16 %v465
    %v784 = vunpack.c.h.b16 %v465
    %v785 = vunpack.c.l.b16 %v466
    %v786 = vunpack.c.h.b16 %v466
    %v787 = vunpack.c.l.b16 %v467
    %v788 = vunpack.c.h.b16 %v467
    %v789 = vunpack.c.l.b16 %v468
    %v790 = vunpack.c.h.b16 %v468
    %v791 = vunpack.c.l.b16 %v469
    %v792 = vunpack.c.h.b16 %v469
    %v793 = vunpack.c.l.b16 %v470
    %v794 = vunpack.c.h.b16 %v470
    %v795 = vunpack.c.l.b16 %v471
    %v796 = vunpack.c.h.b16 %v471
    %v797 = vunpack.c.l.b16 %v472
    %v798 = vunpack.c.h.b16 %v472
    %v799 = vunpack.c.l.b16 %v473
    %v800 = vunpack.c.h.b16 %v473
    %v801 = vunpack.c.l.b16 %v474
    %v802 = vunpack.c.h.b16 %v474
    %v803 = vunpack.c.l.b16 %v475
    %v804 = vunpack.c.h.b16 %v475
    %v805 = vunpack.c.l.b16 %v476
    %v806 = vunpack.c.h.b16 %v476
    %v807 = vunpack.c.l.b16 %v477
    %v808 = vunpack.c.h.b16 %v477
    %v809 = vunpack.c.l.b16 %v478
    %v810 = vunpack.c.h.b16 %v478
    %v811 = vunpack.c.l.b16 %v479
    %v812 = vunpack.c.h.b16 %v479
    %v813 = vunpack.c.l.b16 %v480
    %v814 = vunpack.c.h.b16 %v480
    %v815 = vunpack.c.l.b16 %v481
    %v816 = vunpack.c.h.b16 %v481
    %v817 = vunpack.c.l.b16 %v482
    %v818 = vunpack.c.h.b16 %v482
    %v819 = vunpack.c.l.b16 %v483
    %v820 = vunpack.c.h.b16 %v483
    %v821 = vunpack.c.l.b16 %v484
    %v822 = vunpack.c.h.b16 %v484
    %v823 = vunpack.c.l.b16 %v485
    %v824 = vunpack.c.h.b16 %v485
    %v825 = vunpack.c.l.b16 %v486
    %v826 = vunpack.c.h.b16 %v486
    %v827 = vunpack.c.l.b16 %v487
    %v828 = vunpack.c.h.b16 %v487
    %v829 = vunpack.c.l.b16 %v488
    %v830 = vunpack.c.h.b16 %v488
    %v831 = vunpack.c.l.b16 %v489
    %v832 = vunpack.c.h.b16 %v489
    %v833 = vunpack.c.l.b16 %v490
    %v834 = vunpack.c.h.b16 %v490
    %v835 = vunpack.c.l.b16 %v491
    %v836 = vunpack.c.h.b16 %v491
    %v837 = vunpack.c.l.b16 %v492
    %v838 = vunpack.c.h.b16 %v492
    %v839 = vunpack.c.l.b16 %v493
    %v840 = vunpack.c.h.b16 %v493
    %v841 = vunpack.c.l.b16 %v494
    %v842 = vunpack.c.h.b16 %v494
    %v843 = vunpack.c.l.b16 %v495
    %v844 = vunpack.c.h.b16 %v495
    %v845 = vunpack.c.l.b16 %v496
    %v846 = vunpack.c.h.b16 %v496
    %v847 = vunpack.c.l.b16 %v497
    %v848 = vunpack.c.h.b16 %v497
    %v849 = vunpack.c.l.b16 %v498
    %v850 = vunpack.c.h.b16 %v498
    %v851 = vunpack.c.l.b16 %v499
    %v852 = vunpack.c.h.b16 %v499
    %v853 = vunpack.c.l.b16 %v500
    %v854 = vunpack.c.h.b16 %v500
    %v855 = vunpack.c.l.b16 %v501
    %v856 = vunpack.c.h.b16 %v501
    %v857 = vunpack.c.l.b16 %v502
    %v858 = vunpack.c.h.b16 %v502
    %v859 = vunpack.c.l.b16 %v503
    %v860 = vunpack.c.h.b16 %v503
    %v861 = vunpack.c.l.b16 %v504
    %v862 = vunpack.c.h.b16 %v504
    %v863 = vunpack.c.l.b16 %v505
    %v864 = vunpack.c.h.b16 %v505
    %v865 = vunpack.c.l.b16 %v506
    %v866 = vunpack.c.h.b16 %v506
    %v867 = vunpack.c.l.b16 %v507
    %v868 = vunpack.c.h.b16 %v507
    %v869 = vunpack.c.l.b16 %v508
    %v870 = vunpack.c.h.b16 %v508
    %v871 = vunpack.c.l.b16 %v509
    %v872 = vunpack.c.h.b16 %v509
    %v873 = vunpack.c.l.b16 %v510
    %v874 = vunpack.c.h.b16 %v510
    %v875 = vunpack.c.l.b16 %v511
    %v876 = vunpack.c.h.b16 %v511
    %v877 = vunpack.c.l.b16 %v512
    %v878 = vunpack.c.h.b16 %v512
    %v879 = vunpack.c.l.b16 %v513
    %v880 = vunpack.c.h.b16 %v513
    %v881 = vunpack.c.l.b16 %v514
    %v882 = vunpack.c.h.b16 %v514
    %v883 = vunpack.c.l.b16 %v515
    %v884 = vunpack.c.h.b16 %v515
    %v885 = vunpack.c.l.b16 %v516
    %v886 = vunpack.c.h.b16 %v516
    %v887 = vunpack.c.l.b16 %v517
    %v888 = vunpack.c.h.b16 %v517
    %v889 = vunpack.c.l.b16 %v518
    %v890 = vunpack.c.h.b16 %v518
    %v891 = vunpack.c.l.b16 %v519
    %v892 = vunpack.c.h.b16 %v519
    %v893 = vunpack.c.l.b16 %v520
    %v894 = vunpack.c.h.b16 %v520
    %v895 = vunpack.c.l.b16 %v521
    %v896 = vunpack.c.h.b16 %v521
    %v897 = vunpack.c.l.b16 %v522
    %v898 = vunpack.c.h.b16 %v522
    %v899 = vunpack.c.l.b16 %v523
    %v900 = vunpack.c.h.b16 %v523
    %v901 = vunpack.c.l.b16 %v524
    %v902 = vunpack.c.h.b16 %v524
    %v903 = vunpack.c.l.b16 %v525
    %v904 = vunpack.c.h.b16 %v525
    %v905 = vunpack.c.l.b16 %v526
    %v906 = vunpack.c.h.b16 %v526
    %v907 = vunpack.c.l.b16 %v527
    %v908 = vunpack.c.h.b16 %v527
    %v909 = vunpack.c.l.b16 %v528
    %v910 = vunpack.c.h.b16 %v528
    %v911 = vunpack.c.l.b16 %v529
    %v912 = vunpack.c.h.b16 %v529
    %v913 = vunpack.c.l.b16 %v530
    %v914 = vunpack.c.h.b16 %v530
    %v915 = vpack.c.b16 %v667, %v659
    %v916 = vpack.c.b16 %v668, %v660
    %v917 = vpack.c.b16 %v669, %v661
    %v918 = vpack.c.b16 %v670, %v662
    %v919 = vpack.c.b16 %v671, %v663
    %v920 = vpack.c.b16 %v672, %v664
    %v921 = vpack.c.b16 %v673, %v665
    %v922 = vpack.c.b16 %v674, %v666
    %v923 = vpack.c.b16 %v683, %v675
    %v924 = vpack.c.b16 %v684, %v676
    %v925 = vpack.c.b16 %v685, %v677
    %v926 = vpack.c.b16 %v686, %v678
    %v927 = vpack.c.b16 %v687, %v679
    %v928 = vpack.c.b16 %v688, %v680
    %v929 = vpack.c.b16 %v689, %v681
    %v930 = vpack.c.b16 %v690, %v682
    %v931 = vpack.c.b16 %v699, %v691
    %v932 = vpack.c.b16 %v700, %v692
    %v933 = vpack.c.b16 %v701, %v693
    %v934 = vpack.c.b16 %v702, %v694
    %v935 = vpack.c.b16 %v703, %v695
    %v936 = vpack.c.b16 %v704, %v696
    %v937 = vpack.c.b16 %v705, %v697
    %v938 = vpack.c.b16 %v706, %v698
    %v939 = vpack.c.b16 %v715, %v707
    %v940 = vpack.c.b16 %v716, %v708
    %v941 = vpack.c.b16 %v717, %v709
    %v942 = vpack.c.b16 %v718, %v710
    %v943 = vpack.c.b16 %v719, %v711
    %v944 = vpack.c.b16 %v720, %v712
    %v945 = vpack.c.b16 %v721, %v713
    %v946 = vpack.c.b16 %v722, %v714
    %v947 = vpack.c.b16 %v731, %v723
    %v948 = vpack.c.b16 %v732, %v724
    %v949 = vpack.c.b16 %v733, %v725
    %v950 = vpack.c.b16 %v734, %v726
    %v951 = vpack.c.b16 %v735, %v727
    %v952 = vpack.c.b16 %v736, %v728
    %v953 = vpack.c.b16 %v737, %v729
    %v954 = vpack.c.b16 %v738, %v730
    %v955 = vpack.c.b16 %v747, %v739
    %v956 = vpack.c.b16 %v748, %v740
    %v957 = vpack.c.b16 %v749, %v741
    %v958 = vpack.c.b16 %v750, %v742
    %v959 = vpack.c.b16 %v751, %v743
    %v960 = vpack.c.b16 %v752, %v744
    %v961 = vpack.c.b16 %v753, %v745
    %v962 = vpack.c.b16 %v754, %v746
    %v963 = vpack.c.b16 %v763, %v755
    %v964 = vpack.c.b16 %v764, %v756
    %v965 = vpack.c.b16 %v765, %v757
    %v966 = vpack.c.b16 %v766, %v758
    %v967 = vpack.c.b16 %v767, %v759
    %v968 = vpack.c.b16 %v768, %v760
    %v969 = vpack.c.b16 %v769, %v761
    %v970 = vpack.c.b16 %v770, %v762
    %v971 = vpack.c.b16 %v779, %v771
    %v972 = vpack.c.b16 %v780, %v772
    %v973 = vpack.c.b16 %v781, %v773
    %v974 = vpack.c.b16 %v782, %v774
    %v975 = vpack.c.b16 %v783, %v775
    %v976 = vpack.c.b16 %v784, %v776
    %v977 = vpack.c.b16 %v785, %v777
    %v978 = vpack.c.b16 %v786, %v778
    %v979 = vpack.c.b16 %v795, %v787
    %v980 = vpack.c.b16 %v796, %v788
    %v981 = vpack.c.b16 %v797, %v789
    %v982 = vpack.c.b16 %v798, %v790
    %v983 = vpack.c.b16 %v799, %v791
    %v984 = vpack.c.b16 %v800, %v792
    %v985 = vpack.c.b16 %v801, %v793
    %v986 = vpack.c.b16 %v802, %v794
    %v987 = vpack.c.b16 %v811, %v803
    %v988 = vpack.c.b16 %v812, %v804
    %v989 = vpack.c.b16 %v813, %v805
    %v990 = vpack.c.b16 %v814, %v806
    %v991 = vpack.c.b16 %v815, %v807
    %v992 = vpack.c.b16 %v816, %v808
    %v993 = vpack.c.b16 %v817, %v809
    %v994 = vpack.c.b16 %v818, %v810
    %v995 = vpack.c.b16 %v827, %v819
    %v996 = vpack.c.b16 %v828, %v820
    %v997 = vpack.c.b16 %v829, %v821
    %v998 = vpack.c.b16 %v830, %v822
    %v999 = vpack.c.b16 %v831, %v823
    %v1000 = vpack.c.b16 %v832, %v824
    %v1001 = vpack.c.b16 %v833, %v825
    %v1002 = vpack.c.b16 %v834, %v826
    %v1003 = vpack.c.b16 %v843, %v835
    %v1004 = vpack.c.b16 %v844, %v836
    %v1005 = vpack.c.b16 %v845, %v837
    %v1006 = vpack.c.b16 %v846, %v838
    %v1007 = vpack.c.b16 %v847, %v839
    %v1008 = vpack.c.b16 %v848, %v840
    %v1009 = vpack.c.b16 %v849, %v841
    %v1010 = vpack.c.b16 %v850, %v842
    %v1011 = vpack.c.b16 %v859, %v851
    %v1012 = vpack.c.b16 %v860, %v852
    %v1013 = vpack.c.b16 %v861, %v853
    %v1014 = vpack.c.b16 %v862, %v854
    %v1015 = vpack.c.b16 %v863, %v855
    %v1016 = vpack.c.b16 %v864, %v856
    %v1017 = vpack.c.b16 %v865, %v857
    %v1018 = vpack.c.b16 %v866, %v858
    %v1019 = vpack.c.b16 %v875, %v867
    %v1020 = vpack.c.b16 %v876, %v868
    %v1021 = vpack.c.b16 %v877, %v869
    %v1022 = vpack.c.b16 %v878, %v870
    %v1023 = vpack.c.b16 %v879, %v871
    %v1024 = vpack.c.b16 %v880, %v872
    %v1025 = vpack.c.b16 %v881, %v873
    %v1026 = vpack.c.b16 %v882, %v874
    %v1027 = vpack.c.b16 %v891, %v883
    %v1028 = vpack.c.b16 %v892, %v884
    %v1029 = vpack.c.b16 %v893, %v885
    %v1030 = vpack.c.b16 %v894, %v886
    %v1031 = vpack.c.b16 %v895, %v887
    %v1032 = vpack.c.b16 %v896, %v888
    %v1033 = vpack.c.b16 %v897, %v889
    %v1034 = vpack.c.b16 %v898, %v890
    %v1035 = vpack.c.b16 %v907, %v899
    %v1036 = vpack.c.b16 %v908, %v900
    %v1037 = vpack.c.b16 %v909, %v901
    %v1038 = vpack.c.b16 %v910, %v902
    %v1039 = vpack.c.b16 %v911, %v903
    %v1040 = vpack.c.b16 %v912, %v904
    %v1041 = vpack.c.b16 %v913, %v905
    %v1042 = vpack.c.b16 %v914, %v906
    %1171 = vmatprep.subr.bf16.mxu0 %v916
    %1172 = vmatpush1.bf16.msra.mxu0 %v915
    %1173 = vmatprep.subr.bf16.mxu0 %v924
    %1174 = vmatpush1.bf16.msra.mxu0 %v923
    %1175 = vmatprep.subr.bf16.mxu0 %v932
    %1176 = vmatpush1.bf16.msra.mxu0 %v931
    %1177 = vmatprep.subr.bf16.mxu0 %v940
    %1178 = vmatpush1.bf16.msra.mxu0 %v939
    %1179 = vmatprep.subr.bf16.mxu0 %v948
    %1180 = vmatpush1.bf16.msra.mxu0 %v947
    %1181 = vmatprep.subr.bf16.mxu0 %v956
    %1182 = vmatpush1.bf16.msra.mxu0 %v955
    %1183 = vmatprep.subr.bf16.mxu0 %v964
    %1184 = vmatpush1.bf16.msra.mxu0 %v963
    %1185 = vmatprep.subr.bf16.mxu0 %v972
    %1186 = vmatpush1.bf16.msra.mxu0 %v971
    %1187 = vmatprep.subr.bf16.mxu0 %v980
    %1188 = vmatpush1.bf16.msra.mxu0 %v979
    %1189 = vmatprep.subr.bf16.mxu0 %v988
    %1190 = vmatpush1.bf16.msra.mxu0 %v987
    %1191 = vmatprep.subr.bf16.mxu0 %v996
    %1192 = vmatpush1.bf16.msra.mxu0 %v995
    %1193 = vmatprep.subr.bf16.mxu0 %v1004
    %1194 = vmatpush1.bf16.msra.mxu0 %v1003
    %1195 = vmatprep.subr.bf16.mxu0 %v1012
    %1196 = vmatpush1.bf16.msra.mxu0 %v1011
    %1197 = vmatprep.subr.bf16.mxu0 %v1020
    %1198 = vmatpush1.bf16.msra.mxu0 %v1019
    %1199 = vmatprep.subr.bf16.mxu0 %v1028
    %1200 = vmatpush1.bf16.msra.mxu0 %v1027
    %1201 = vmatprep.subr.bf16.mxu0 %v1036
    %1202 = vmatpush1.bf16.msra.mxu0 %v1035
    %1203 = vmatprep.mubr.bf16.mxu0 %v402
    %1204 = vmatmul.mubr.bf16.gmra.mrb[0].mxu0 %v401
    %v1205 = vpop.f32.mrb[0].mxu0
    %v1206 = vadd.f32 0.0, %v1205
    %v1207 = vpop.f32.mrb[0].mxu0
    %v1208 = vadd.f32 0.0, %v1207
    %v1209 = vpop.f32.mrb[0].mxu0
    %v1210 = vpop.f32.mrb[0].mxu0
    %1211 = vdwg.mxu0
    %1212 = vmatprep.subr.bf16.mxu0 %v918
    %1213 = vmatpush1.bf16.msra.mxu0 %v917
    %1214 = vmatprep.subr.bf16.mxu0 %v926
    %1215 = vmatpush1.bf16.msra.mxu0 %v925
    %1216 = vmatprep.subr.bf16.mxu0 %v934
    %1217 = vmatpush1.bf16.msra.mxu0 %v933
    %1218 = vmatprep.subr.bf16.mxu0 %v942
    %1219 = vmatpush1.bf16.msra.mxu0 %v941
    %1220 = vmatprep.subr.bf16.mxu0 %v950
    %1221 = vmatpush1.bf16.msra.mxu0 %v949
    %1222 = vmatprep.subr.bf16.mxu0 %v958
    %1223 = vmatpush1.bf16.msra.mxu0 %v957
    %1224 = vmatprep.subr.bf16.mxu0 %v966
    %1225 = vmatpush1.bf16.msra.mxu0 %v965
    %1226 = vmatprep.subr.bf16.mxu0 %v974
    %1227 = vmatpush1.bf16.msra.mxu0 %v973
    %1228 = vmatprep.subr.bf16.mxu0 %v982
    %1229 = vmatpush1.bf16.msra.mxu0 %v981
    %1230 = vmatprep.subr.bf16.mxu0 %v990
    %1231 = vmatpush1.bf16.msra.mxu0 %v989
    %1232 = vmatprep.subr.bf16.mxu0 %v998
    %1233 = vmatpush1.bf16.msra.mxu0 %v997
    %1234 = vmatprep.subr.bf16.mxu0 %v1006
    %1235 = vmatpush1.bf16.msra.mxu0 %v1005
    %1236 = vmatprep.subr.bf16.mxu0 %v1014
    %1237 = vmatpush1.bf16.msra.mxu0 %v1013
    %1238 = vmatprep.subr.bf16.mxu0 %v1022
    %1239 = vmatpush1.bf16.msra.mxu0 %v1021
    %1240 = vmatprep.subr.bf16.mxu0 %v1030
    %1241 = vmatpush1.bf16.msra.mxu0 %v1029
    %1242 = vmatprep.subr.bf16.mxu0 %v1038
    %1243 = vmatpush1.bf16.msra.mxu0 %v1037
    %1244 = vmatprep.mubr.bf16.mxu0 %v402
    %1245 = vmatmul.mubr.bf16.gmra.mrb[0].mxu0 %v401
    %v1246 = vpop.f32.mrb[0].mxu0
    %v1247 = vadd.f32 0.0, %v1246
    %v1248 = vpop.f32.mrb[0].mxu0
    %v1249 = vadd.f32 0.0, %v1248
    %v1250 = vpop.f32.mrb[0].mxu0
    %v1251 = vpop.f32.mrb[0].mxu0
    %1252 = vdwg.mxu0
    %1253 = vmatprep.subr.bf16.mxu0 %v920
    %1254 = vmatpush1.bf16.msra.mxu0 %v919
    %1255 = vmatprep.subr.bf16.mxu0 %v928
    %1256 = vmatpush1.bf16.msra.mxu0 %v927
    %1257 = vmatprep.subr.bf16.mxu0 %v936
    %1258 = vmatpush1.bf16.msra.mxu0 %v935
    %1259 = vmatprep.subr.bf16.mxu0 %v944
    %1260 = vmatpush1.bf16.msra.mxu0 %v943
    %1261 = vmatprep.subr.bf16.mxu0 %v952
    %1262 = vmatpush1.bf16.msra.mxu0 %v951
    %1263 = vmatprep.subr.bf16.mxu0 %v960
    %1264 = vmatpush1.bf16.msra.mxu0 %v959
    %1265 = vmatprep.subr.bf16.mxu0 %v968
    %1266 = vmatpush1.bf16.msra.mxu0 %v967
    %1267 = vmatprep.subr.bf16.mxu0 %v976
    %1268 = vmatpush1.bf16.msra.mxu0 %v975
    %1269 = vmatprep.subr.bf16.mxu0 %v984
    %1270 = vmatpush1.bf16.msra.mxu0 %v983
    %1271 = vmatprep.subr.bf16.mxu0 %v992
    %1272 = vmatpush1.bf16.msra.mxu0 %v991
    %1273 = vmatprep.subr.bf16.mxu0 %v1000
    %1274 = vmatpush1.bf16.msra.mxu0 %v999
    %1275 = vmatprep.subr.bf16.mxu0 %v1008
    %1276 = vmatpush1.bf16.msra.mxu0 %v1007
    %1277 = vmatprep.subr.bf16.mxu0 %v1016
    %1278 = vmatpush1.bf16.msra.mxu0 %v1015
    %1279 = vmatprep.subr.bf16.mxu0 %v1024
    %1280 = vmatpush1.bf16.msra.mxu0 %v1023
    %1281 = vmatprep.subr.bf16.mxu0 %v1032
    %1282 = vmatpush1.bf16.msra.mxu0 %v1031
    %1283 = vmatprep.subr.bf16.mxu0 %v1040
    %1284 = vmatpush1.bf16.msra.mxu0 %v1039
    %1285 = vmatprep.mubr.bf16.mxu0 %v402
    %1286 = vmatmul.mubr.bf16.gmra.mrb[0].mxu0 %v401
    %v1287 = vpop.f32.mrb[0].mxu0
    %v1288 = vadd.f32 0.0, %v1287
    %v1289 = vpop.f32.mrb[0].mxu0
    %v1290 = vadd.f32 0.0, %v1289
    %v1291 = vpop.f32.mrb[0].mxu0
    %v1292 = vpop.f32.mrb[0].mxu0
    %1293 = vdwg.mxu0
    %1294 = vmatprep.subr.bf16.mxu0 %v922
    %1295 = vmatpush1.bf16.msra.mxu0 %v921
    %1296 = vmatprep.subr.bf16.mxu0 %v930
    %1297 = vmatpush1.bf16.msra.mxu0 %v929
    %1298 = vmatprep.subr.bf16.mxu0 %v938
    %1299 = vmatpush1.bf16.msra.mxu0 %v937
    %1300 = vmatprep.subr.bf16.mxu0 %v946
    %1301 = vmatpush1.bf16.msra.mxu0 %v945
    %1302 = vmatprep.subr.bf16.mxu0 %v954
    %1303 = vmatpush1.bf16.msra.mxu0 %v953
    %1304 = vmatprep.subr.bf16.mxu0 %v962
    %1305 = vmatpush1.bf16.msra.mxu0 %v961
    %1306 = vmatprep.subr.bf16.mxu0 %v970
    %1307 = vmatpush1.bf16.msra.mxu0 %v969
    %1308 = vmatprep.subr.bf16.mxu0 %v978
    %1309 = vmatpush1.bf16.msra.mxu0 %v977
    %1310 = vmatprep.subr.bf16.mxu0 %v986
    %1311 = vmatpush1.bf16.msra.mxu0 %v985
    %1312 = vmatprep.subr.bf16.mxu0 %v994
    %1313 = vmatpush1.bf16.msra.mxu0 %v993
    %1314 = vmatprep.subr.bf16.mxu0 %v1002
    %1315 = vmatpush1.bf16.msra.mxu0 %v1001
    %1316 = vmatprep.subr.bf16.mxu0 %v1010
    %1317 = vmatpush1.bf16.msra.mxu0 %v1009
    %1318 = vmatprep.subr.bf16.mxu0 %v1018
    %1319 = vmatpush1.bf16.msra.mxu0 %v1017
    %1320 = vmatprep.subr.bf16.mxu0 %v1026
    %1321 = vmatpush1.bf16.msra.mxu0 %v1025
    %1322 = vmatprep.subr.bf16.mxu0 %v1034
    %1323 = vmatpush1.bf16.msra.mxu0 %v1033
    %1324 = vmatprep.subr.bf16.mxu0 %v1042
    %1325 = vmatpush1.bf16.msra.mxu0 %v1041
    %1326 = vmatprep.mubr.bf16.mxu0 %v402
    %1327 = vmatmul.mubr.bf16.gmra.mrb[0].mxu0 %v401
    %v1328 = vpop.f32.mrb[0].mxu0
    %v1329 = vadd.f32 0.0, %v1328
    %v1330 = vpop.f32.mrb[0].mxu0
    %v1331 = vadd.f32 0.0, %v1330
    %v1332 = vpop.f32.mrb[0].mxu0
    %v1333 = vpop.f32.mrb[0].mxu0
    %1334 = vdwg.mxu0
    %v1335 = vadd.f32 %v393, %v1206
    %v1336 = vadd.f32 %v394, %v1208
    %v1337 = vadd.f32 %v395, %v1247
    %v1338 = vadd.f32 %v396, %v1249
    %v1339 = vadd.f32 %v397, %v1288
    %v1340 = vadd.f32 %v398, %v1290
    %v1341 = vadd.f32 %v399, %v1329
    %v1342 = vadd.f32 %v400, %v1331
    %v1343 = vmul.f32 %v1335, 0.5
    %v1344 = vmul.f32 %v1336, 0.5
    %v1345 = vtanh.pop %v1343
    %v1346 = vtanh.pop %v1344
    %v1347 = vmul.f32 %v1345, 0.5
    %v1348 = vmul.f32 %v1346, 0.5
    %v1349 = vadd.f32 %v1347, 0.5
    %v1350 = vadd.f32 %v1348, 0.5
    %v1351 = vmul.f32 %v1337, 0.5
    %v1352 = vmul.f32 %v1338, 0.5
    %v1353 = vtanh.pop %v1351
    %v1354 = vtanh.pop %v1352
    %v1355 = vmul.f32 %v1353, 0.5
    %v1356 = vmul.f32 %v1354, 0.5
    %v1357 = vadd.f32 %v1355, 0.5
    %v1358 = vadd.f32 %v1356, 0.5
    %v1359 = vtanh.pop %v1339
    %v1360 = vtanh.pop %v1340
    %v1361 = vmul.f32 %v1341, 0.5
    %v1362 = vmul.f32 %v1342, 0.5
    %v1363 = vtanh.pop %v1361
    %v1364 = vtanh.pop %v1362
    %v1365 = vmul.f32 %v1363, 0.5
    %v1366 = vmul.f32 %v1364, 0.5
    %v1367 = vadd.f32 %v1365, 0.5
    %v1368 = vadd.f32 %v1366, 0.5
    %v1369 = vmul.f32 %v1357, %v391
    %v1370 = vmul.f32 %v1358, %v392
    %v1371 = vmul.f32 %v1349, %v1359
    %v1372 = vmul.f32 %v1350, %v1360
    %v1373 = vadd.f32 %v1369, %v1371
    %v1374 = vadd.f32 %v1370, %v1372
    %v1375 = vtanh.pop %v1373
    %v1376 = vtanh.pop %v1374
    %v1377 = vmul.f32 %v1367, %v1375
    %v1378 = vmul.f32 %v1368, %v1376
    %s1379 = scalar_lea.vmem [#allocation2], 64
    %v1380 = vld [vmem:[%s1379] sm:$0xff]
    %v1381 = vld [vmem:[%s1379 + $0x8] sm:$0xff]
    %v1382 = vld [vmem:[%s1379 + $0x10] sm:$0xff]
    %v1383 = vld [vmem:[%s1379 + $0x18] sm:$0xff]
    %v1384 = vld [vmem:[%s1379 + $0x20] sm:$0xff]
    %v1385 = vld [vmem:[%s1379 + $0x28] sm:$0xff]
    %v1386 = vld [vmem:[%s1379 + $0x30] sm:$0xff]
    %v1387 = vld [vmem:[%s1379 + $0x38] sm:$0xff]
    %v1388 = vpack.c.bf16 %v1377, %v1377
    %v1389 = vpack.c.bf16 %v1378, %v1378
    %1390 = vmatprep.subr.bf16.mxu0 %v916
    %1391 = vmatpush1.bf16.msra.mxu0 %v915
    %1392 = vmatprep.subr.bf16.mxu0 %v924
    %1393 = vmatpush1.bf16.msra.mxu0 %v923
    %1394 = vmatprep.subr.bf16.mxu0 %v932
    %1395 = vmatpush1.bf16.msra.mxu0 %v931
    %1396 = vmatprep.subr.bf16.mxu0 %v940
    %1397 = vmatpush1.bf16.msra.mxu0 %v939
    %1398 = vmatprep.subr.bf16.mxu0 %v948
    %1399 = vmatpush1.bf16.msra.mxu0 %v947
    %1400 = vmatprep.subr.bf16.mxu0 %v956
    %1401 = vmatpush1.bf16.msra.mxu0 %v955
    %1402 = vmatprep.subr.bf16.mxu0 %v964
    %1403 = vmatpush1.bf16.msra.mxu0 %v963
    %1404 = vmatprep.subr.bf16.mxu0 %v972
    %1405 = vmatpush1.bf16.msra.mxu0 %v971
    %1406 = vmatprep.subr.bf16.mxu0 %v980
    %1407 = vmatpush1.bf16.msra.mxu0 %v979
    %1408 = vmatprep.subr.bf16.mxu0 %v988
    %1409 = vmatpush1.bf16.msra.mxu0 %v987
    %1410 = vmatprep.subr.bf16.mxu0 %v996
    %1411 = vmatpush1.bf16.msra.mxu0 %v995
    %1412 = vmatprep.subr.bf16.mxu0 %v1004
    %1413 = vmatpush1.bf16.msra.mxu0 %v1003
    %1414 = vmatprep.subr.bf16.mxu0 %v1012
    %1415 = vmatpush1.bf16.msra.mxu0 %v1011
    %1416 = vmatprep.subr.bf16.mxu0 %v1020
    %1417 = vmatpush1.bf16.msra.mxu0 %v1019
    %1418 = vmatprep.subr.bf16.mxu0 %v1028
    %1419 = vmatpush1.bf16.msra.mxu0 %v1027
    %1420 = vmatprep.subr.bf16.mxu0 %v1036
    %1421 = vmatpush1.bf16.msra.mxu0 %v1035
    %1422 = vmatprep.mubr.bf16.mxu0 %v1389
    %1423 = vmatmul.mubr.bf16.gmra.mrb[0].mxu0 %v1388
    %v1424 = vpop.f32.mrb[0].mxu0
    %v1425 = vadd.f32 0.0, %v1424
    %v1426 = vpop.f32.mrb[0].mxu0
    %v1427 = vadd.f32 0.0, %v1426
    %v1428 = vpop.f32.mrb[0].mxu0
    %v1429 = vpop.f32.mrb[0].mxu0
    %1430 = vdwg.mxu0
    %1431 = vmatprep.subr.bf16.mxu0 %v918
    %1432 = vmatpush1.bf16.msra.mxu0 %v917
    %1433 = vmatprep.subr.bf16.mxu0 %v926
    %1434 = vmatpush1.bf16.msra.mxu0 %v925
    %1435 = vmatprep.subr.bf16.mxu0 %v934
    %1436 = vmatpush1.bf16.msra.mxu0 %v933
    %1437 = vmatprep.subr.bf16.mxu0 %v942
    %1438 = vmatpush1.bf16.msra.mxu0 %v941
    %1439 = vmatprep.subr.bf16.mxu0 %v950
    %1440 = vmatpush1.bf16.msra.mxu0 %v949
    %1441 = vmatprep.subr.bf16.mxu0 %v958
    %1442 = vmatpush1.bf16.msra.mxu0 %v957
    %1443 = vmatprep.subr.bf16.mxu0 %v966
    %1444 = vmatpush1.bf16.msra.mxu0 %v965
    %1445 = vmatprep.subr.bf16.mxu0 %v974
    %1446 = vmatpush1.bf16.msra.mxu0 %v973
    %1447 = vmatprep.subr.bf16.mxu0 %v982
    %1448 = vmatpush1.bf16.msra.mxu0 %v981
    %1449 = vmatprep.subr.bf16.mxu0 %v990
    %1450 = vmatpush1.bf16.msra.mxu0 %v989
    %1451 = vmatprep.subr.bf16.mxu0 %v998
    %1452 = vmatpush1.bf16.msra.mxu0 %v997
    %1453 = vmatprep.subr.bf16.mxu0 %v1006
    %1454 = vmatpush1.bf16.msra.mxu0 %v1005
    %1455 = vmatprep.subr.bf16.mxu0 %v1014
    %1456 = vmatpush1.bf16.msra.mxu0 %v1013
    %1457 = vmatprep.subr.bf16.mxu0 %v1022
    %1458 = vmatpush1.bf16.msra.mxu0 %v1021
    %1459 = vmatprep.subr.bf16.mxu0 %v1030
    %1460 = vmatpush1.bf16.msra.mxu0 %v1029
    %1461 = vmatprep.subr.bf16.mxu0 %v1038
    %1462 = vmatpush1.bf16.msra.mxu0 %v1037
    %1463 = vmatprep.mubr.bf16.mxu0 %v1389
    %1464 = vmatmul.mubr.bf16.gmra.mrb[0].mxu0 %v1388
    %v1465 = vpop.f32.mrb[0].mxu0
    %v1466 = vadd.f32 0.0, %v1465
    %v1467 = vpop.f32.mrb[0].mxu0
    %v1468 = vadd.f32 0.0, %v1467
    %v1469 = vpop.f32.mrb[0].mxu0
    %v1470 = vpop.f32.mrb[0].mxu0
    %1471 = vdwg.mxu0
    %1472 = vmatprep.subr.bf16.mxu0 %v920
    %1473 = vmatpush1.bf16.msra.mxu0 %v919
    %1474 = vmatprep.subr.bf16.mxu0 %v928
    %1475 = vmatpush1.bf16.msra.mxu0 %v927
    %1476 = vmatprep.subr.bf16.mxu0 %v936
    %1477 = vmatpush1.bf16.msra.mxu0 %v935
    %1478 = vmatprep.subr.bf16.mxu0 %v944
    %1479 = vmatpush1.bf16.msra.mxu0 %v943
    %1480 = vmatprep.subr.bf16.mxu0 %v952
    %1481 = vmatpush1.bf16.msra.mxu0 %v951
    %1482 = vmatprep.subr.bf16.mxu0 %v960
    %1483 = vmatpush1.bf16.msra.mxu0 %v959
    %1484 = vmatprep.subr.bf16.mxu0 %v968
    %1485 = vmatpush1.bf16.msra.mxu0 %v967
    %1486 = vmatprep.subr.bf16.mxu0 %v976
    %1487 = vmatpush1.bf16.msra.mxu0 %v975
    %1488 = vmatprep.subr.bf16.mxu0 %v984
    %1489 = vmatpush1.bf16.msra.mxu0 %v983
    %1490 = vmatprep.subr.bf16.mxu0 %v992
    %1491 = vmatpush1.bf16.msra.mxu0 %v991
    %1492 = vmatprep.subr.bf16.mxu0 %v1000
    %1493 = vmatpush1.bf16.msra.mxu0 %v999
    %1494 = vmatprep.subr.bf16.mxu0 %v1008
    %1495 = vmatpush1.bf16.msra.mxu0 %v1007
    %1496 = vmatprep.subr.bf16.mxu0 %v1016
    %1497 = vmatpush1.bf16.msra.mxu0 %v1015
    %1498 = vmatprep.subr.bf16.mxu0 %v1024
    %1499 = vmatpush1.bf16.msra.mxu0 %v1023
    %1500 = vmatprep.subr.bf16.mxu0 %v1032
    %1501 = vmatpush1.bf16.msra.mxu0 %v1031
    %1502 = vmatprep.subr.bf16.mxu0 %v1040
    %1503 = vmatpush1.bf16.msra.mxu0 %v1039
    %1504 = vmatprep.mubr.bf16.mxu0 %v1389
    %1505 = vmatmul.mubr.bf16.gmra.mrb[0].mxu0 %v1388
    %v1506 = vpop.f32.mrb[0].mxu0
    %v1507 = vadd.f32 0.0, %v1506
    %v1508 = vpop.f32.mrb[0].mxu0
    %v1509 = vadd.f32 0.0, %v1508
    %v1510 = vpop.f32.mrb[0].mxu0
    %v1511 = vpop.f32.mrb[0].mxu0
    %1512 = vdwg.mxu0
    %1513 = vmatprep.subr.bf16.mxu0 %v922
    %1514 = vmatpush1.bf16.msra.mxu0 %v921
    %1515 = vmatprep.subr.bf16.mxu0 %v930
    %1516 = vmatpush1.bf16.msra.mxu0 %v929
    %1517 = vmatprep.subr.bf16.mxu0 %v938
    %1518 = vmatpush1.bf16.msra.mxu0 %v937
    %1519 = vmatprep.subr.bf16.mxu0 %v946
    %1520 = vmatpush1.bf16.msra.mxu0 %v945
    %1521 = vmatprep.subr.bf16.mxu0 %v954
    %1522 = vmatpush1.bf16.msra.mxu0 %v953
    %1523 = vmatprep.subr.bf16.mxu0 %v962
    %1524 = vmatpush1.bf16.msra.mxu0 %v961
    %1525 = vmatprep.subr.bf16.mxu0 %v970
    %1526 = vmatpush1.bf16.msra.mxu0 %v969
    %1527 = vmatprep.subr.bf16.mxu0 %v978
    %1528 = vmatpush1.bf16.msra.mxu0 %v977
    %1529 = vmatprep.subr.bf16.mxu0 %v986
    %1530 = vmatpush1.bf16.msra.mxu0 %v985
    %1531 = vmatprep.subr.bf16.mxu0 %v994
    %1532 = vmatpush1.bf16.msra.mxu0 %v993
    %1533 = vmatprep.subr.bf16.mxu0 %v1002
    %1534 = vmatpush1.bf16.msra.mxu0 %v1001
    %1535 = vmatprep.subr.bf16.mxu0 %v1010
    %1536 = vmatpush1.bf16.msra.mxu0 %v1009
    %1537 = vmatprep.subr.bf16.mxu0 %v1018
    %1538 = vmatpush1.bf16.msra.mxu0 %v1017
    %1539 = vmatprep.subr.bf16.mxu0 %v1026
    %1540 = vmatpush1.bf16.msra.mxu0 %v1025
    %1541 = vmatprep.subr.bf16.mxu0 %v1034
    %1542 = vmatpush1.bf16.msra.mxu0 %v1033
    %1543 = vmatprep.subr.bf16.mxu0 %v1042
    %1544 = vmatpush1.bf16.msra.mxu0 %v1041
    %1545 = vmatprep.mubr.bf16.mxu0 %v1389
    %1546 = vmatmul.mubr.bf16.gmra.mrb[0].mxu0 %v1388
    %v1547 = vpop.f32.mrb[0].mxu0
    %v1548 = vadd.f32 0.0, %v1547
    %v1549 = vpop.f32.mrb[0].mxu0
    %v1550 = vadd.f32 0.0, %v1549
    %v1551 = vpop.f32.mrb[0].mxu0
    %v1552 = vpop.f32.mrb[0].mxu0
    %1553 = vdwg.mxu0
    %v1554 = vadd.f32 %v1380, %v1425
    %v1555 = vadd.f32 %v1381, %v1427
    %v1556 = vadd.f32 %v1382, %v1466
    %v1557 = vadd.f32 %v1383, %v1468
    %v1558 = vadd.f32 %v1384, %v1507
    %v1559 = vadd.f32 %v1385, %v1509
    %v1560 = vadd.f32 %v1386, %v1548
    %v1561 = vadd.f32 %v1387, %v1550
    %v1562 = vmul.f32 %v1554, 0.5
    %v1563 = vmul.f32 %v1555, 0.5
    %v1564 = vtanh.pop %v1562
    %v1565 = vtanh.pop %v1563
    %v1566 = vmul.f32 %v1564, 0.5
    %v1567 = vmul.f32 %v1565, 0.5
    %v1568 = vadd.f32 %v1566, 0.5
    %v1569 = vadd.f32 %v1567, 0.5
    %v1570 = vmul.f32 %v1556, 0.5
    %v1571 = vmul.f32 %v1557, 0.5
    %v1572 = vtanh.pop %v1570
    %v1573 = vtanh.pop %v1571
    %v1574 = vmul.f32 %v1572, 0.5
    %v1575 = vmul.f32 %v1573, 0.5
    %v1576 = vadd.f32 %v1574, 0.5
    %v1577 = vadd.f32 %v1575, 0.5
    %v1578 = vtanh.pop %v1558
    %v1579 = vtanh.pop %v1559
    %v1580 = vmul.f32 %v1560, 0.5
    %v1581 = vmul.f32 %v1561, 0.5
    %v1582 = vtanh.pop %v1580
    %v1583 = vtanh.pop %v1581
    %v1584 = vmul.f32 %v1582, 0.5
    %v1585 = vmul.f32 %v1583, 0.5
    %v1586 = vadd.f32 %v1584, 0.5
    %v1587 = vadd.f32 %v1585, 0.5
    %v1588 = vmul.f32 %v1576, %v1373
    %v1589 = vmul.f32 %v1577, %v1374
    %v1590 = vmul.f32 %v1568, %v1578
    %v1591 = vmul.f32 %v1569, %v1579
    %v1592 = vadd.f32 %v1588, %v1590
    %v1593 = vadd.f32 %v1589, %v1591
    %v1594 = vtanh.pop %v1592
    %v1595 = vtanh.pop %v1593
    %v1596 = vmul.f32 %v1586, %v1594
    %v1597 = vmul.f32 %v1587, %v1595
    %s1598 = scalar_lea.vmem [#allocation2], 128
    %v1599 = vld [vmem:[%s1598] sm:$0xff]
    %v1600 = vld [vmem:[%s1598 + $0x8] sm:$0xff]
    %v1601 = vld [vmem:[%s1598 + $0x10] sm:$0xff]
    %v1602 = vld [vmem:[%s1598 + $0x18] sm:$0xff]
    %v1603 = vld [vmem:[%s1598 + $0x20] sm:$0xff]
    %v1604 = vld [vmem:[%s1598 + $0x28] sm:$0xff]
    %v1605 = vld [vmem:[%s1598 + $0x30] sm:$0xff]
    %v1606 = vld [vmem:[%s1598 + $0x38] sm:$0xff]
    %v1607 = vpack.c.bf16 %v1596, %v1596
    %v1608 = vpack.c.bf16 %v1597, %v1597
    %1609 = vmatprep.subr.bf16.mxu0 %v916
    %1610 = vmatpush1.bf16.msra.mxu0 %v915
    %1611 = vmatprep.subr.bf16.mxu0 %v924
    %1612 = vmatpush1.bf16.msra.mxu0 %v923
    %1613 = vmatprep.subr.bf16.mxu0 %v932
    %1614 = vmatpush1.bf16.msra.mxu0 %v931
    %1615 = vmatprep.subr.bf16.mxu0 %v940
    %1616 = vmatpush1.bf16.msra.mxu0 %v939
    %1617 = vmatprep.subr.bf16.mxu0 %v948
    %1618 = vmatpush1.bf16.msra.mxu0 %v947
    %1619 = vmatprep.subr.bf16.mxu0 %v956
    %1620 = vmatpush1.bf16.msra.mxu0 %v955
    %1621 = vmatprep.subr.bf16.mxu0 %v964
    %1622 = vmatpush1.bf16.msra.mxu0 %v963
    %1623 = vmatprep.subr.bf16.mxu0 %v972
    %1624 = vmatpush1.bf16.msra.mxu0 %v971
    %1625 = vmatprep.subr.bf16.mxu0 %v980
    %1626 = vmatpush1.bf16.msra.mxu0 %v979
    %1627 = vmatprep.subr.bf16.mxu0 %v988
    %1628 = vmatpush1.bf16.msra.mxu0 %v987
    %1629 = vmatprep.subr.bf16.mxu0 %v996
    %1630 = vmatpush1.bf16.msra.mxu0 %v995
    %1631 = vmatprep.subr.bf16.mxu0 %v1004
    %1632 = vmatpush1.bf16.msra.mxu0 %v1003
    %1633 = vmatprep.subr.bf16.mxu0 %v1012
    %1634 = vmatpush1.bf16.msra.mxu0 %v1011
    %1635 = vmatprep.subr.bf16.mxu0 %v1020
    %1636 = vmatpush1.bf16.msra.mxu0 %v1019
    %1637 = vmatprep.subr.bf16.mxu0 %v1028
    %1638 = vmatpush1.bf16.msra.mxu0 %v1027
    %1639 = vmatprep.subr.bf16.mxu0 %v1036
    %1640 = vmatpush1.bf16.msra.mxu0 %v1035
    %1641 = vmatprep.mubr.bf16.mxu0 %v1608
    %1642 = vmatmul.mubr.bf16.gmra.mrb[0].mxu0 %v1607
    %v1643 = vpop.f32.mrb[0].mxu0
    %v1644 = vadd.f32 0.0, %v1643
    %v1645 = vpop.f32.mrb[0].mxu0
    %v1646 = vadd.f32 0.0, %v1645
    %v1647 = vpop.f32.mrb[0].mxu0
    %v1648 = vpop.f32.mrb[0].mxu0
    %1649 = vdwg.mxu0
    %1650 = vmatprep.subr.bf16.mxu0 %v918
    %1651 = vmatpush1.bf16.msra.mxu0 %v917
    %1652 = vmatprep.subr.bf16.mxu0 %v926
    %1653 = vmatpush1.bf16.msra.mxu0 %v925
    %1654 = vmatprep.subr.bf16.mxu0 %v934
    %1655 = vmatpush1.bf16.msra.mxu0 %v933
    %1656 = vmatprep.subr.bf16.mxu0 %v942
    %1657 = vmatpush1.bf16.msra.mxu0 %v941
    %1658 = vmatprep.subr.bf16.mxu0 %v950
    %1659 = vmatpush1.bf16.msra.mxu0 %v949
    %1660 = vmatprep.subr.bf16.mxu0 %v958
    %1661 = vmatpush1.bf16.msra.mxu0 %v957
    %1662 = vmatprep.subr.bf16.mxu0 %v966
    %1663 = vmatpush1.bf16.msra.mxu0 %v965
    %1664 = vmatprep.subr.bf16.mxu0 %v974
    %1665 = vmatpush1.bf16.msra.mxu0 %v973
    %1666 = vmatprep.subr.bf16.mxu0 %v982
    %1667 = vmatpush1.bf16.msra.mxu0 %v981
    %1668 = vmatprep.subr.bf16.mxu0 %v990
    %1669 = vmatpush1.bf16.msra.mxu0 %v989
    %1670 = vmatprep.subr.bf16.mxu0 %v998
    %1671 = vmatpush1.bf16.msra.mxu0 %v997
    %1672 = vmatprep.subr.bf16.mxu0 %v1006
    %1673 = vmatpush1.bf16.msra.mxu0 %v1005
    %1674 = vmatprep.subr.bf16.mxu0 %v1014
    %1675 = vmatpush1.bf16.msra.mxu0 %v1013
    %1676 = vmatprep.subr.bf16.mxu0 %v1022
    %1677 = vmatpush1.bf16.msra.mxu0 %v1021
    %1678 = vmatprep.subr.bf16.mxu0 %v1030
    %1679 = vmatpush1.bf16.msra.mxu0 %v1029
    %1680 = vmatprep.subr.bf16.mxu0 %v1038
    %1681 = vmatpush1.bf16.msra.mxu0 %v1037
    %1682 = vmatprep.mubr.bf16.mxu0 %v1608
    %1683 = vmatmul.mubr.bf16.gmra.mrb[0].mxu0 %v1607
    %v1684 = vpop.f32.mrb[0].mxu0
    %v1685 = vadd.f32 0.0, %v1684
    %v1686 = vpop.f32.mrb[0].mxu0
    %v1687 = vadd.f32 0.0, %v1686
    %v1688 = vpop.f32.mrb[0].mxu0
    %v1689 = vpop.f32.mrb[0].mxu0
    %1690 = vdwg.mxu0
    %1691 = vmatprep.subr.bf16.mxu0 %v920
    %1692 = vmatpush1.bf16.msra.mxu0 %v919
    %1693 = vmatprep.subr.bf16.mxu0 %v928
    %1694 = vmatpush1.bf16.msra.mxu0 %v927
    %1695 = vmatprep.subr.bf16.mxu0 %v936
    %1696 = vmatpush1.bf16.msra.mxu0 %v935
    %1697 = vmatprep.subr.bf16.mxu0 %v944
    %1698 = vmatpush1.bf16.msra.mxu0 %v943
    %1699 = vmatprep.subr.bf16.mxu0 %v952
    %1700 = vmatpush1.bf16.msra.mxu0 %v951
    %1701 = vmatprep.subr.bf16.mxu0 %v960
    %1702 = vmatpush1.bf16.msra.mxu0 %v959
    %1703 = vmatprep.subr.bf16.mxu0 %v968
    %1704 = vmatpush1.bf16.msra.mxu0 %v967
    %1705 = vmatprep.subr.bf16.mxu0 %v976
    %1706 = vmatpush1.bf16.msra.mxu0 %v975
    %1707 = vmatprep.subr.bf16.mxu0 %v984
    %1708 = vmatpush1.bf16.msra.mxu0 %v983
    %1709 = vmatprep.subr.bf16.mxu0 %v992
    %1710 = vmatpush1.bf16.msra.mxu0 %v991
    %1711 = vmatprep.subr.bf16.mxu0 %v1000
    %1712 = vmatpush1.bf16.msra.mxu0 %v999
    %1713 = vmatprep.subr.bf16.mxu0 %v1008
    %1714 = vmatpush1.bf16.msra.mxu0 %v1007
    %1715 = vmatprep.subr.bf16.mxu0 %v1016
    %1716 = vmatpush1.bf16.msra.mxu0 %v1015
    %1717 = vmatprep.subr.bf16.mxu0 %v1024
    %1718 = vmatpush1.bf16.msra.mxu0 %v1023
    %1719 = vmatprep.subr.bf16.mxu0 %v1032
    %1720 = vmatpush1.bf16.msra.mxu0 %v1031
    %1721 = vmatprep.subr.bf16.mxu0 %v1040
    %1722 = vmatpush1.bf16.msra.mxu0 %v1039
    %1723 = vmatprep.mubr.bf16.mxu0 %v1608
    %1724 = vmatmul.mubr.bf16.gmra.mrb[0].mxu0 %v1607
    %v1725 = vpop.f32.mrb[0].mxu0
    %v1726 = vadd.f32 0.0, %v1725
    %v1727 = vpop.f32.mrb[0].mxu0
    %v1728 = vadd.f32 0.0, %v1727
    %v1729 = vpop.f32.mrb[0].mxu0
    %v1730 = vpop.f32.mrb[0].mxu0
    %1731 = vdwg.mxu0
    %1732 = vmatprep.subr.bf16.mxu0 %v922
    %1733 = vmatpush1.bf16.msra.mxu0 %v921
    %1734 = vmatprep.subr.bf16.mxu0 %v930
    %1735 = vmatpush1.bf16.msra.mxu0 %v929
    %1736 = vmatprep.subr.bf16.mxu0 %v938
    %1737 = vmatpush1.bf16.msra.mxu0 %v937
    %1738 = vmatprep.subr.bf16.mxu0 %v946
    %1739 = vmatpush1.bf16.msra.mxu0 %v945
    %1740 = vmatprep.subr.bf16.mxu0 %v954
    %1741 = vmatpush1.bf16.msra.mxu0 %v953
    %1742 = vmatprep.subr.bf16.mxu0 %v962
    %1743 = vmatpush1.bf16.msra.mxu0 %v961
    %1744 = vmatprep.subr.bf16.mxu0 %v970
    %1745 = vmatpush1.bf16.msra.mxu0 %v969
    %1746 = vmatprep.subr.bf16.mxu0 %v978
    %1747 = vmatpush1.bf16.msra.mxu0 %v977
    %1748 = vmatprep.subr.bf16.mxu0 %v986
    %1749 = vmatpush1.bf16.msra.mxu0 %v985
    %1750 = vmatprep.subr.bf16.mxu0 %v994
    %1751 = vmatpush1.bf16.msra.mxu0 %v993
    %1752 = vmatprep.subr.bf16.mxu0 %v1002
    %1753 = vmatpush1.bf16.msra.mxu0 %v1001
    %1754 = vmatprep.subr.bf16.mxu0 %v1010
    %1755 = vmatpush1.bf16.msra.mxu0 %v1009
    %1756 = vmatprep.subr.bf16.mxu0 %v1018
    %1757 = vmatpush1.bf16.msra.mxu0 %v1017
    %1758 = vmatprep.subr.bf16.mxu0 %v1026
    %1759 = vmatpush1.bf16.msra.mxu0 %v1025
    %1760 = vmatprep.subr.bf16.mxu0 %v1034
    %1761 = vmatpush1.bf16.msra.mxu0 %v1033
    %1762 = vmatprep.subr.bf16.mxu0 %v1042
    %1763 = vmatpush1.bf16.msra.mxu0 %v1041
    %1764 = vmatprep.mubr.bf16.mxu0 %v1608
    %1765 = vmatmul.mubr.bf16.gmra.mrb[0].mxu0 %v1607
    %v1766 = vpop.f32.mrb[0].mxu0
    %v1767 = vadd.f32 0.0, %v1766
    %v1768 = vpop.f32.mrb[0].mxu0
    %v1769 = vadd.f32 0.0, %v1768
    %v1770 = vpop.f32.mrb[0].mxu0
    %v1771 = vpop.f32.mrb[0].mxu0
    %1772 = vdwg.mxu0
    %v1773 = vadd.f32 %v1599, %v1644
    %v1774 = vadd.f32 %v1600, %v1646
    %v1775 = vadd.f32 %v1601, %v1685
    %v1776 = vadd.f32 %v1602, %v1687
    %v1777 = vadd.f32 %v1603, %v1726
    %v1778 = vadd.f32 %v1604, %v1728
    %v1779 = vadd.f32 %v1605, %v1767
    %v1780 = vadd.f32 %v1606, %v1769
    %v1781 = vmul.f32 %v1773, 0.5
    %v1782 = vmul.f32 %v1774, 0.5
    %v1783 = vtanh.pop %v1781
    %v1784 = vtanh.pop %v1782
    %v1785 = vmul.f32 %v1783, 0.5
    %v1786 = vmul.f32 %v1784, 0.5
    %v1787 = vadd.f32 %v1785, 0.5
    %v1788 = vadd.f32 %v1786, 0.5
    %v1789 = vmul.f32 %v1775, 0.5
    %v1790 = vmul.f32 %v1776, 0.5
    %v1791 = vtanh.pop %v1789
    %v1792 = vtanh.pop %v1790
    %v1793 = vmul.f32 %v1791, 0.5
    %v1794 = vmul.f32 %v1792, 0.5
    %v1795 = vadd.f32 %v1793, 0.5
    %v1796 = vadd.f32 %v1794, 0.5
    %v1797 = vtanh.pop %v1777
    %v1798 = vtanh.pop %v1778
    %v1799 = vmul.f32 %v1779, 0.5
    %v1800 = vmul.f32 %v1780, 0.5
    %v1801 = vtanh.pop %v1799
    %v1802 = vtanh.pop %v1800
    %v1803 = vmul.f32 %v1801, 0.5
    %v1804 = vmul.f32 %v1802, 0.5
    %v1805 = vadd.f32 %v1803, 0.5
    %v1806 = vadd.f32 %v1804, 0.5
    %v1807 = vmul.f32 %v1795, %v1592
    %v1808 = vmul.f32 %v1796, %v1593
    %v1809 = vmul.f32 %v1787, %v1797
    %v1810 = vmul.f32 %v1788, %v1798
    %v1811 = vadd.f32 %v1807, %v1809
    %v1812 = vadd.f32 %v1808, %v1810
    %v1813 = vtanh.pop %v1811
    %v1814 = vtanh.pop %v1812
    %v1815 = vmul.f32 %v1805, %v1813
    %v1816 = vmul.f32 %v1806, %v1814
    %s1817 = scalar_lea.vmem [#allocation2], 192
    %v1818 = vld [vmem:[%s1817] sm:$0xff]
    %v1819 = vld [vmem:[%s1817 + $0x8] sm:$0xff]
    %v1820 = vld [vmem:[%s1817 + $0x10] sm:$0xff]
    %v1821 = vld [vmem:[%s1817 + $0x18] sm:$0xff]
    %v1822 = vld [vmem:[%s1817 + $0x20] sm:$0xff]
    %v1823 = vld [vmem:[%s1817 + $0x28] sm:$0xff]
    %v1824 = vld [vmem:[%s1817 + $0x30] sm:$0xff]
    %v1825 = vld [vmem:[%s1817 + $0x38] sm:$0xff]
    %v1826 = vpack.c.bf16 %v1815, %v1815
    %v1827 = vpack.c.bf16 %v1816, %v1816
    %1828 = vmatprep.subr.bf16.mxu0 %v916
    %1829 = vmatpush1.bf16.msra.mxu0 %v915
    %1830 = vmatprep.subr.bf16.mxu0 %v924
    %1831 = vmatpush1.bf16.msra.mxu0 %v923
    %1832 = vmatprep.subr.bf16.mxu0 %v932
    %1833 = vmatpush1.bf16.msra.mxu0 %v931
    %1834 = vmatprep.subr.bf16.mxu0 %v940
    %1835 = vmatpush1.bf16.msra.mxu0 %v939
    %1836 = vmatprep.subr.bf16.mxu0 %v948
    %1837 = vmatpush1.bf16.msra.mxu0 %v947
    %1838 = vmatprep.subr.bf16.mxu0 %v956
    %1839 = vmatpush1.bf16.msra.mxu0 %v955
    %1840 = vmatprep.subr.bf16.mxu0 %v964
    %1841 = vmatpush1.bf16.msra.mxu0 %v963
    %1842 = vmatprep.subr.bf16.mxu0 %v972
    %1843 = vmatpush1.bf16.msra.mxu0 %v971
    %1844 = vmatprep.subr.bf16.mxu0 %v980
    %1845 = vmatpush1.bf16.msra.mxu0 %v979
    %1846 = vmatprep.subr.bf16.mxu0 %v988
    %1847 = vmatpush1.bf16.msra.mxu0 %v987
    %1848 = vmatprep.subr.bf16.mxu0 %v996
    %1849 = vmatpush1.bf16.msra.mxu0 %v995
    %1850 = vmatprep.subr.bf16.mxu0 %v1004
    %1851 = vmatpush1.bf16.msra.mxu0 %v1003
    %1852 = vmatprep.subr.bf16.mxu0 %v1012
    %1853 = vmatpush1.bf16.msra.mxu0 %v1011
    %1854 = vmatprep.subr.bf16.mxu0 %v1020
    %1855 = vmatpush1.bf16.msra.mxu0 %v1019
    %1856 = vmatprep.subr.bf16.mxu0 %v1028
    %1857 = vmatpush1.bf16.msra.mxu0 %v1027
    %1858 = vmatprep.subr.bf16.mxu0 %v1036
    %1859 = vmatpush1.bf16.msra.mxu0 %v1035
    %1860 = vmatprep.mubr.bf16.mxu0 %v1827
    %1861 = vmatmul.mubr.bf16.gmra.mrb[0].mxu0 %v1826
    %v1862 = vpop.f32.mrb[0].mxu0
    %v1863 = vadd.f32 0.0, %v1862
    %v1864 = vpop.f32.mrb[0].mxu0
    %v1865 = vadd.f32 0.0, %v1864
    %v1866 = vpop.f32.mrb[0].mxu0
    %v1867 = vpop.f32.mrb[0].mxu0
    %1868 = vdwg.mxu0
    %1869 = vmatprep.subr.bf16.mxu0 %v918
    %1870 = vmatpush1.bf16.msra.mxu0 %v917
    %1871 = vmatprep.subr.bf16.mxu0 %v926
    %1872 = vmatpush1.bf16.msra.mxu0 %v925
    %1873 = vmatprep.subr.bf16.mxu0 %v934
    %1874 = vmatpush1.bf16.msra.mxu0 %v933
    %1875 = vmatprep.subr.bf16.mxu0 %v942
    %1876 = vmatpush1.bf16.msra.mxu0 %v941
    %1877 = vmatprep.subr.bf16.mxu0 %v950
    %1878 = vmatpush1.bf16.msra.mxu0 %v949
    %1879 = vmatprep.subr.bf16.mxu0 %v958
    %1880 = vmatpush1.bf16.msra.mxu0 %v957
    %1881 = vmatprep.subr.bf16.mxu0 %v966
    %1882 = vmatpush1.bf16.msra.mxu0 %v965
    %1883 = vmatprep.subr.bf16.mxu0 %v974
    %1884 = vmatpush1.bf16.msra.mxu0 %v973
    %1885 = vmatprep.subr.bf16.mxu0 %v982
    %1886 = vmatpush1.bf16.msra.mxu0 %v981
    %1887 = vmatprep.subr.bf16.mxu0 %v990
    %1888 = vmatpush1.bf16.msra.mxu0 %v989
    %1889 = vmatprep.subr.bf16.mxu0 %v998
    %1890 = vmatpush1.bf16.msra.mxu0 %v997
    %1891 = vmatprep.subr.bf16.mxu0 %v1006
    %1892 = vmatpush1.bf16.msra.mxu0 %v1005
    %1893 = vmatprep.subr.bf16.mxu0 %v1014
    %1894 = vmatpush1.bf16.msra.mxu0 %v1013
    %1895 = vmatprep.subr.bf16.mxu0 %v1022
    %1896 = vmatpush1.bf16.msra.mxu0 %v1021
    %1897 = vmatprep.subr.bf16.mxu0 %v1030
    %1898 = vmatpush1.bf16.msra.mxu0 %v1029
    %1899 = vmatprep.subr.bf16.mxu0 %v1038
    %1900 = vmatpush1.bf16.msra.mxu0 %v1037
    %1901 = vmatprep.mubr.bf16.mxu0 %v1827
    %1902 = vmatmul.mubr.bf16.gmra.mrb[0].mxu0 %v1826
    %v1903 = vpop.f32.mrb[0].mxu0
    %v1904 = vadd.f32 0.0, %v1903
    %v1905 = vpop.f32.mrb[0].mxu0
    %v1906 = vadd.f32 0.0, %v1905
    %v1907 = vpop.f32.mrb[0].mxu0
    %v1908 = vpop.f32.mrb[0].mxu0
    %1909 = vdwg.mxu0
    %1910 = vmatprep.subr.bf16.mxu0 %v920
    %1911 = vmatpush1.bf16.msra.mxu0 %v919
    %1912 = vmatprep.subr.bf16.mxu0 %v928
    %1913 = vmatpush1.bf16.msra.mxu0 %v927
    %1914 = vmatprep.subr.bf16.mxu0 %v936
    %1915 = vmatpush1.bf16.msra.mxu0 %v935
    %1916 = vmatprep.subr.bf16.mxu0 %v944
    %1917 = vmatpush1.bf16.msra.mxu0 %v943
    %1918 = vmatprep.subr.bf16.mxu0 %v952
    %1919 = vmatpush1.bf16.msra.mxu0 %v951
    %1920 = vmatprep.subr.bf16.mxu0 %v960
    %1921 = vmatpush1.bf16.msra.mxu0 %v959
    %1922 = vmatprep.subr.bf16.mxu0 %v968
    %1923 = vmatpush1.bf16.msra.mxu0 %v967
    %1924 = vmatprep.subr.bf16.mxu0 %v976
    %1925 = vmatpush1.bf16.msra.mxu0 %v975
    %1926 = vmatprep.subr.bf16.mxu0 %v984
    %1927 = vmatpush1.bf16.msra.mxu0 %v983
    %1928 = vmatprep.subr.bf16.mxu0 %v992
    %1929 = vmatpush1.bf16.msra.mxu0 %v991
    %1930 = vmatprep.subr.bf16.mxu0 %v1000
    %1931 = vmatpush1.bf16.msra.mxu0 %v999
    %1932 = vmatprep.subr.bf16.mxu0 %v1008
    %1933 = vmatpush1.bf16.msra.mxu0 %v1007
    %1934 = vmatprep.subr.bf16.mxu0 %v1016
    %1935 = vmatpush1.bf16.msra.mxu0 %v1015
    %1936 = vmatprep.subr.bf16.mxu0 %v1024
    %1937 = vmatpush1.bf16.msra.mxu0 %v1023
    %1938 = vmatprep.subr.bf16.mxu0 %v1032
    %1939 = vmatpush1.bf16.msra.mxu0 %v1031
    %1940 = vmatprep.subr.bf16.mxu0 %v1040
    %1941 = vmatpush1.bf16.msra.mxu0 %v1039
    %1942 = vmatprep.mubr.bf16.mxu0 %v1827
    %1943 = vmatmul.mubr.bf16.gmra.mrb[0].mxu0 %v1826
    %v1944 = vpop.f32.mrb[0].mxu0
    %v1945 = vadd.f32 0.0, %v1944
    %v1946 = vpop.f32.mrb[0].mxu0
    %v1947 = vadd.f32 0.0, %v1946
    %v1948 = vpop.f32.mrb[0].mxu0
    %v1949 = vpop.f32.mrb[0].mxu0
    %1950 = vdwg.mxu0
    %1951 = vmatprep.subr.bf16.mxu0 %v922
    %1952 = vmatpush1.bf16.msra.mxu0 %v921
    %1953 = vmatprep.subr.bf16.mxu0 %v930
    %1954 = vmatpush1.bf16.msra.mxu0 %v929
    %1955 = vmatprep.subr.bf16.mxu0 %v938
    %1956 = vmatpush1.bf16.msra.mxu0 %v937
    %1957 = vmatprep.subr.bf16.mxu0 %v946
    %1958 = vmatpush1.bf16.msra.mxu0 %v945
    %1959 = vmatprep.subr.bf16.mxu0 %v954
    %1960 = vmatpush1.bf16.msra.mxu0 %v953
    %1961 = vmatprep.subr.bf16.mxu0 %v962
    %1962 = vmatpush1.bf16.msra.mxu0 %v961
    %1963 = vmatprep.subr.bf16.mxu0 %v970
    %1964 = vmatpush1.bf16.msra.mxu0 %v969
    %1965 = vmatprep.subr.bf16.mxu0 %v978
    %1966 = vmatpush1.bf16.msra.mxu0 %v977
    %1967 = vmatprep.subr.bf16.mxu0 %v986
    %1968 = vmatpush1.bf16.msra.mxu0 %v985
    %1969 = vmatprep.subr.bf16.mxu0 %v994
    %1970 = vmatpush1.bf16.msra.mxu0 %v993
    %1971 = vmatprep.subr.bf16.mxu0 %v1002
    %1972 = vmatpush1.bf16.msra.mxu0 %v1001
    %1973 = vmatprep.subr.bf16.mxu0 %v1010
    %1974 = vmatpush1.bf16.msra.mxu0 %v1009
    %1975 = vmatprep.subr.bf16.mxu0 %v1018
    %1976 = vmatpush1.bf16.msra.mxu0 %v1017
    %1977 = vmatprep.subr.bf16.mxu0 %v1026
    %1978 = vmatpush1.bf16.msra.mxu0 %v1025
    %1979 = vmatprep.subr.bf16.mxu0 %v1034
    %1980 = vmatpush1.bf16.msra.mxu0 %v1033
    %1981 = vmatprep.subr.bf16.mxu0 %v1042
    %1982 = vmatpush1.bf16.msra.mxu0 %v1041
    %1983 = vmatprep.mubr.bf16.mxu0 %v1827
    %1984 = vmatmul.mubr.bf16.gmra.mrb[0].mxu0 %v1826
    %v1985 = vpop.f32.mrb[0].mxu0
    %v1986 = vadd.f32 0.0, %v1985
    %v1987 = vpop.f32.mrb[0].mxu0
    %v1988 = vadd.f32 0.0, %v1987
    %v1989 = vpop.f32.mrb[0].mxu0
    %v1990 = vpop.f32.mrb[0].mxu0
    %1991 = vdwg.mxu0
    %v1992 = vadd.f32 %v1818, %v1863
    %v1993 = vadd.f32 %v1819, %v1865
    %v1994 = vadd.f32 %v1820, %v1904
    %v1995 = vadd.f32 %v1821, %v1906
    %v1996 = vadd.f32 %v1822, %v1945
    %v1997 = vadd.f32 %v1823, %v1947
    %v1998 = vadd.f32 %v1824, %v1986
    %v1999 = vadd.f32 %v1825, %v1988
    %v2000 = vmul.f32 %v1992, 0.5
    %v2001 = vmul.f32 %v1993, 0.5
    %v2002 = vtanh.pop %v2000
    %v2003 = vtanh.pop %v2001
    %v2004 = vmul.f32 %v2002, 0.5
    %v2005 = vmul.f32 %v2003, 0.5
    %v2006 = vadd.f32 %v2004, 0.5
    %v2007 = vadd.f32 %v2005, 0.5
    %v2008 = vmul.f32 %v1994, 0.5
    %v2009 = vmul.f32 %v1995, 0.5
    %v2010 = vtanh.pop %v2008
    %v2011 = vtanh.pop %v2009
    %v2012 = vmul.f32 %v2010, 0.5
    %v2013 = vmul.f32 %v2011, 0.5
    %v2014 = vadd.f32 %v2012, 0.5
    %v2015 = vadd.f32 %v2013, 0.5
    %v2016 = vtanh.pop %v1996
    %v2017 = vtanh.pop %v1997
    %v2018 = vmul.f32 %v1998, 0.5
    %v2019 = vmul.f32 %v1999, 0.5
    %v2020 = vtanh.pop %v2018
    %v2021 = vtanh.pop %v2019
    %v2022 = vmul.f32 %v2020, 0.5
    %v2023 = vmul.f32 %v2021, 0.5
    %v2024 = vadd.f32 %v2022, 0.5
    %v2025 = vadd.f32 %v2023, 0.5
    %v2026 = vmul.f32 %v2014, %v1811
    %v2027 = vmul.f32 %v2015, %v1812
    %v2028 = vmul.f32 %v2006, %v2016
    %v2029 = vmul.f32 %v2007, %v2017
    %v2030 = vadd.f32 %v2026, %v2028
    %v2031 = vadd.f32 %v2027, %v2029
    %v2032 = vtanh.pop %v2030
    %v2033 = vtanh.pop %v2031
    %v2034 = vmul.f32 %v2024, %v2032
    %v2035 = vmul.f32 %v2025, %v2033
    %s2036 = scalar_lea.vmem [#allocation2], 256
    %v2037 = vld [vmem:[%s2036] sm:$0xff]
    %v2038 = vld [vmem:[%s2036 + $0x8] sm:$0xff]
    %v2039 = vld [vmem:[%s2036 + $0x10] sm:$0xff]
    %v2040 = vld [vmem:[%s2036 + $0x18] sm:$0xff]
    %v2041 = vld [vmem:[%s2036 + $0x20] sm:$0xff]
    %v2042 = vld [vmem:[%s2036 + $0x28] sm:$0xff]
    %v2043 = vld [vmem:[%s2036 + $0x30] sm:$0xff]
    %v2044 = vld [vmem:[%s2036 + $0x38] sm:$0xff]
    %v2045 = vpack.c.bf16 %v2034, %v2034
    %v2046 = vpack.c.bf16 %v2035, %v2035
    %2047 = vmatprep.subr.bf16.mxu0 %v916
    %2048 = vmatpush1.bf16.msra.mxu0 %v915
    %2049 = vmatprep.subr.bf16.mxu0 %v924
    %2050 = vmatpush1.bf16.msra.mxu0 %v923
    %2051 = vmatprep.subr.bf16.mxu0 %v932
    %2052 = vmatpush1.bf16.msra.mxu0 %v931
    %2053 = vmatprep.subr.bf16.mxu0 %v940
    %2054 = vmatpush1.bf16.msra.mxu0 %v939
    %2055 = vmatprep.subr.bf16.mxu0 %v948
    %2056 = vmatpush1.bf16.msra.mxu0 %v947
    %2057 = vmatprep.subr.bf16.mxu0 %v956
    %2058 = vmatpush1.bf16.msra.mxu0 %v955
    %2059 = vmatprep.subr.bf16.mxu0 %v964
    %2060 = vmatpush1.bf16.msra.mxu0 %v963
    %2061 = vmatprep.subr.bf16.mxu0 %v972
    %2062 = vmatpush1.bf16.msra.mxu0 %v971
    %2063 = vmatprep.subr.bf16.mxu0 %v980
    %2064 = vmatpush1.bf16.msra.mxu0 %v979
    %2065 = vmatprep.subr.bf16.mxu0 %v988
    %2066 = vmatpush1.bf16.msra.mxu0 %v987
    %2067 = vmatprep.subr.bf16.mxu0 %v996
    %2068 = vmatpush1.bf16.msra.mxu0 %v995
    %2069 = vmatprep.subr.bf16.mxu0 %v1004
    %2070 = vmatpush1.bf16.msra.mxu0 %v1003
    %2071 = vmatprep.subr.bf16.mxu0 %v1012
    %2072 = vmatpush1.bf16.msra.mxu0 %v1011
    %2073 = vmatprep.subr.bf16.mxu0 %v1020
    %2074 = vmatpush1.bf16.msra.mxu0 %v1019
    %2075 = vmatprep.subr.bf16.mxu0 %v1028
    %2076 = vmatpush1.bf16.msra.mxu0 %v1027
    %2077 = vmatprep.subr.bf16.mxu0 %v1036
    %2078 = vmatpush1.bf16.msra.mxu0 %v1035
    %2079 = vmatprep.mubr.bf16.mxu0 %v2046
    %2080 = vmatmul.mubr.bf16.gmra.mrb[0].mxu0 %v2045
    %v2081 = vpop.f32.mrb[0].mxu0
    %v2082 = vadd.f32 0.0, %v2081
    %v2083 = vpop.f32.mrb[0].mxu0
    %v2084 = vadd.f32 0.0, %v2083
    %v2085 = vpop.f32.mrb[0].mxu0
    %v2086 = vpop.f32.mrb[0].mxu0
    %2087 = vdwg.mxu0
    %2088 = vmatprep.subr.bf16.mxu0 %v918
    %2089 = vmatpush1.bf16.msra.mxu0 %v917
    %2090 = vmatprep.subr.bf16.mxu0 %v926
    %2091 = vmatpush1.bf16.msra.mxu0 %v925
    %2092 = vmatprep.subr.bf16.mxu0 %v934
    %2093 = vmatpush1.bf16.msra.mxu0 %v933
    %2094 = vmatprep.subr.bf16.mxu0 %v942
    %2095 = vmatpush1.bf16.msra.mxu0 %v941
    %2096 = vmatprep.subr.bf16.mxu0 %v950
    %2097 = vmatpush1.bf16.msra.mxu0 %v949
    %2098 = vmatprep.subr.bf16.mxu0 %v958
    %2099 = vmatpush1.bf16.msra.mxu0 %v957
    %2100 = vmatprep.subr.bf16.mxu0 %v966
    %2101 = vmatpush1.bf16.msra.mxu0 %v965
    %2102 = vmatprep.subr.bf16.mxu0 %v974
    %2103 = vmatpush1.bf16.msra.mxu0 %v973
    %2104 = vmatprep.subr.bf16.mxu0 %v982
    %2105 = vmatpush1.bf16.msra.mxu0 %v981
    %2106 = vmatprep.subr.bf16.mxu0 %v990
    %2107 = vmatpush1.bf16.msra.mxu0 %v989
    %2108 = vmatprep.subr.bf16.mxu0 %v998
    %2109 = vmatpush1.bf16.msra.mxu0 %v997
    %2110 = vmatprep.subr.bf16.mxu0 %v1006
    %2111 = vmatpush1.bf16.msra.mxu0 %v1005
    %2112 = vmatprep.subr.bf16.mxu0 %v1014
    %2113 = vmatpush1.bf16.msra.mxu0 %v1013
    %2114 = vmatprep.subr.bf16.mxu0 %v1022
    %2115 = vmatpush1.bf16.msra.mxu0 %v1021
    %2116 = vmatprep.subr.bf16.mxu0 %v1030
    %2117 = vmatpush1.bf16.msra.mxu0 %v1029
    %2118 = vmatprep.subr.bf16.mxu0 %v1038
    %2119 = vmatpush1.bf16.msra.mxu0 %v1037
    %2120 = vmatprep.mubr.bf16.mxu0 %v2046
    %2121 = vmatmul.mubr.bf16.gmra.mrb[0].mxu0 %v2045
    %v2122 = vpop.f32.mrb[0].mxu0
    %v2123 = vadd.f32 0.0, %v2122
    %v2124 = vpop.f32.mrb[0].mxu0
    %v2125 = vadd.f32 0.0, %v2124
    %v2126 = vpop.f32.mrb[0].mxu0
    %v2127 = vpop.f32.mrb[0].mxu0
    %2128 = vdwg.mxu0
    %2129 = vmatprep.subr.bf16.mxu0 %v920
    %2130 = vmatpush1.bf16.msra.mxu0 %v919
    %2131 = vmatprep.subr.bf16.mxu0 %v928
    %2132 = vmatpush1.bf16.msra.mxu0 %v927
    %2133 = vmatprep.subr.bf16.mxu0 %v936
    %2134 = vmatpush1.bf16.msra.mxu0 %v935
    %2135 = vmatprep.subr.bf16.mxu0 %v944
    %2136 = vmatpush1.bf16.msra.mxu0 %v943
    %2137 = vmatprep.subr.bf16.mxu0 %v952
    %2138 = vmatpush1.bf16.msra.mxu0 %v951
    %2139 = vmatprep.subr.bf16.mxu0 %v960
    %2140 = vmatpush1.bf16.msra.mxu0 %v959
    %2141 = vmatprep.subr.bf16.mxu0 %v968
    %2142 = vmatpush1.bf16.msra.mxu0 %v967
    %2143 = vmatprep.subr.bf16.mxu0 %v976
    %2144 = vmatpush1.bf16.msra.mxu0 %v975
    %2145 = vmatprep.subr.bf16.mxu0 %v984
    %2146 = vmatpush1.bf16.msra.mxu0 %v983
    %2147 = vmatprep.subr.bf16.mxu0 %v992
    %2148 = vmatpush1.bf16.msra.mxu0 %v991
    %2149 = vmatprep.subr.bf16.mxu0 %v1000
    %2150 = vmatpush1.bf16.msra.mxu0 %v999
    %2151 = vmatprep.subr.bf16.mxu0 %v1008
    %2152 = vmatpush1.bf16.msra.mxu0 %v1007
    %2153 = vmatprep.subr.bf16.mxu0 %v1016
    %2154 = vmatpush1.bf16.msra.mxu0 %v1015
    %2155 = vmatprep.subr.bf16.mxu0 %v1024
    %2156 = vmatpush1.bf16.msra.mxu0 %v1023
    %2157 = vmatprep.subr.bf16.mxu0 %v1032
    %2158 = vmatpush1.bf16.msra.mxu0 %v1031
    %2159 = vmatprep.subr.bf16.mxu0 %v1040
    %2160 = vmatpush1.bf16.msra.mxu0 %v1039
    %2161 = vmatprep.mubr.bf16.mxu0 %v2046
    %2162 = vmatmul.mubr.bf16.gmra.mrb[0].mxu0 %v2045
    %v2163 = vpop.f32.mrb[0].mxu0
    %v2164 = vadd.f32 0.0, %v2163
    %v2165 = vpop.f32.mrb[0].mxu0
    %v2166 = vadd.f32 0.0, %v2165
    %v2167 = vpop.f32.mrb[0].mxu0
    %v2168 = vpop.f32.mrb[0].mxu0
    %2169 = vdwg.mxu0
    %2170 = vmatprep.subr.bf16.mxu0 %v922
    %2171 = vmatpush1.bf16.msra.mxu0 %v921
    %2172 = vmatprep.subr.bf16.mxu0 %v930
    %2173 = vmatpush1.bf16.msra.mxu0 %v929
    %2174 = vmatprep.subr.bf16.mxu0 %v938
    %2175 = vmatpush1.bf16.msra.mxu0 %v937
    %2176 = vmatprep.subr.bf16.mxu0 %v946
    %2177 = vmatpush1.bf16.msra.mxu0 %v945
    %2178 = vmatprep.subr.bf16.mxu0 %v954
    %2179 = vmatpush1.bf16.msra.mxu0 %v953
    %2180 = vmatprep.subr.bf16.mxu0 %v962
    %2181 = vmatpush1.bf16.msra.mxu0 %v961
    %2182 = vmatprep.subr.bf16.mxu0 %v970
    %2183 = vmatpush1.bf16.msra.mxu0 %v969
    %2184 = vmatprep.subr.bf16.mxu0 %v978
    %2185 = vmatpush1.bf16.msra.mxu0 %v977
    %2186 = vmatprep.subr.bf16.mxu0 %v986
    %2187 = vmatpush1.bf16.msra.mxu0 %v985
    %2188 = vmatprep.subr.bf16.mxu0 %v994
    %2189 = vmatpush1.bf16.msra.mxu0 %v993
    %2190 = vmatprep.subr.bf16.mxu0 %v1002
    %2191 = vmatpush1.bf16.msra.mxu0 %v1001
    %2192 = vmatprep.subr.bf16.mxu0 %v1010
    %2193 = vmatpush1.bf16.msra.mxu0 %v1009
    %2194 = vmatprep.subr.bf16.mxu0 %v1018
    %2195 = vmatpush1.bf16.msra.mxu0 %v1017
    %2196 = vmatprep.subr.bf16.mxu0 %v1026
    %2197 = vmatpush1.bf16.msra.mxu0 %v1025
    %2198 = vmatprep.subr.bf16.mxu0 %v1034
    %2199 = vmatpush1.bf16.msra.mxu0 %v1033
    %2200 = vmatprep.subr.bf16.mxu0 %v1042
    %2201 = vmatpush1.bf16.msra.mxu0 %v1041
    %2202 = vmatprep.mubr.bf16.mxu0 %v2046
    %2203 = vmatmul.mubr.bf16.gmra.mrb[0].mxu0 %v2045
    %v2204 = vpop.f32.mrb[0].mxu0
    %v2205 = vadd.f32 0.0, %v2204
    %v2206 = vpop.f32.mrb[0].mxu0
    %v2207 = vadd.f32 0.0, %v2206
    %v2208 = vpop.f32.mrb[0].mxu0
    %v2209 = vpop.f32.mrb[0].mxu0
    %2210 = vdwg.mxu0
    %v2211 = vadd.f32 %v2037, %v2082
    %v2212 = vadd.f32 %v2038, %v2084
    %v2213 = vadd.f32 %v2039, %v2123
    %v2214 = vadd.f32 %v2040, %v2125
    %v2215 = vadd.f32 %v2041, %v2164
    %v2216 = vadd.f32 %v2042, %v2166
    %v2217 = vadd.f32 %v2043, %v2205
    %v2218 = vadd.f32 %v2044, %v2207
    %v2219 = vmul.f32 %v2211, 0.5
    %v2220 = vmul.f32 %v2212, 0.5
    %v2221 = vtanh.pop %v2219
    %v2222 = vtanh.pop %v2220
    %v2223 = vmul.f32 %v2221, 0.5
    %v2224 = vmul.f32 %v2222, 0.5
    %v2225 = vadd.f32 %v2223, 0.5
    %v2226 = vadd.f32 %v2224, 0.5
    %v2227 = vmul.f32 %v2213, 0.5
    %v2228 = vmul.f32 %v2214, 0.5
    %v2229 = vtanh.pop %v2227
    %v2230 = vtanh.pop %v2228
    %v2231 = vmul.f32 %v2229, 0.5
    %v2232 = vmul.f32 %v2230, 0.5
    %v2233 = vadd.f32 %v2231, 0.5
    %v2234 = vadd.f32 %v2232, 0.5
    %v2235 = vtanh.pop %v2215
    %v2236 = vtanh.pop %v2216
    %v2237 = vmul.f32 %v2217, 0.5
    %v2238 = vmul.f32 %v2218, 0.5
    %v2239 = vtanh.pop %v2237
    %v2240 = vtanh.pop %v2238
    %v2241 = vmul.f32 %v2239, 0.5
    %v2242 = vmul.f32 %v2240, 0.5
    %v2243 = vadd.f32 %v2241, 0.5
    %v2244 = vadd.f32 %v2242, 0.5
    %v2245 = vmul.f32 %v2233, %v2030
    %v2246 = vmul.f32 %v2234, %v2031
    %v2247 = vmul.f32 %v2225, %v2235
    %v2248 = vmul.f32 %v2226, %v2236
    %v2249 = vadd.f32 %v2245, %v2247
    %v2250 = vadd.f32 %v2246, %v2248
    %v2251 = vtanh.pop %v2249
    %v2252 = vtanh.pop %v2250
    %v2253 = vmul.f32 %v2243, %v2251
    %v2254 = vmul.f32 %v2244, %v2252
    %s2255 = scalar_lea.vmem [#allocation2], 320
    %v2256 = vld [vmem:[%s2255] sm:$0xff]
    %v2257 = vld [vmem:[%s2255 + $0x8] sm:$0xff]
    %v2258 = vld [vmem:[%s2255 + $0x10] sm:$0xff]
    %v2259 = vld [vmem:[%s2255 + $0x18] sm:$0xff]
    %v2260 = vld [vmem:[%s2255 + $0x20] sm:$0xff]
    %v2261 = vld [vmem:[%s2255 + $0x28] sm:$0xff]
    %v2262 = vld [vmem:[%s2255 + $0x30] sm:$0xff]
    %v2263 = vld [vmem:[%s2255 + $0x38] sm:$0xff]
    %v2264 = vpack.c.bf16 %v2253, %v2253
    %v2265 = vpack.c.bf16 %v2254, %v2254
    %2266 = vmatprep.subr.bf16.mxu0 %v916
    %2267 = vmatpush1.bf16.msra.mxu0 %v915
    %2268 = vmatprep.subr.bf16.mxu0 %v924
    %2269 = vmatpush1.bf16.msra.mxu0 %v923
    %2270 = vmatprep.subr.bf16.mxu0 %v932
    %2271 = vmatpush1.bf16.msra.mxu0 %v931
    %2272 = vmatprep.subr.bf16.mxu0 %v940
    %2273 = vmatpush1.bf16.msra.mxu0 %v939
    %2274 = vmatprep.subr.bf16.mxu0 %v948
    %2275 = vmatpush1.bf16.msra.mxu0 %v947
    %2276 = vmatprep.subr.bf16.mxu0 %v956
    %2277 = vmatpush1.bf16.msra.mxu0 %v955
    %2278 = vmatprep.subr.bf16.mxu0 %v964
    %2279 = vmatpush1.bf16.msra.mxu0 %v963
    %2280 = vmatprep.subr.bf16.mxu0 %v972
    %2281 = vmatpush1.bf16.msra.mxu0 %v971
    %2282 = vmatprep.subr.bf16.mxu0 %v980
    %2283 = vmatpush1.bf16.msra.mxu0 %v979
    %2284 = vmatprep.subr.bf16.mxu0 %v988
    %2285 = vmatpush1.bf16.msra.mxu0 %v987
    %2286 = vmatprep.subr.bf16.mxu0 %v996
    %2287 = vmatpush1.bf16.msra.mxu0 %v995
    %2288 = vmatprep.subr.bf16.mxu0 %v1004
    %2289 = vmatpush1.bf16.msra.mxu0 %v1003
    %2290 = vmatprep.subr.bf16.mxu0 %v1012
    %2291 = vmatpush1.bf16.msra.mxu0 %v1011
    %2292 = vmatprep.subr.bf16.mxu0 %v1020
    %2293 = vmatpush1.bf16.msra.mxu0 %v1019
    %2294 = vmatprep.subr.bf16.mxu0 %v1028
    %2295 = vmatpush1.bf16.msra.mxu0 %v1027
    %2296 = vmatprep.subr.bf16.mxu0 %v1036
    %2297 = vmatpush1.bf16.msra.mxu0 %v1035
    %2298 = vmatprep.mubr.bf16.mxu0 %v2265
    %2299 = vmatmul.mubr.bf16.gmra.mrb[0].mxu0 %v2264
    %v2300 = vpop.f32.mrb[0].mxu0
    %v2301 = vadd.f32 0.0, %v2300
    %v2302 = vpop.f32.mrb[0].mxu0
    %v2303 = vadd.f32 0.0, %v2302
    %v2304 = vpop.f32.mrb[0].mxu0
    %v2305 = vpop.f32.mrb[0].mxu0
    %2306 = vdwg.mxu0
    %2307 = vmatprep.subr.bf16.mxu0 %v918
    %2308 = vmatpush1.bf16.msra.mxu0 %v917
    %2309 = vmatprep.subr.bf16.mxu0 %v926
    %2310 = vmatpush1.bf16.msra.mxu0 %v925
    %2311 = vmatprep.subr.bf16.mxu0 %v934
    %2312 = vmatpush1.bf16.msra.mxu0 %v933
    %2313 = vmatprep.subr.bf16.mxu0 %v942
    %2314 = vmatpush1.bf16.msra.mxu0 %v941
    %2315 = vmatprep.subr.bf16.mxu0 %v950
    %2316 = vmatpush1.bf16.msra.mxu0 %v949
    %2317 = vmatprep.subr.bf16.mxu0 %v958
    %2318 = vmatpush1.bf16.msra.mxu0 %v957
    %2319 = vmatprep.subr.bf16.mxu0 %v966
    %2320 = vmatpush1.bf16.msra.mxu0 %v965
    %2321 = vmatprep.subr.bf16.mxu0 %v974
    %2322 = vmatpush1.bf16.msra.mxu0 %v973
    %2323 = vmatprep.subr.bf16.mxu0 %v982
    %2324 = vmatpush1.bf16.msra.mxu0 %v981
    %2325 = vmatprep.subr.bf16.mxu0 %v990
    %2326 = vmatpush1.bf16.msra.mxu0 %v989
    %2327 = vmatprep.subr.bf16.mxu0 %v998
    %2328 = vmatpush1.bf16.msra.mxu0 %v997
    %2329 = vmatprep.subr.bf16.mxu0 %v1006
    %2330 = vmatpush1.bf16.msra.mxu0 %v1005
    %2331 = vmatprep.subr.bf16.mxu0 %v1014
    %2332 = vmatpush1.bf16.msra.mxu0 %v1013
    %2333 = vmatprep.subr.bf16.mxu0 %v1022
    %2334 = vmatpush1.bf16.msra.mxu0 %v1021
    %2335 = vmatprep.subr.bf16.mxu0 %v1030
    %2336 = vmatpush1.bf16.msra.mxu0 %v1029
    %2337 = vmatprep.subr.bf16.mxu0 %v1038
    %2338 = vmatpush1.bf16.msra.mxu0 %v1037
    %2339 = vmatprep.mubr.bf16.mxu0 %v2265
    %2340 = vmatmul.mubr.bf16.gmra.mrb[0].mxu0 %v2264
    %v2341 = vpop.f32.mrb[0].mxu0
    %v2342 = vadd.f32 0.0, %v2341
    %v2343 = vpop.f32.mrb[0].mxu0
    %v2344 = vadd.f32 0.0, %v2343
    %v2345 = vpop.f32.mrb[0].mxu0
    %v2346 = vpop.f32.mrb[0].mxu0
    %2347 = vdwg.mxu0
    %2348 = vmatprep.subr.bf16.mxu0 %v920
    %2349 = vmatpush1.bf16.msra.mxu0 %v919
    %2350 = vmatprep.subr.bf16.mxu0 %v928
    %2351 = vmatpush1.bf16.msra.mxu0 %v927
    %2352 = vmatprep.subr.bf16.mxu0 %v936
    %2353 = vmatpush1.bf16.msra.mxu0 %v935
    %2354 = vmatprep.subr.bf16.mxu0 %v944
    %2355 = vmatpush1.bf16.msra.mxu0 %v943
    %2356 = vmatprep.subr.bf16.mxu0 %v952
    %2357 = vmatpush1.bf16.msra.mxu0 %v951
    %2358 = vmatprep.subr.bf16.mxu0 %v960
    %2359 = vmatpush1.bf16.msra.mxu0 %v959
    %2360 = vmatprep.subr.bf16.mxu0 %v968
    %2361 = vmatpush1.bf16.msra.mxu0 %v967
    %2362 = vmatprep.subr.bf16.mxu0 %v976
    %2363 = vmatpush1.bf16.msra.mxu0 %v975
    %2364 = vmatprep.subr.bf16.mxu0 %v984
    %2365 = vmatpush1.bf16.msra.mxu0 %v983
    %2366 = vmatprep.subr.bf16.mxu0 %v992
    %2367 = vmatpush1.bf16.msra.mxu0 %v991
    %2368 = vmatprep.subr.bf16.mxu0 %v1000
    %2369 = vmatpush1.bf16.msra.mxu0 %v999
    %2370 = vmatprep.subr.bf16.mxu0 %v1008
    %2371 = vmatpush1.bf16.msra.mxu0 %v1007
    %2372 = vmatprep.subr.bf16.mxu0 %v1016
    %2373 = vmatpush1.bf16.msra.mxu0 %v1015
    %2374 = vmatprep.subr.bf16.mxu0 %v1024
    %2375 = vmatpush1.bf16.msra.mxu0 %v1023
    %2376 = vmatprep.subr.bf16.mxu0 %v1032
    %2377 = vmatpush1.bf16.msra.mxu0 %v1031
    %2378 = vmatprep.subr.bf16.mxu0 %v1040
    %2379 = vmatpush1.bf16.msra.mxu0 %v1039
    %2380 = vmatprep.mubr.bf16.mxu0 %v2265
    %2381 = vmatmul.mubr.bf16.gmra.mrb[0].mxu0 %v2264
    %v2382 = vpop.f32.mrb[0].mxu0
    %v2383 = vadd.f32 0.0, %v2382
    %v2384 = vpop.f32.mrb[0].mxu0
    %v2385 = vadd.f32 0.0, %v2384
    %v2386 = vpop.f32.mrb[0].mxu0
    %v2387 = vpop.f32.mrb[0].mxu0
    %2388 = vdwg.mxu0
    %2389 = vmatprep.subr.bf16.mxu0 %v922
    %2390 = vmatpush1.bf16.msra.mxu0 %v921
    %2391 = vmatprep.subr.bf16.mxu0 %v930
    %2392 = vmatpush1.bf16.msra.mxu0 %v929
    %2393 = vmatprep.subr.bf16.mxu0 %v938
    %2394 = vmatpush1.bf16.msra.mxu0 %v937
    %2395 = vmatprep.subr.bf16.mxu0 %v946
    %2396 = vmatpush1.bf16.msra.mxu0 %v945
    %2397 = vmatprep.subr.bf16.mxu0 %v954
    %2398 = vmatpush1.bf16.msra.mxu0 %v953
    %2399 = vmatprep.subr.bf16.mxu0 %v962
    %2400 = vmatpush1.bf16.msra.mxu0 %v961
    %2401 = vmatprep.subr.bf16.mxu0 %v970
    %2402 = vmatpush1.bf16.msra.mxu0 %v969
    %2403 = vmatprep.subr.bf16.mxu0 %v978
    %2404 = vmatpush1.bf16.msra.mxu0 %v977
    %2405 = vmatprep.subr.bf16.mxu0 %v986
    %2406 = vmatpush1.bf16.msra.mxu0 %v985
    %2407 = vmatprep.subr.bf16.mxu0 %v994
    %2408 = vmatpush1.bf16.msra.mxu0 %v993
    %2409 = vmatprep.subr.bf16.mxu0 %v1002
    %2410 = vmatpush1.bf16.msra.mxu0 %v1001
    %2411 = vmatprep.subr.bf16.mxu0 %v1010
    %2412 = vmatpush1.bf16.msra.mxu0 %v1009
    %2413 = vmatprep.subr.bf16.mxu0 %v1018
    %2414 = vmatpush1.bf16.msra.mxu0 %v1017
    %2415 = vmatprep.subr.bf16.mxu0 %v1026
    %2416 = vmatpush1.bf16.msra.mxu0 %v1025
    %2417 = vmatprep.subr.bf16.mxu0 %v1034
    %2418 = vmatpush1.bf16.msra.mxu0 %v1033
    %2419 = vmatprep.subr.bf16.mxu0 %v1042
    %2420 = vmatpush1.bf16.msra.mxu0 %v1041
    %2421 = vmatprep.mubr.bf16.mxu0 %v2265
    %2422 = vmatmul.mubr.bf16.gmra.mrb[0].mxu0 %v2264
    %v2423 = vpop.f32.mrb[0].mxu0
    %v2424 = vadd.f32 0.0, %v2423
    %v2425 = vpop.f32.mrb[0].mxu0
    %v2426 = vadd.f32 0.0, %v2425
    %v2427 = vpop.f32.mrb[0].mxu0
    %v2428 = vpop.f32.mrb[0].mxu0
    %2429 = vdwg.mxu0
    %v2430 = vadd.f32 %v2256, %v2301
    %v2431 = vadd.f32 %v2257, %v2303
    %v2432 = vadd.f32 %v2258, %v2342
    %v2433 = vadd.f32 %v2259, %v2344
    %v2434 = vadd.f32 %v2260, %v2383
    %v2435 = vadd.f32 %v2261, %v2385
    %v2436 = vadd.f32 %v2262, %v2424
    %v2437 = vadd.f32 %v2263, %v2426
    %v2438 = vmul.f32 %v2430, 0.5
    %v2439 = vmul.f32 %v2431, 0.5
    %v2440 = vtanh.pop %v2438
    %v2441 = vtanh.pop %v2439
    %v2442 = vmul.f32 %v2440, 0.5
    %v2443 = vmul.f32 %v2441, 0.5
    %v2444 = vadd.f32 %v2442, 0.5
    %v2445 = vadd.f32 %v2443, 0.5
    %v2446 = vmul.f32 %v2432, 0.5
    %v2447 = vmul.f32 %v2433, 0.5
    %v2448 = vtanh.pop %v2446
    %v2449 = vtanh.pop %v2447
    %v2450 = vmul.f32 %v2448, 0.5
    %v2451 = vmul.f32 %v2449, 0.5
    %v2452 = vadd.f32 %v2450, 0.5
    %v2453 = vadd.f32 %v2451, 0.5
    %v2454 = vtanh.pop %v2434
    %v2455 = vtanh.pop %v2435
    %v2456 = vmul.f32 %v2436, 0.5
    %v2457 = vmul.f32 %v2437, 0.5
    %v2458 = vtanh.pop %v2456
    %v2459 = vtanh.pop %v2457
    %v2460 = vmul.f32 %v2458, 0.5
    %v2461 = vmul.f32 %v2459, 0.5
    %v2462 = vadd.f32 %v2460, 0.5
    %v2463 = vadd.f32 %v2461, 0.5
    %v2464 = vmul.f32 %v2452, %v2249
    %v2465 = vmul.f32 %v2453, %v2250
    %v2466 = vmul.f32 %v2444, %v2454
    %v2467 = vmul.f32 %v2445, %v2455
    %v2468 = vadd.f32 %v2464, %v2466
    %v2469 = vadd.f32 %v2465, %v2467
    %v2470 = vtanh.pop %v2468
    %v2471 = vtanh.pop %v2469
    %v2472 = vmul.f32 %v2462, %v2470
    %v2473 = vmul.f32 %v2463, %v2471
    %s2474 = scalar_lea.vmem [#allocation2], 384
    %v2475 = vld [vmem:[%s2474] sm:$0xff]
    %v2476 = vld [vmem:[%s2474 + $0x8] sm:$0xff]
    %v2477 = vld [vmem:[%s2474 + $0x10] sm:$0xff]
    %v2478 = vld [vmem:[%s2474 + $0x18] sm:$0xff]
    %v2479 = vld [vmem:[%s2474 + $0x20] sm:$0xff]
    %v2480 = vld [vmem:[%s2474 + $0x28] sm:$0xff]
    %v2481 = vld [vmem:[%s2474 + $0x30] sm:$0xff]
    %v2482 = vld [vmem:[%s2474 + $0x38] sm:$0xff]
    %v2483 = vpack.c.bf16 %v2472, %v2472
    %v2484 = vpack.c.bf16 %v2473, %v2473
    %2485 = vmatprep.subr.bf16.mxu0 %v916
    %2486 = vmatpush1.bf16.msra.mxu0 %v915
    %2487 = vmatprep.subr.bf16.mxu0 %v924
    %2488 = vmatpush1.bf16.msra.mxu0 %v923
    %2489 = vmatprep.subr.bf16.mxu0 %v932
    %2490 = vmatpush1.bf16.msra.mxu0 %v931
    %2491 = vmatprep.subr.bf16.mxu0 %v940
    %2492 = vmatpush1.bf16.msra.mxu0 %v939
    %2493 = vmatprep.subr.bf16.mxu0 %v948
    %2494 = vmatpush1.bf16.msra.mxu0 %v947
    %2495 = vmatprep.subr.bf16.mxu0 %v956
    %2496 = vmatpush1.bf16.msra.mxu0 %v955
    %2497 = vmatprep.subr.bf16.mxu0 %v964
    %2498 = vmatpush1.bf16.msra.mxu0 %v963
    %2499 = vmatprep.subr.bf16.mxu0 %v972
    %2500 = vmatpush1.bf16.msra.mxu0 %v971
    %2501 = vmatprep.subr.bf16.mxu0 %v980
    %2502 = vmatpush1.bf16.msra.mxu0 %v979
    %2503 = vmatprep.subr.bf16.mxu0 %v988
    %2504 = vmatpush1.bf16.msra.mxu0 %v987
    %2505 = vmatprep.subr.bf16.mxu0 %v996
    %2506 = vmatpush1.bf16.msra.mxu0 %v995
    %2507 = vmatprep.subr.bf16.mxu0 %v1004
    %2508 = vmatpush1.bf16.msra.mxu0 %v1003
    %2509 = vmatprep.subr.bf16.mxu0 %v1012
    %2510 = vmatpush1.bf16.msra.mxu0 %v1011
    %2511 = vmatprep.subr.bf16.mxu0 %v1020
    %2512 = vmatpush1.bf16.msra.mxu0 %v1019
    %2513 = vmatprep.subr.bf16.mxu0 %v1028
    %2514 = vmatpush1.bf16.msra.mxu0 %v1027
    %2515 = vmatprep.subr.bf16.mxu0 %v1036
    %2516 = vmatpush1.bf16.msra.mxu0 %v1035
    %2517 = vmatprep.mubr.bf16.mxu0 %v2484
    %2518 = vmatmul.mubr.bf16.gmra.mrb[0].mxu0 %v2483
    %v2519 = vpop.f32.mrb[0].mxu0
    %v2520 = vadd.f32 0.0, %v2519
    %v2521 = vpop.f32.mrb[0].mxu0
    %v2522 = vadd.f32 0.0, %v2521
    %v2523 = vpop.f32.mrb[0].mxu0
    %v2524 = vpop.f32.mrb[0].mxu0
    %2525 = vdwg.mxu0
    %2526 = vmatprep.subr.bf16.mxu0 %v918
    %2527 = vmatpush1.bf16.msra.mxu0 %v917
    %2528 = vmatprep.subr.bf16.mxu0 %v926
    %2529 = vmatpush1.bf16.msra.mxu0 %v925
    %2530 = vmatprep.subr.bf16.mxu0 %v934
    %2531 = vmatpush1.bf16.msra.mxu0 %v933
    %2532 = vmatprep.subr.bf16.mxu0 %v942
    %2533 = vmatpush1.bf16.msra.mxu0 %v941
    %2534 = vmatprep.subr.bf16.mxu0 %v950
    %2535 = vmatpush1.bf16.msra.mxu0 %v949
    %2536 = vmatprep.subr.bf16.mxu0 %v958
    %2537 = vmatpush1.bf16.msra.mxu0 %v957
    %2538 = vmatprep.subr.bf16.mxu0 %v966
    %2539 = vmatpush1.bf16.msra.mxu0 %v965
    %2540 = vmatprep.subr.bf16.mxu0 %v974
    %2541 = vmatpush1.bf16.msra.mxu0 %v973
    %2542 = vmatprep.subr.bf16.mxu0 %v982
    %2543 = vmatpush1.bf16.msra.mxu0 %v981
    %2544 = vmatprep.subr.bf16.mxu0 %v990
    %2545 = vmatpush1.bf16.msra.mxu0 %v989
    %2546 = vmatprep.subr.bf16.mxu0 %v998
    %2547 = vmatpush1.bf16.msra.mxu0 %v997
    %2548 = vmatprep.subr.bf16.mxu0 %v1006
    %2549 = vmatpush1.bf16.msra.mxu0 %v1005
    %2550 = vmatprep.subr.bf16.mxu0 %v1014
    %2551 = vmatpush1.bf16.msra.mxu0 %v1013
    %2552 = vmatprep.subr.bf16.mxu0 %v1022
    %2553 = vmatpush1.bf16.msra.mxu0 %v1021
    %2554 = vmatprep.subr.bf16.mxu0 %v1030
    %2555 = vmatpush1.bf16.msra.mxu0 %v1029
    %2556 = vmatprep.subr.bf16.mxu0 %v1038
    %2557 = vmatpush1.bf16.msra.mxu0 %v1037
    %2558 = vmatprep.mubr.bf16.mxu0 %v2484
    %2559 = vmatmul.mubr.bf16.gmra.mrb[0].mxu0 %v2483
    %v2560 = vpop.f32.mrb[0].mxu0
    %v2561 = vadd.f32 0.0, %v2560
    %v2562 = vpop.f32.mrb[0].mxu0
    %v2563 = vadd.f32 0.0, %v2562
    %v2564 = vpop.f32.mrb[0].mxu0
    %v2565 = vpop.f32.mrb[0].mxu0
    %2566 = vdwg.mxu0
    %2567 = vmatprep.subr.bf16.mxu0 %v920
    %2568 = vmatpush1.bf16.msra.mxu0 %v919
    %2569 = vmatprep.subr.bf16.mxu0 %v928
    %2570 = vmatpush1.bf16.msra.mxu0 %v927
    %2571 = vmatprep.subr.bf16.mxu0 %v936
    %2572 = vmatpush1.bf16.msra.mxu0 %v935
    %2573 = vmatprep.subr.bf16.mxu0 %v944
    %2574 = vmatpush1.bf16.msra.mxu0 %v943
    %2575 = vmatprep.subr.bf16.mxu0 %v952
    %2576 = vmatpush1.bf16.msra.mxu0 %v951
    %2577 = vmatprep.subr.bf16.mxu0 %v960
    %2578 = vmatpush1.bf16.msra.mxu0 %v959
    %2579 = vmatprep.subr.bf16.mxu0 %v968
    %2580 = vmatpush1.bf16.msra.mxu0 %v967
    %2581 = vmatprep.subr.bf16.mxu0 %v976
    %2582 = vmatpush1.bf16.msra.mxu0 %v975
    %2583 = vmatprep.subr.bf16.mxu0 %v984
    %2584 = vmatpush1.bf16.msra.mxu0 %v983
    %2585 = vmatprep.subr.bf16.mxu0 %v992
    %2586 = vmatpush1.bf16.msra.mxu0 %v991
    %2587 = vmatprep.subr.bf16.mxu0 %v1000
    %2588 = vmatpush1.bf16.msra.mxu0 %v999
    %2589 = vmatprep.subr.bf16.mxu0 %v1008
    %2590 = vmatpush1.bf16.msra.mxu0 %v1007
    %2591 = vmatprep.subr.bf16.mxu0 %v1016
    %2592 = vmatpush1.bf16.msra.mxu0 %v1015
    %2593 = vmatprep.subr.bf16.mxu0 %v1024
    %2594 = vmatpush1.bf16.msra.mxu0 %v1023
    %2595 = vmatprep.subr.bf16.mxu0 %v1032
    %2596 = vmatpush1.bf16.msra.mxu0 %v1031
    %2597 = vmatprep.subr.bf16.mxu0 %v1040
    %2598 = vmatpush1.bf16.msra.mxu0 %v1039
    %2599 = vmatprep.mubr.bf16.mxu0 %v2484
    %2600 = vmatmul.mubr.bf16.gmra.mrb[0].mxu0 %v2483
    %v2601 = vpop.f32.mrb[0].mxu0
    %v2602 = vadd.f32 0.0, %v2601
    %v2603 = vpop.f32.mrb[0].mxu0
    %v2604 = vadd.f32 0.0, %v2603
    %v2605 = vpop.f32.mrb[0].mxu0
    %v2606 = vpop.f32.mrb[0].mxu0
    %2607 = vdwg.mxu0
    %2608 = vmatprep.subr.bf16.mxu0 %v922
    %2609 = vmatpush1.bf16.msra.mxu0 %v921
    %2610 = vmatprep.subr.bf16.mxu0 %v930
    %2611 = vmatpush1.bf16.msra.mxu0 %v929
    %2612 = vmatprep.subr.bf16.mxu0 %v938
    %2613 = vmatpush1.bf16.msra.mxu0 %v937
    %2614 = vmatprep.subr.bf16.mxu0 %v946
    %2615 = vmatpush1.bf16.msra.mxu0 %v945
    %2616 = vmatprep.subr.bf16.mxu0 %v954
    %2617 = vmatpush1.bf16.msra.mxu0 %v953
    %2618 = vmatprep.subr.bf16.mxu0 %v962
    %2619 = vmatpush1.bf16.msra.mxu0 %v961
    %2620 = vmatprep.subr.bf16.mxu0 %v970
    %2621 = vmatpush1.bf16.msra.mxu0 %v969
    %2622 = vmatprep.subr.bf16.mxu0 %v978
    %2623 = vmatpush1.bf16.msra.mxu0 %v977
    %2624 = vmatprep.subr.bf16.mxu0 %v986
    %2625 = vmatpush1.bf16.msra.mxu0 %v985
    %2626 = vmatprep.subr.bf16.mxu0 %v994
    %2627 = vmatpush1.bf16.msra.mxu0 %v993
    %2628 = vmatprep.subr.bf16.mxu0 %v1002
    %2629 = vmatpush1.bf16.msra.mxu0 %v1001
    %2630 = vmatprep.subr.bf16.mxu0 %v1010
    %2631 = vmatpush1.bf16.msra.mxu0 %v1009
    %2632 = vmatprep.subr.bf16.mxu0 %v1018
    %2633 = vmatpush1.bf16.msra.mxu0 %v1017
    %2634 = vmatprep.subr.bf16.mxu0 %v1026
    %2635 = vmatpush1.bf16.msra.mxu0 %v1025
    %2636 = vmatprep.subr.bf16.mxu0 %v1034
    %2637 = vmatpush1.bf16.msra.mxu0 %v1033
    %2638 = vmatprep.subr.bf16.mxu0 %v1042
    %2639 = vmatpush1.bf16.msra.mxu0 %v1041
    %2640 = vmatprep.mubr.bf16.mxu0 %v2484
    %2641 = vmatmul.mubr.bf16.gmra.mrb[0].mxu0 %v2483
    %v2642 = vpop.f32.mrb[0].mxu0
    %v2643 = vadd.f32 0.0, %v2642
    %v2644 = vpop.f32.mrb[0].mxu0
    %v2645 = vadd.f32 0.0, %v2644
    %v2646 = vpop.f32.mrb[0].mxu0
    %v2647 = vpop.f32.mrb[0].mxu0
    %2648 = vdwg.mxu0
    %v2649 = vadd.f32 %v2475, %v2520
    %v2650 = vadd.f32 %v2476, %v2522
    %v2651 = vadd.f32 %v2477, %v2561
    %v2652 = vadd.f32 %v2478, %v2563
    %v2653 = vadd.f32 %v2479, %v2602
    %v2654 = vadd.f32 %v2480, %v2604
    %v2655 = vadd.f32 %v2481, %v2643
    %v2656 = vadd.f32 %v2482, %v2645
    %v2657 = vmul.f32 %v2649, 0.5
    %v2658 = vmul.f32 %v2650, 0.5
    %v2659 = vtanh.pop %v2657
    %v2660 = vtanh.pop %v2658
    %v2661 = vmul.f32 %v2659, 0.5
    %v2662 = vmul.f32 %v2660, 0.5
    %v2663 = vadd.f32 %v2661, 0.5
    %v2664 = vadd.f32 %v2662, 0.5
    %v2665 = vmul.f32 %v2651, 0.5
    %v2666 = vmul.f32 %v2652, 0.5
    %v2667 = vtanh.pop %v2665
    %v2668 = vtanh.pop %v2666
    %v2669 = vmul.f32 %v2667, 0.5
    %v2670 = vmul.f32 %v2668, 0.5
    %v2671 = vadd.f32 %v2669, 0.5
    %v2672 = vadd.f32 %v2670, 0.5
    %v2673 = vtanh.pop %v2653
    %v2674 = vtanh.pop %v2654
    %v2675 = vmul.f32 %v2655, 0.5
    %v2676 = vmul.f32 %v2656, 0.5
    %v2677 = vtanh.pop %v2675
    %v2678 = vtanh.pop %v2676
    %v2679 = vmul.f32 %v2677, 0.5
    %v2680 = vmul.f32 %v2678, 0.5
    %v2681 = vadd.f32 %v2679, 0.5
    %v2682 = vadd.f32 %v2680, 0.5
    %v2683 = vmul.f32 %v2671, %v2468
    %v2684 = vmul.f32 %v2672, %v2469
    %v2685 = vmul.f32 %v2663, %v2673
    %v2686 = vmul.f32 %v2664, %v2674
    %v2687 = vadd.f32 %v2683, %v2685
    %v2688 = vadd.f32 %v2684, %v2686
    %v2689 = vtanh.pop %v2687
    %v2690 = vtanh.pop %v2688
    %v2691 = vmul.f32 %v2681, %v2689
    %v2692 = vmul.f32 %v2682, %v2690
    %s2693 = scalar_lea.vmem [#allocation2], 448
    %v2694 = vld [vmem:[%s2693] sm:$0xff]
    %v2695 = vld [vmem:[%s2693 + $0x8] sm:$0xff]
    %v2696 = vld [vmem:[%s2693 + $0x10] sm:$0xff]
    %v2697 = vld [vmem:[%s2693 + $0x18] sm:$0xff]
    %v2698 = vld [vmem:[%s2693 + $0x20] sm:$0xff]
    %v2699 = vld [vmem:[%s2693 + $0x28] sm:$0xff]
    %v2700 = vld [vmem:[%s2693 + $0x30] sm:$0xff]
    %v2701 = vld [vmem:[%s2693 + $0x38] sm:$0xff]
    %v2702 = vpack.c.bf16 %v2691, %v2691
    %v2703 = vpack.c.bf16 %v2692, %v2692
    %2704 = vmatprep.subr.bf16.mxu0 %v916
    %2705 = vmatpush1.bf16.msra.mxu0 %v915
    %2706 = vmatprep.subr.bf16.mxu0 %v924
    %2707 = vmatpush1.bf16.msra.mxu0 %v923
    %2708 = vmatprep.subr.bf16.mxu0 %v932
    %2709 = vmatpush1.bf16.msra.mxu0 %v931
    %2710 = vmatprep.subr.bf16.mxu0 %v940
    %2711 = vmatpush1.bf16.msra.mxu0 %v939
    %2712 = vmatprep.subr.bf16.mxu0 %v948
    %2713 = vmatpush1.bf16.msra.mxu0 %v947
    %2714 = vmatprep.subr.bf16.mxu0 %v956
    %2715 = vmatpush1.bf16.msra.mxu0 %v955
    %2716 = vmatprep.subr.bf16.mxu0 %v964
    %2717 = vmatpush1.bf16.msra.mxu0 %v963
    %2718 = vmatprep.subr.bf16.mxu0 %v972
    %2719 = vmatpush1.bf16.msra.mxu0 %v971
    %2720 = vmatprep.subr.bf16.mxu0 %v980
    %2721 = vmatpush1.bf16.msra.mxu0 %v979
    %2722 = vmatprep.subr.bf16.mxu0 %v988
    %2723 = vmatpush1.bf16.msra.mxu0 %v987
    %2724 = vmatprep.subr.bf16.mxu0 %v996
    %2725 = vmatpush1.bf16.msra.mxu0 %v995
    %2726 = vmatprep.subr.bf16.mxu0 %v1004
    %2727 = vmatpush1.bf16.msra.mxu0 %v1003
    %2728 = vmatprep.subr.bf16.mxu0 %v1012
    %2729 = vmatpush1.bf16.msra.mxu0 %v1011
    %2730 = vmatprep.subr.bf16.mxu0 %v1020
    %2731 = vmatpush1.bf16.msra.mxu0 %v1019
    %2732 = vmatprep.subr.bf16.mxu0 %v1028
    %2733 = vmatpush1.bf16.msra.mxu0 %v1027
    %2734 = vmatprep.subr.bf16.mxu0 %v1036
    %2735 = vmatpush1.bf16.msra.mxu0 %v1035
    %2736 = vmatprep.mubr.bf16.mxu0 %v2703
    %2737 = vmatmul.mubr.bf16.gmra.mrb[0].mxu0 %v2702
    %v2738 = vpop.f32.mrb[0].mxu0
    %v2739 = vadd.f32 0.0, %v2738
    %v2740 = vpop.f32.mrb[0].mxu0
    %v2741 = vadd.f32 0.0, %v2740
    %v2742 = vpop.f32.mrb[0].mxu0
    %v2743 = vpop.f32.mrb[0].mxu0
    %2744 = vdwg.mxu0
    %2745 = vmatprep.subr.bf16.mxu0 %v918
    %2746 = vmatpush1.bf16.msra.mxu0 %v917
    %2747 = vmatprep.subr.bf16.mxu0 %v926
    %2748 = vmatpush1.bf16.msra.mxu0 %v925
    %2749 = vmatprep.subr.bf16.mxu0 %v934
    %2750 = vmatpush1.bf16.msra.mxu0 %v933
    %2751 = vmatprep.subr.bf16.mxu0 %v942
    %2752 = vmatpush1.bf16.msra.mxu0 %v941
    %2753 = vmatprep.subr.bf16.mxu0 %v950
    %2754 = vmatpush1.bf16.msra.mxu0 %v949
    %2755 = vmatprep.subr.bf16.mxu0 %v958
    %2756 = vmatpush1.bf16.msra.mxu0 %v957
    %2757 = vmatprep.subr.bf16.mxu0 %v966
    %2758 = vmatpush1.bf16.msra.mxu0 %v965
    %2759 = vmatprep.subr.bf16.mxu0 %v974
    %2760 = vmatpush1.bf16.msra.mxu0 %v973
    %2761 = vmatprep.subr.bf16.mxu0 %v982
    %2762 = vmatpush1.bf16.msra.mxu0 %v981
    %2763 = vmatprep.subr.bf16.mxu0 %v990
    %2764 = vmatpush1.bf16.msra.mxu0 %v989
    %2765 = vmatprep.subr.bf16.mxu0 %v998
    %2766 = vmatpush1.bf16.msra.mxu0 %v997
    %2767 = vmatprep.subr.bf16.mxu0 %v1006
    %2768 = vmatpush1.bf16.msra.mxu0 %v1005
    %2769 = vmatprep.subr.bf16.mxu0 %v1014
    %2770 = vmatpush1.bf16.msra.mxu0 %v1013
    %2771 = vmatprep.subr.bf16.mxu0 %v1022
    %2772 = vmatpush1.bf16.msra.mxu0 %v1021
    %2773 = vmatprep.subr.bf16.mxu0 %v1030
    %2774 = vmatpush1.bf16.msra.mxu0 %v1029
    %2775 = vmatprep.subr.bf16.mxu0 %v1038
    %2776 = vmatpush1.bf16.msra.mxu0 %v1037
    %2777 = vmatprep.mubr.bf16.mxu0 %v2703
    %2778 = vmatmul.mubr.bf16.gmra.mrb[0].mxu0 %v2702
    %v2779 = vpop.f32.mrb[0].mxu0
    %v2780 = vadd.f32 0.0, %v2779
    %v2781 = vpop.f32.mrb[0].mxu0
    %v2782 = vadd.f32 0.0, %v2781
    %v2783 = vpop.f32.mrb[0].mxu0
    %v2784 = vpop.f32.mrb[0].mxu0
    %2785 = vdwg.mxu0
    %2786 = vmatprep.subr.bf16.mxu0 %v920
    %2787 = vmatpush1.bf16.msra.mxu0 %v919
    %2788 = vmatprep.subr.bf16.mxu0 %v928
    %2789 = vmatpush1.bf16.msra.mxu0 %v927
    %2790 = vmatprep.subr.bf16.mxu0 %v936
    %2791 = vmatpush1.bf16.msra.mxu0 %v935
    %2792 = vmatprep.subr.bf16.mxu0 %v944
    %2793 = vmatpush1.bf16.msra.mxu0 %v943
    %2794 = vmatprep.subr.bf16.mxu0 %v952
    %2795 = vmatpush1.bf16.msra.mxu0 %v951
    %2796 = vmatprep.subr.bf16.mxu0 %v960
    %2797 = vmatpush1.bf16.msra.mxu0 %v959
    %2798 = vmatprep.subr.bf16.mxu0 %v968
    %2799 = vmatpush1.bf16.msra.mxu0 %v967
    %2800 = vmatprep.subr.bf16.mxu0 %v976
    %2801 = vmatpush1.bf16.msra.mxu0 %v975
    %2802 = vmatprep.subr.bf16.mxu0 %v984
    %2803 = vmatpush1.bf16.msra.mxu0 %v983
    %2804 = vmatprep.subr.bf16.mxu0 %v992
    %2805 = vmatpush1.bf16.msra.mxu0 %v991
    %2806 = vmatprep.subr.bf16.mxu0 %v1000
    %2807 = vmatpush1.bf16.msra.mxu0 %v999
    %2808 = vmatprep.subr.bf16.mxu0 %v1008
    %2809 = vmatpush1.bf16.msra.mxu0 %v1007
    %2810 = vmatprep.subr.bf16.mxu0 %v1016
    %2811 = vmatpush1.bf16.msra.mxu0 %v1015
    %2812 = vmatprep.subr.bf16.mxu0 %v1024
    %2813 = vmatpush1.bf16.msra.mxu0 %v1023
    %2814 = vmatprep.subr.bf16.mxu0 %v1032
    %2815 = vmatpush1.bf16.msra.mxu0 %v1031
    %2816 = vmatprep.subr.bf16.mxu0 %v1040
    %2817 = vmatpush1.bf16.msra.mxu0 %v1039
    %2818 = vmatprep.mubr.bf16.mxu0 %v2703
    %2819 = vmatmul.mubr.bf16.gmra.mrb[0].mxu0 %v2702
    %v2820 = vpop.f32.mrb[0].mxu0
    %v2821 = vadd.f32 0.0, %v2820
    %v2822 = vpop.f32.mrb[0].mxu0
    %v2823 = vadd.f32 0.0, %v2822
    %v2824 = vpop.f32.mrb[0].mxu0
    %v2825 = vpop.f32.mrb[0].mxu0
    %2826 = vdwg.mxu0
    %2827 = vmatprep.subr.bf16.mxu0 %v922
    %2828 = vmatpush1.bf16.msra.mxu0 %v921
    %2829 = vmatprep.subr.bf16.mxu0 %v930
    %2830 = vmatpush1.bf16.msra.mxu0 %v929
    %2831 = vmatprep.subr.bf16.mxu0 %v938
    %2832 = vmatpush1.bf16.msra.mxu0 %v937
    %2833 = vmatprep.subr.bf16.mxu0 %v946
    %2834 = vmatpush1.bf16.msra.mxu0 %v945
    %2835 = vmatprep.subr.bf16.mxu0 %v954
    %2836 = vmatpush1.bf16.msra.mxu0 %v953
    %2837 = vmatprep.subr.bf16.mxu0 %v962
    %2838 = vmatpush1.bf16.msra.mxu0 %v961
    %2839 = vmatprep.subr.bf16.mxu0 %v970
    %2840 = vmatpush1.bf16.msra.mxu0 %v969
    %2841 = vmatprep.subr.bf16.mxu0 %v978
    %2842 = vmatpush1.bf16.msra.mxu0 %v977
    %2843 = vmatprep.subr.bf16.mxu0 %v986
    %2844 = vmatpush1.bf16.msra.mxu0 %v985
    %2845 = vmatprep.subr.bf16.mxu0 %v994
    %2846 = vmatpush1.bf16.msra.mxu0 %v993
    %2847 = vmatprep.subr.bf16.mxu0 %v1002
    %2848 = vmatpush1.bf16.msra.mxu0 %v1001
    %2849 = vmatprep.subr.bf16.mxu0 %v1010
    %2850 = vmatpush1.bf16.msra.mxu0 %v1009
    %2851 = vmatprep.subr.bf16.mxu0 %v1018
    %2852 = vmatpush1.bf16.msra.mxu0 %v1017
    %2853 = vmatprep.subr.bf16.mxu0 %v1026
    %2854 = vmatpush1.bf16.msra.mxu0 %v1025
    %2855 = vmatprep.subr.bf16.mxu0 %v1034
    %2856 = vmatpush1.bf16.msra.mxu0 %v1033
    %2857 = vmatprep.subr.bf16.mxu0 %v1042
    %2858 = vmatpush1.bf16.msra.mxu0 %v1041
    %2859 = vmatprep.mubr.bf16.mxu0 %v2703
    %2860 = vmatmul.mubr.bf16.gmra.mrb[0].mxu0 %v2702
    %v2861 = vpop.f32.mrb[0].mxu0
    %v2862 = vadd.f32 0.0, %v2861
    %v2863 = vpop.f32.mrb[0].mxu0
    %v2864 = vadd.f32 0.0, %v2863
    %v2865 = vpop.f32.mrb[0].mxu0
    %v2866 = vpop.f32.mrb[0].mxu0
    %2867 = vdwg.mxu0
    %v2868 = vadd.f32 %v2694, %v2739
    %v2869 = vadd.f32 %v2695, %v2741
    %v2870 = vadd.f32 %v2696, %v2780
    %v2871 = vadd.f32 %v2697, %v2782
    %v2872 = vadd.f32 %v2698, %v2821
    %v2873 = vadd.f32 %v2699, %v2823
    %v2874 = vadd.f32 %v2700, %v2862
    %v2875 = vadd.f32 %v2701, %v2864
    %v2876 = vmul.f32 %v2868, 0.5
    %v2877 = vmul.f32 %v2869, 0.5
    %v2878 = vtanh.pop %v2876
    %v2879 = vtanh.pop %v2877
    %v2880 = vmul.f32 %v2878, 0.5
    %v2881 = vmul.f32 %v2879, 0.5
    %v2882 = vadd.f32 %v2880, 0.5
    %v2883 = vadd.f32 %v2881, 0.5
    %v2884 = vmul.f32 %v2870, 0.5
    %v2885 = vmul.f32 %v2871, 0.5
    %v2886 = vtanh.pop %v2884
    %v2887 = vtanh.pop %v2885
    %v2888 = vmul.f32 %v2886, 0.5
    %v2889 = vmul.f32 %v2887, 0.5
    %v2890 = vadd.f32 %v2888, 0.5
    %v2891 = vadd.f32 %v2889, 0.5
    %v2892 = vtanh.pop %v2872
    %v2893 = vtanh.pop %v2873
    %v2894 = vmul.f32 %v2874, 0.5
    %v2895 = vmul.f32 %v2875, 0.5
    %v2896 = vtanh.pop %v2894
    %v2897 = vtanh.pop %v2895
    %v2898 = vmul.f32 %v2896, 0.5
    %v2899 = vmul.f32 %v2897, 0.5
    %v2900 = vadd.f32 %v2898, 0.5
    %v2901 = vadd.f32 %v2899, 0.5
    %v2902 = vmul.f32 %v2890, %v2687
    %v2903 = vmul.f32 %v2891, %v2688
    %v2904 = vmul.f32 %v2882, %v2892
    %v2905 = vmul.f32 %v2883, %v2893
    %v2906 = vadd.f32 %v2902, %v2904
    %v2907 = vadd.f32 %v2903, %v2905
    %v2908 = vtanh.pop %v2906
    %v2909 = vtanh.pop %v2907
    %v2910 = vmul.f32 %v2900, %v2908
    %v2911 = vmul.f32 %v2901, %v2909
    %v2912 = vld [vmem:[%s6] sm:$0x3]
    %v2913 = vld [vmem:[%s8] sm:$0x3]
    %v2914 = vld [vmem:[#allocation3] sm:$0x1]
    %v2915 = vld [vmem:[#allocation6] sm:$0xff]
    %v2916 = vld [vmem:[#allocation6 + $0x8] sm:$0xff]
    %v2917 = vld [vmem:[#allocation6 + $0x10] sm:$0xff]
    %v2918 = vld [vmem:[#allocation6 + $0x18] sm:$0xff]
    %v2919 = vld [vmem:[#allocation6 + $0x20] sm:$0xff]
    %v2920 = vld [vmem:[#allocation6 + $0x28] sm:$0xff]
    %v2921 = vld [vmem:[#allocation6 + $0x30] sm:$0xff]
    %v2922 = vld [vmem:[#allocation6 + $0x38] sm:$0xff]
    %v2923 = vld [vmem:[#allocation6 + $0x40] sm:$0xff]
    %v2924 = vld [vmem:[#allocation6 + $0x48] sm:$0xff]
    %v2925 = vld [vmem:[#allocation6 + $0x50] sm:$0xff]
    %v2926 = vld [vmem:[#allocation6 + $0x58] sm:$0xff]
    %v2927 = vld [vmem:[#allocation6 + $0x60] sm:$0xff]
    %v2928 = vld [vmem:[#allocation6 + $0x68] sm:$0xff]
    %v2929 = vld [vmem:[#allocation6 + $0x70] sm:$0xff]
    %v2930 = vld [vmem:[#allocation6 + $0x78] sm:$0xff]
    %v2931 = vld [vmem:[#allocation6 + $0x80] sm:$0xff]
    %v2932 = vld [vmem:[#allocation6 + $0x88] sm:$0xff]
    %v2933 = vld [vmem:[#allocation6 + $0x90] sm:$0xff]
    %v2934 = vld [vmem:[#allocation6 + $0x98] sm:$0xff]
    %v2935 = vld [vmem:[#allocation6 + $0xa0] sm:$0xff]
    %v2936 = vld [vmem:[#allocation6 + $0xa8] sm:$0xff]
    %v2937 = vld [vmem:[#allocation6 + $0xb0] sm:$0xff]
    %v2938 = vld [vmem:[#allocation6 + $0xb8] sm:$0xff]
    %v2939 = vld [vmem:[#allocation6 + $0xc0] sm:$0xff]
    %v2940 = vld [vmem:[#allocation6 + $0xc8] sm:$0xff]
    %v2941 = vld [vmem:[#allocation6 + $0xd0] sm:$0xff]
    %v2942 = vld [vmem:[#allocation6 + $0xd8] sm:$0xff]
    %v2943 = vld [vmem:[#allocation6 + $0xe0] sm:$0xff]
    %v2944 = vld [vmem:[#allocation6 + $0xe8] sm:$0xff]
    %v2945 = vld [vmem:[#allocation6 + $0xf0] sm:$0xff]
    %v2946 = vld [vmem:[#allocation6 + $0xf8] sm:$0xff]
    %v2947 = vld [vmem:[#allocation6 + $0x100] sm:$0xff]
    %v2948 = vld [vmem:[#allocation6 + $0x108] sm:$0xff]
    %v2949 = vld [vmem:[#allocation6 + $0x110] sm:$0xff]
    %v2950 = vld [vmem:[#allocation6 + $0x118] sm:$0xff]
    %v2951 = vld [vmem:[#allocation6 + $0x120] sm:$0xff]
    %v2952 = vld [vmem:[#allocation6 + $0x128] sm:$0xff]
    %v2953 = vld [vmem:[#allocation6 + $0x130] sm:$0xff]
    %v2954 = vld [vmem:[#allocation6 + $0x138] sm:$0xff]
    %v2955 = vld [vmem:[#allocation6 + $0x140] sm:$0xff]
    %v2956 = vld [vmem:[#allocation6 + $0x148] sm:$0xff]
    %v2957 = vld [vmem:[#allocation6 + $0x150] sm:$0xff]
    %v2958 = vld [vmem:[#allocation6 + $0x158] sm:$0xff]
    %v2959 = vld [vmem:[#allocation6 + $0x160] sm:$0xff]
    %v2960 = vld [vmem:[#allocation6 + $0x168] sm:$0xff]
    %v2961 = vld [vmem:[#allocation6 + $0x170] sm:$0xff]
    %v2962 = vld [vmem:[#allocation6 + $0x178] sm:$0xff]
    %v2963 = vld [vmem:[#allocation6 + $0x180] sm:$0xff]
    %v2964 = vld [vmem:[#allocation6 + $0x188] sm:$0xff]
    %v2965 = vld [vmem:[#allocation6 + $0x190] sm:$0xff]
    %v2966 = vld [vmem:[#allocation6 + $0x198] sm:$0xff]
    %v2967 = vld [vmem:[#allocation6 + $0x1a0] sm:$0xff]
    %v2968 = vld [vmem:[#allocation6 + $0x1a8] sm:$0xff]
    %v2969 = vld [vmem:[#allocation6 + $0x1b0] sm:$0xff]
    %v2970 = vld [vmem:[#allocation6 + $0x1b8] sm:$0xff]
    %v2971 = vld [vmem:[#allocation6 + $0x1c0] sm:$0xff]
    %v2972 = vld [vmem:[#allocation6 + $0x1c8] sm:$0xff]
    %v2973 = vld [vmem:[#allocation6 + $0x1d0] sm:$0xff]
    %v2974 = vld [vmem:[#allocation6 + $0x1d8] sm:$0xff]
    %v2975 = vld [vmem:[#allocation6 + $0x1e0] sm:$0xff]
    %v2976 = vld [vmem:[#allocation6 + $0x1e8] sm:$0xff]
    %v2977 = vld [vmem:[#allocation6 + $0x1f0] sm:$0xff]
    %v2978 = vld [vmem:[#allocation6 + $0x1f8] sm:$0xff]
    %v2979 = vld [vmem:[#allocation6 + $0x200] sm:$0xff]
    %v2980 = vld [vmem:[#allocation6 + $0x208] sm:$0xff]
    %v2981 = vld [vmem:[#allocation6 + $0x210] sm:$0xff]
    %v2982 = vld [vmem:[#allocation6 + $0x218] sm:$0xff]
    %v2983 = vld [vmem:[#allocation6 + $0x220] sm:$0xff]
    %v2984 = vld [vmem:[#allocation6 + $0x228] sm:$0xff]
    %v2985 = vld [vmem:[#allocation6 + $0x230] sm:$0xff]
    %v2986 = vld [vmem:[#allocation6 + $0x238] sm:$0xff]
    %v2987 = vld [vmem:[#allocation6 + $0x240] sm:$0xff]
    %v2988 = vld [vmem:[#allocation6 + $0x248] sm:$0xff]
    %v2989 = vld [vmem:[#allocation6 + $0x250] sm:$0xff]
    %v2990 = vld [vmem:[#allocation6 + $0x258] sm:$0xff]
    %v2991 = vld [vmem:[#allocation6 + $0x260] sm:$0xff]
    %v2992 = vld [vmem:[#allocation6 + $0x268] sm:$0xff]
    %v2993 = vld [vmem:[#allocation6 + $0x270] sm:$0xff]
    %v2994 = vld [vmem:[#allocation6 + $0x278] sm:$0xff]
    %v2995 = vld [vmem:[#allocation6 + $0x280] sm:$0xff]
    %v2996 = vld [vmem:[#allocation6 + $0x288] sm:$0xff]
    %v2997 = vld [vmem:[#allocation6 + $0x290] sm:$0xff]
    %v2998 = vld [vmem:[#allocation6 + $0x298] sm:$0xff]
    %v2999 = vld [vmem:[#allocation6 + $0x2a0] sm:$0xff]
    %v3000 = vld [vmem:[#allocation6 + $0x2a8] sm:$0xff]
    %v3001 = vld [vmem:[#allocation6 + $0x2b0] sm:$0xff]
    %v3002 = vld [vmem:[#allocation6 + $0x2b8] sm:$0xff]
    %v3003 = vld [vmem:[#allocation6 + $0x2c0] sm:$0xff]
    %v3004 = vld [vmem:[#allocation6 + $0x2c8] sm:$0xff]
    %v3005 = vld [vmem:[#allocation6 + $0x2d0] sm:$0xff]
    %v3006 = vld [vmem:[#allocation6 + $0x2d8] sm:$0xff]
    %v3007 = vld [vmem:[#allocation6 + $0x2e0] sm:$0xff]
    %v3008 = vld [vmem:[#allocation6 + $0x2e8] sm:$0xff]
    %v3009 = vld [vmem:[#allocation6 + $0x2f0] sm:$0xff]
    %v3010 = vld [vmem:[#allocation6 + $0x2f8] sm:$0xff]
    %v3011 = vld [vmem:[#allocation6 + $0x300] sm:$0xff]
    %v3012 = vld [vmem:[#allocation6 + $0x308] sm:$0xff]
    %v3013 = vld [vmem:[#allocation6 + $0x310] sm:$0xff]
    %v3014 = vld [vmem:[#allocation6 + $0x318] sm:$0xff]
    %v3015 = vld [vmem:[#allocation6 + $0x320] sm:$0xff]
    %v3016 = vld [vmem:[#allocation6 + $0x328] sm:$0xff]
    %v3017 = vld [vmem:[#allocation6 + $0x330] sm:$0xff]
    %v3018 = vld [vmem:[#allocation6 + $0x338] sm:$0xff]
    %v3019 = vld [vmem:[#allocation6 + $0x340] sm:$0xff]
    %v3020 = vld [vmem:[#allocation6 + $0x348] sm:$0xff]
    %v3021 = vld [vmem:[#allocation6 + $0x350] sm:$0xff]
    %v3022 = vld [vmem:[#allocation6 + $0x358] sm:$0xff]
    %v3023 = vld [vmem:[#allocation6 + $0x360] sm:$0xff]
    %v3024 = vld [vmem:[#allocation6 + $0x368] sm:$0xff]
    %v3025 = vld [vmem:[#allocation6 + $0x370] sm:$0xff]
    %v3026 = vld [vmem:[#allocation6 + $0x378] sm:$0xff]
    %v3027 = vld [vmem:[#allocation6 + $0x380] sm:$0xff]
    %v3028 = vld [vmem:[#allocation6 + $0x388] sm:$0xff]
    %v3029 = vld [vmem:[#allocation6 + $0x390] sm:$0xff]
    %v3030 = vld [vmem:[#allocation6 + $0x398] sm:$0xff]
    %v3031 = vld [vmem:[#allocation6 + $0x3a0] sm:$0xff]
    %v3032 = vld [vmem:[#allocation6 + $0x3a8] sm:$0xff]
    %v3033 = vld [vmem:[#allocation6 + $0x3b0] sm:$0xff]
    %v3034 = vld [vmem:[#allocation6 + $0x3b8] sm:$0xff]
    %v3035 = vld [vmem:[#allocation6 + $0x3c0] sm:$0xff]
    %v3036 = vld [vmem:[#allocation6 + $0x3c8] sm:$0xff]
    %v3037 = vld [vmem:[#allocation6 + $0x3d0] sm:$0xff]
    %v3038 = vld [vmem:[#allocation6 + $0x3d8] sm:$0xff]
    %v3039 = vld [vmem:[#allocation6 + $0x3e0] sm:$0xff]
    %v3040 = vld [vmem:[#allocation6 + $0x3e8] sm:$0xff]
    %v3041 = vld [vmem:[#allocation6 + $0x3f0] sm:$0xff]
    %v3042 = vld [vmem:[#allocation6 + $0x3f8] sm:$0xff]
    %3043 = vmatprep.subr.mxu0 %v2916
    %3044 = vmatpush1.msra.mxu0 %v2915
    %3045 = vmatprep.subr.mxu0 %v2920
    %3046 = vmatpush1.msra.mxu0 %v2919
    %3047 = vmatprep.subr.mxu0 %v2924
    %3048 = vmatpush1.msra.mxu0 %v2923
    %3049 = vmatprep.subr.mxu0 %v2928
    %3050 = vmatpush1.msra.mxu0 %v2927
    %3051 = vmatprep.subr.mxu0 %v2932
    %3052 = vmatpush1.msra.mxu0 %v2931
    %3053 = vmatprep.subr.mxu0 %v2936
    %3054 = vmatpush1.msra.mxu0 %v2935
    %3055 = vmatprep.subr.mxu0 %v2940
    %3056 = vmatpush1.msra.mxu0 %v2939
    %3057 = vmatprep.subr.mxu0 %v2944
    %3058 = vmatpush1.msra.mxu0 %v2943
    %3059 = vmatprep.subr.mxu0 %v2948
    %3060 = vmatpush1.msra.mxu0 %v2947
    %3061 = vmatprep.subr.mxu0 %v2952
    %3062 = vmatpush1.msra.mxu0 %v2951
    %3063 = vmatprep.subr.mxu0 %v2956
    %3064 = vmatpush1.msra.mxu0 %v2955
    %3065 = vmatprep.subr.mxu0 %v2960
    %3066 = vmatpush1.msra.mxu0 %v2959
    %3067 = vmatprep.subr.mxu0 %v2964
    %3068 = vmatpush1.msra.mxu0 %v2963
    %3069 = vmatprep.subr.mxu0 %v2968
    %3070 = vmatpush1.msra.mxu0 %v2967
    %3071 = vmatprep.subr.mxu0 %v2972
    %3072 = vmatpush1.msra.mxu0 %v2971
    %3073 = vmatprep.subr.mxu0 %v2976
    %3074 = vmatpush1.msra.mxu0 %v2975
    %3075 = vmatprep.subr.mxu0 %v2980
    %3076 = vmatpush1.msra.mxu0 %v2979
    %3077 = vmatprep.subr.mxu0 %v2984
    %3078 = vmatpush1.msra.mxu0 %v2983
    %3079 = vmatprep.subr.mxu0 %v2988
    %3080 = vmatpush1.msra.mxu0 %v2987
    %3081 = vmatprep.subr.mxu0 %v2992
    %3082 = vmatpush1.msra.mxu0 %v2991
    %3083 = vmatprep.subr.mxu0 %v2996
    %3084 = vmatpush1.msra.mxu0 %v2995
    %3085 = vmatprep.subr.mxu0 %v3000
    %3086 = vmatpush1.msra.mxu0 %v2999
    %3087 = vmatprep.subr.mxu0 %v3004
    %3088 = vmatpush1.msra.mxu0 %v3003
    %3089 = vmatprep.subr.mxu0 %v3008
    %3090 = vmatpush1.msra.mxu0 %v3007
    %3091 = vmatprep.subr.mxu0 %v3012
    %3092 = vmatpush1.msra.mxu0 %v3011
    %3093 = vmatprep.subr.mxu0 %v3016
    %3094 = vmatpush1.msra.mxu0 %v3015
    %3095 = vmatprep.subr.mxu0 %v3020
    %3096 = vmatpush1.msra.mxu0 %v3019
    %3097 = vmatprep.subr.mxu0 %v3024
    %3098 = vmatpush1.msra.mxu0 %v3023
    %3099 = vmatprep.subr.mxu0 %v3028
    %3100 = vmatpush1.msra.mxu0 %v3027
    %3101 = vmatprep.subr.mxu0 %v3032
    %3102 = vmatpush1.msra.mxu0 %v3031
    %3103 = vmatprep.subr.mxu0 %v3036
    %3104 = vmatpush1.msra.mxu0 %v3035
    %3105 = vmatprep.subr.mxu0 %v3040
    %3106 = vmatpush1.msra.mxu0 %v3039
    %3107 = vmatprep.mubr.f32.mxu0 %v2911
    %3108 = vmatmul.mubr.f32.gmra.mrb[0].mxu0 %v2910
    %v3109 = vpop.f32.mrb[0].mxu0
    %v3110 = vadd.f32 0.0, %v3109
    %v3111 = vpop.f32.mrb[0].mxu0
    %v3112 = vadd.f32 0.0, %v3111
    %3113 = vdwg.mxu0
    %s3114 = scalar_lea.vmem %s0, 56
    %v3115 = vld [vmem:[%s3114] sm:$0xff]
    %3117 = vset.pattern.permute.xlu0 0
    %3118 = vperm.xlu0 %3117, %v3115
    %v3119 = vpop.permute.xlu0 %3118
    %v3122 = vlaneseq
    %v3123 = vshrl.u32 %v3122, 7
    %v3124 = vsub.s32 0, %v3123
    %v3125 = vrot.slane %v2912, %v3124
    %v3126 = vlaneseq
    %v3127 = vshrl.u32 %v3126, 7
    %v3128 = vsub.s32 1, %v3127
    %v3129 = vrot.slane %v2912, %v3128
    %v3132 = vmul.f32 %v3119, %v3125
    %v3133 = vmul.f32 %v3119, %v3129
    %v3134 = vadd.f32 %v3110, %v3132
    %v3135 = vadd.f32 %v3112, %v3133
    %v3137 = vlaneseq
    %v3138 = vshrl.u32 %v3137, 7
    %v3139 = vsub.s32 0, %v3138
    %v3140 = vrot.slane %v2913, %v3139
    %v3141 = vlaneseq
    %v3142 = vshrl.u32 %v3141, 7
    %v3143 = vsub.s32 1, %v3142
    %v3144 = vrot.slane %v2913, %v3143
    %v3147 = vadd.f32 %v3134, %v3140
    %v3148 = vadd.f32 %v3135, %v3144
    %v3149 = vtanh.pop %v3147
    %v3150 = vtanh.pop %v3148
    %3151 = vmatprep.subr.mxu0 %v2916
    %3152 = vmatpush1.msra.mxu0 %v2915
    %3153 = vmatprep.subr.mxu0 %v2920
    %3154 = vmatpush1.msra.mxu0 %v2919
    %3155 = vmatprep.subr.mxu0 %v2924
    %3156 = vmatpush1.msra.mxu0 %v2923
    %3157 = vmatprep.subr.mxu0 %v2928
    %3158 = vmatpush1.msra.mxu0 %v2927
    %3159 = vmatprep.subr.mxu0 %v2932
    %3160 = vmatpush1.msra.mxu0 %v2931
    %3161 = vmatprep.subr.mxu0 %v2936
    %3162 = vmatpush1.msra.mxu0 %v2935
    %3163 = vmatprep.subr.mxu0 %v2940
    %3164 = vmatpush1.msra.mxu0 %v2939
    %3165 = vmatprep.subr.mxu0 %v2944
    %3166 = vmatpush1.msra.mxu0 %v2943
    %3167 = vmatprep.subr.mxu0 %v2948
    %3168 = vmatpush1.msra.mxu0 %v2947
    %3169 = vmatprep.subr.mxu0 %v2952
    %3170 = vmatpush1.msra.mxu0 %v2951
    %3171 = vmatprep.subr.mxu0 %v2956
    %3172 = vmatpush1.msra.mxu0 %v2955
    %3173 = vmatprep.subr.mxu0 %v2960
    %3174 = vmatpush1.msra.mxu0 %v2959
    %3175 = vmatprep.subr.mxu0 %v2964
    %3176 = vmatpush1.msra.mxu0 %v2963
    %3177 = vmatprep.subr.mxu0 %v2968
    %3178 = vmatpush1.msra.mxu0 %v2967
    %3179 = vmatprep.subr.mxu0 %v2972
    %3180 = vmatpush1.msra.mxu0 %v2971
    %3181 = vmatprep.subr.mxu0 %v2976
    %3182 = vmatpush1.msra.mxu0 %v2975
    %3183 = vmatprep.subr.mxu0 %v2980
    %3184 = vmatpush1.msra.mxu0 %v2979
    %3185 = vmatprep.subr.mxu0 %v2984
    %3186 = vmatpush1.msra.mxu0 %v2983
    %3187 = vmatprep.subr.mxu0 %v2988
    %3188 = vmatpush1.msra.mxu0 %v2987
    %3189 = vmatprep.subr.mxu0 %v2992
    %3190 = vmatpush1.msra.mxu0 %v2991
    %3191 = vmatprep.subr.mxu0 %v2996
    %3192 = vmatpush1.msra.mxu0 %v2995
    %3193 = vmatprep.subr.mxu0 %v3000
    %3194 = vmatpush1.msra.mxu0 %v2999
    %3195 = vmatprep.subr.mxu0 %v3004
    %3196 = vmatpush1.msra.mxu0 %v3003
    %3197 = vmatprep.subr.mxu0 %v3008
    %3198 = vmatpush1.msra.mxu0 %v3007
    %3199 = vmatprep.subr.mxu0 %v3012
    %3200 = vmatpush1.msra.mxu0 %v3011
    %3201 = vmatprep.subr.mxu0 %v3016
    %3202 = vmatpush1.msra.mxu0 %v3015
    %3203 = vmatprep.subr.mxu0 %v3020
    %3204 = vmatpush1.msra.mxu0 %v3019
    %3205 = vmatprep.subr.mxu0 %v3024
    %3206 = vmatpush1.msra.mxu0 %v3023
    %3207 = vmatprep.subr.mxu0 %v3028
    %3208 = vmatpush1.msra.mxu0 %v3027
    %3209 = vmatprep.subr.mxu0 %v3032
    %3210 = vmatpush1.msra.mxu0 %v3031
    %3211 = vmatprep.subr.mxu0 %v3036
    %3212 = vmatpush1.msra.mxu0 %v3035
    %3213 = vmatprep.subr.mxu0 %v3040
    %3214 = vmatpush1.msra.mxu0 %v3039
    %3215 = vmatprep.mubr.f32.mxu0 %v3150
    %3216 = vmatmul.mubr.f32.gmra.mrb[0].mxu0 %v3149
    %v3217 = vpop.f32.mrb[0].mxu0
    %v3218 = vadd.f32 0.0, %v3217
    %v3219 = vpop.f32.mrb[0].mxu0
    %v3220 = vadd.f32 0.0, %v3219
    %3221 = vdwg.mxu0
    %3222 = vmatprep.subr.mxu0 %v2918
    %3223 = vmatpush1.msra.mxu0 %v2917
    %3224 = vmatprep.subr.mxu0 %v2922
    %3225 = vmatpush1.msra.mxu0 %v2921
    %3226 = vmatprep.subr.mxu0 %v2926
    %3227 = vmatpush1.msra.mxu0 %v2925
    %3228 = vmatprep.subr.mxu0 %v2930
    %3229 = vmatpush1.msra.mxu0 %v2929
    %3230 = vmatprep.subr.mxu0 %v2934
    %3231 = vmatpush1.msra.mxu0 %v2933
    %3232 = vmatprep.subr.mxu0 %v2938
    %3233 = vmatpush1.msra.mxu0 %v2937
    %3234 = vmatprep.subr.mxu0 %v2942
    %3235 = vmatpush1.msra.mxu0 %v2941
    %3236 = vmatprep.subr.mxu0 %v2946
    %3237 = vmatpush1.msra.mxu0 %v2945
    %3238 = vmatprep.subr.mxu0 %v2950
    %3239 = vmatpush1.msra.mxu0 %v2949
    %3240 = vmatprep.subr.mxu0 %v2954
    %3241 = vmatpush1.msra.mxu0 %v2953
    %3242 = vmatprep.subr.mxu0 %v2958
    %3243 = vmatpush1.msra.mxu0 %v2957
    %3244 = vmatprep.subr.mxu0 %v2962
    %3245 = vmatpush1.msra.mxu0 %v2961
    %3246 = vmatprep.subr.mxu0 %v2966
    %3247 = vmatpush1.msra.mxu0 %v2965
    %3248 = vmatprep.subr.mxu0 %v2970
    %3249 = vmatpush1.msra.mxu0 %v2969
    %3250 = vmatprep.subr.mxu0 %v2974
    %3251 = vmatpush1.msra.mxu0 %v2973
    %3252 = vmatprep.subr.mxu0 %v2978
    %3253 = vmatpush1.msra.mxu0 %v2977
    %3254 = vmatprep.subr.mxu0 %v2982
    %3255 = vmatpush1.msra.mxu0 %v2981
    %3256 = vmatprep.subr.mxu0 %v2986
    %3257 = vmatpush1.msra.mxu0 %v2985
    %3258 = vmatprep.subr.mxu0 %v2990
    %3259 = vmatpush1.msra.mxu0 %v2989
    %3260 = vmatprep.subr.mxu0 %v2994
    %3261 = vmatpush1.msra.mxu0 %v2993
    %3262 = vmatprep.subr.mxu0 %v2998
    %3263 = vmatpush1.msra.mxu0 %v2997
    %3264 = vmatprep.subr.mxu0 %v3002
    %3265 = vmatpush1.msra.mxu0 %v3001
    %3266 = vmatprep.subr.mxu0 %v3006
    %3267 = vmatpush1.msra.mxu0 %v3005
    %3268 = vmatprep.subr.mxu0 %v3010
    %3269 = vmatpush1.msra.mxu0 %v3009
    %3270 = vmatprep.subr.mxu0 %v3014
    %3271 = vmatpush1.msra.mxu0 %v3013
    %3272 = vmatprep.subr.mxu0 %v3018
    %3273 = vmatpush1.msra.mxu0 %v3017
    %3274 = vmatprep.subr.mxu0 %v3022
    %3275 = vmatpush1.msra.mxu0 %v3021
    %3276 = vmatprep.subr.mxu0 %v3026
    %3277 = vmatpush1.msra.mxu0 %v3025
    %3278 = vmatprep.subr.mxu0 %v3030
    %3279 = vmatpush1.msra.mxu0 %v3029
    %3280 = vmatprep.subr.mxu0 %v3034
    %3281 = vmatpush1.msra.mxu0 %v3033
    %3282 = vmatprep.subr.mxu0 %v3038
    %3283 = vmatpush1.msra.mxu0 %v3037
    %3284 = vmatprep.subr.mxu0 %v3042
    %3285 = vmatpush1.msra.mxu0 %v3041
    %3286 = vmatprep.mubr.f32.mxu0 %v3150
    %3287 = vmatmul.mubr.f32.gmra.mrb[0].mxu0 %v3149
    %v3288 = vpop.f32.mrb[0].mxu0
    %v3289 = vadd.f32 0.0, %v3288
    %v3290 = vpop.f32.mrb[0].mxu0
    %v3291 = vadd.f32 0.0, %v3290
    %3292 = vdwg.mxu0
    %v3294 = vlaneseq
    %v3295 = vshrl.u32 %v3294, 7
    %v3296 = vsub.s32 0, %v3295
    %v3297 = vrot.slane %v2914, %v3296
    %3298 = vset.pattern.permute.xlu0 0
    %3299 = vperm.xlu0 %3298, %v3297
    %v3300 = vpop.permute.xlu0 %3299
    %v3302 = vadd.f32 %v3289, %v3300
    %v3303 = vadd.f32 %v3291, %v3300
    %v3304 = vmax.f32 %v3302, 0.0
    %v3305 = vmax.f32 %v3303, 0.0
    %v3306 = vmul.f32 %v3304, %v3125
    %v3307 = vmul.f32 %v3305, %v3129
    %v3308 = vadd.f32 %v3218, %v3306
    %v3309 = vadd.f32 %v3220, %v3307
    %v3310 = vadd.f32 %v3308, %v3140
    %v3311 = vadd.f32 %v3309, %v3144
    %v3312 = vtanh.pop %v3310
    %v3313 = vtanh.pop %v3311
    %3314 = vmatprep.subr.mxu0 %v2916
    %3315 = vmatpush1.msra.mxu0 %v2915
    %3316 = vmatprep.subr.mxu0 %v2920
    %3317 = vmatpush1.msra.mxu0 %v2919
    %3318 = vmatprep.subr.mxu0 %v2924
    %3319 = vmatpush1.msra.mxu0 %v2923
    %3320 = vmatprep.subr.mxu0 %v2928
    %3321 = vmatpush1.msra.mxu0 %v2927
    %3322 = vmatprep.subr.mxu0 %v2932
    %3323 = vmatpush1.msra.mxu0 %v2931
    %3324 = vmatprep.subr.mxu0 %v2936
    %3325 = vmatpush1.msra.mxu0 %v2935
    %3326 = vmatprep.subr.mxu0 %v2940
    %3327 = vmatpush1.msra.mxu0 %v2939
    %3328 = vmatprep.subr.mxu0 %v2944
    %3329 = vmatpush1.msra.mxu0 %v2943
    %3330 = vmatprep.subr.mxu0 %v2948
    %3331 = vmatpush1.msra.mxu0 %v2947
    %3332 = vmatprep.subr.mxu0 %v2952
    %3333 = vmatpush1.msra.mxu0 %v2951
    %3334 = vmatprep.subr.mxu0 %v2956
    %3335 = vmatpush1.msra.mxu0 %v2955
    %3336 = vmatprep.subr.mxu0 %v2960
    %3337 = vmatpush1.msra.mxu0 %v2959
    %3338 = vmatprep.subr.mxu0 %v2964
    %3339 = vmatpush1.msra.mxu0 %v2963
    %3340 = vmatprep.subr.mxu0 %v2968
    %3341 = vmatpush1.msra.mxu0 %v2967
    %3342 = vmatprep.subr.mxu0 %v2972
    %3343 = vmatpush1.msra.mxu0 %v2971
    %3344 = vmatprep.subr.mxu0 %v2976
    %3345 = vmatpush1.msra.mxu0 %v2975
    %3346 = vmatprep.subr.mxu0 %v2980
    %3347 = vmatpush1.msra.mxu0 %v2979
    %3348 = vmatprep.subr.mxu0 %v2984
    %3349 = vmatpush1.msra.mxu0 %v2983
    %3350 = vmatprep.subr.mxu0 %v2988
    %3351 = vmatpush1.msra.mxu0 %v2987
    %3352 = vmatprep.subr.mxu0 %v2992
    %3353 = vmatpush1.msra.mxu0 %v2991
    %3354 = vmatprep.subr.mxu0 %v2996
    %3355 = vmatpush1.msra.mxu0 %v2995
    %3356 = vmatprep.subr.mxu0 %v3000
    %3357 = vmatpush1.msra.mxu0 %v2999
    %3358 = vmatprep.subr.mxu0 %v3004
    %3359 = vmatpush1.msra.mxu0 %v3003
    %3360 = vmatprep.subr.mxu0 %v3008
    %3361 = vmatpush1.msra.mxu0 %v3007
    %3362 = vmatprep.subr.mxu0 %v3012
    %3363 = vmatpush1.msra.mxu0 %v3011
    %3364 = vmatprep.subr.mxu0 %v3016
    %3365 = vmatpush1.msra.mxu0 %v3015
    %3366 = vmatprep.subr.mxu0 %v3020
    %3367 = vmatpush1.msra.mxu0 %v3019
    %3368 = vmatprep.subr.mxu0 %v3024
    %3369 = vmatpush1.msra.mxu0 %v3023
    %3370 = vmatprep.subr.mxu0 %v3028
    %3371 = vmatpush1.msra.mxu0 %v3027
    %3372 = vmatprep.subr.mxu0 %v3032
    %3373 = vmatpush1.msra.mxu0 %v3031
    %3374 = vmatprep.subr.mxu0 %v3036
    %3375 = vmatpush1.msra.mxu0 %v3035
    %3376 = vmatprep.subr.mxu0 %v3040
    %3377 = vmatpush1.msra.mxu0 %v3039
    %3378 = vmatprep.mubr.f32.mxu0 %v3313
    %3379 = vmatmul.mubr.f32.gmra.mrb[0].mxu0 %v3312
    %v3380 = vpop.f32.mrb[0].mxu0
    %v3381 = vadd.f32 0.0, %v3380
    %v3382 = vpop.f32.mrb[0].mxu0
    %v3383 = vadd.f32 0.0, %v3382
    %3384 = vdwg.mxu0
    %3385 = vmatprep.subr.mxu0 %v2918
    %3386 = vmatpush1.msra.mxu0 %v2917
    %3387 = vmatprep.subr.mxu0 %v2922
    %3388 = vmatpush1.msra.mxu0 %v2921
    %3389 = vmatprep.subr.mxu0 %v2926
    %3390 = vmatpush1.msra.mxu0 %v2925
    %3391 = vmatprep.subr.mxu0 %v2930
    %3392 = vmatpush1.msra.mxu0 %v2929
    %3393 = vmatprep.subr.mxu0 %v2934
    %3394 = vmatpush1.msra.mxu0 %v2933
    %3395 = vmatprep.subr.mxu0 %v2938
    %3396 = vmatpush1.msra.mxu0 %v2937
    %3397 = vmatprep.subr.mxu0 %v2942
    %3398 = vmatpush1.msra.mxu0 %v2941
    %3399 = vmatprep.subr.mxu0 %v2946
    %3400 = vmatpush1.msra.mxu0 %v2945
    %3401 = vmatprep.subr.mxu0 %v2950
    %3402 = vmatpush1.msra.mxu0 %v2949
    %3403 = vmatprep.subr.mxu0 %v2954
    %3404 = vmatpush1.msra.mxu0 %v2953
    %3405 = vmatprep.subr.mxu0 %v2958
    %3406 = vmatpush1.msra.mxu0 %v2957
    %3407 = vmatprep.subr.mxu0 %v2962
    %3408 = vmatpush1.msra.mxu0 %v2961
    %3409 = vmatprep.subr.mxu0 %v2966
    %3410 = vmatpush1.msra.mxu0 %v2965
    %3411 = vmatprep.subr.mxu0 %v2970
    %3412 = vmatpush1.msra.mxu0 %v2969
    %3413 = vmatprep.subr.mxu0 %v2974
    %3414 = vmatpush1.msra.mxu0 %v2973
    %3415 = vmatprep.subr.mxu0 %v2978
    %3416 = vmatpush1.msra.mxu0 %v2977
    %3417 = vmatprep.subr.mxu0 %v2982
    %3418 = vmatpush1.msra.mxu0 %v2981
    %3419 = vmatprep.subr.mxu0 %v2986
    %3420 = vmatpush1.msra.mxu0 %v2985
    %3421 = vmatprep.subr.mxu0 %v2990
    %3422 = vmatpush1.msra.mxu0 %v2989
    %3423 = vmatprep.subr.mxu0 %v2994
    %3424 = vmatpush1.msra.mxu0 %v2993
    %3425 = vmatprep.subr.mxu0 %v2998
    %3426 = vmatpush1.msra.mxu0 %v2997
    %3427 = vmatprep.subr.mxu0 %v3002
    %3428 = vmatpush1.msra.mxu0 %v3001
    %3429 = vmatprep.subr.mxu0 %v3006
    %3430 = vmatpush1.msra.mxu0 %v3005
    %3431 = vmatprep.subr.mxu0 %v3010
    %3432 = vmatpush1.msra.mxu0 %v3009
    %3433 = vmatprep.subr.mxu0 %v3014
    %3434 = vmatpush1.msra.mxu0 %v3013
    %3435 = vmatprep.subr.mxu0 %v3018
    %3436 = vmatpush1.msra.mxu0 %v3017
    %3437 = vmatprep.subr.mxu0 %v3022
    %3438 = vmatpush1.msra.mxu0 %v3021
    %3439 = vmatprep.subr.mxu0 %v3026
    %3440 = vmatpush1.msra.mxu0 %v3025
    %3441 = vmatprep.subr.mxu0 %v3030
    %3442 = vmatpush1.msra.mxu0 %v3029
    %3443 = vmatprep.subr.mxu0 %v3034
    %3444 = vmatpush1.msra.mxu0 %v3033
    %3445 = vmatprep.subr.mxu0 %v3038
    %3446 = vmatpush1.msra.mxu0 %v3037
    %3447 = vmatprep.subr.mxu0 %v3042
    %3448 = vmatpush1.msra.mxu0 %v3041
    %3449 = vmatprep.mubr.f32.mxu0 %v3313
    %3450 = vmatmul.mubr.f32.gmra.mrb[0].mxu0 %v3312
    %v3451 = vpop.f32.mrb[0].mxu0
    %v3452 = vadd.f32 0.0, %v3451
    %v3453 = vpop.f32.mrb[0].mxu0
    %v3454 = vadd.f32 0.0, %v3453
    %3455 = vdwg.mxu0
    %v3456 = vadd.f32 %v3452, %v3300
    %v3457 = vadd.f32 %v3454, %v3300
    %v3458 = vmax.f32 %v3456, 0.0
    %v3459 = vmax.f32 %v3457, 0.0
    %v3460 = vmul.f32 %v3458, %v3125
    %v3461 = vmul.f32 %v3459, %v3129
    %v3462 = vadd.f32 %v3381, %v3460
    %v3463 = vadd.f32 %v3383, %v3461
    %v3464 = vadd.f32 %v3462, %v3140
    %v3465 = vadd.f32 %v3463, %v3144
    %v3466 = vtanh.pop %v3464
    %v3467 = vtanh.pop %v3465
    %3468 = vmatprep.subr.mxu0 %v2916
    %3469 = vmatpush1.msra.mxu0 %v2915
    %3470 = vmatprep.subr.mxu0 %v2920
    %3471 = vmatpush1.msra.mxu0 %v2919
    %3472 = vmatprep.subr.mxu0 %v2924
    %3473 = vmatpush1.msra.mxu0 %v2923
    %3474 = vmatprep.subr.mxu0 %v2928
    %3475 = vmatpush1.msra.mxu0 %v2927
    %3476 = vmatprep.subr.mxu0 %v2932
    %3477 = vmatpush1.msra.mxu0 %v2931
    %3478 = vmatprep.subr.mxu0 %v2936
    %3479 = vmatpush1.msra.mxu0 %v2935
    %3480 = vmatprep.subr.mxu0 %v2940
    %3481 = vmatpush1.msra.mxu0 %v2939
    %3482 = vmatprep.subr.mxu0 %v2944
    %3483 = vmatpush1.msra.mxu0 %v2943
    %3484 = vmatprep.subr.mxu0 %v2948
    %3485 = vmatpush1.msra.mxu0 %v2947
    %3486 = vmatprep.subr.mxu0 %v2952
    %3487 = vmatpush1.msra.mxu0 %v2951
    %3488 = vmatprep.subr.mxu0 %v2956
    %3489 = vmatpush1.msra.mxu0 %v2955
    %3490 = vmatprep.subr.mxu0 %v2960
    %3491 = vmatpush1.msra.mxu0 %v2959
    %3492 = vmatprep.subr.mxu0 %v2964
    %3493 = vmatpush1.msra.mxu0 %v2963
    %3494 = vmatprep.subr.mxu0 %v2968
    %3495 = vmatpush1.msra.mxu0 %v2967
    %3496 = vmatprep.subr.mxu0 %v2972
    %3497 = vmatpush1.msra.mxu0 %v2971
    %3498 = vmatprep.subr.mxu0 %v2976
    %3499 = vmatpush1.msra.mxu0 %v2975
    %3500 = vmatprep.subr.mxu0 %v2980
    %3501 = vmatpush1.msra.mxu0 %v2979
    %3502 = vmatprep.subr.mxu0 %v2984
    %3503 = vmatpush1.msra.mxu0 %v2983
    %3504 = vmatprep.subr.mxu0 %v2988
    %3505 = vmatpush1.msra.mxu0 %v2987
    %3506 = vmatprep.subr.mxu0 %v2992
    %3507 = vmatpush1.msra.mxu0 %v2991
    %3508 = vmatprep.subr.mxu0 %v2996
    %3509 = vmatpush1.msra.mxu0 %v2995
    %3510 = vmatprep.subr.mxu0 %v3000
    %3511 = vmatpush1.msra.mxu0 %v2999
    %3512 = vmatprep.subr.mxu0 %v3004
    %3513 = vmatpush1.msra.mxu0 %v3003
    %3514 = vmatprep.subr.mxu0 %v3008
    %3515 = vmatpush1.msra.mxu0 %v3007
    %3516 = vmatprep.subr.mxu0 %v3012
    %3517 = vmatpush1.msra.mxu0 %v3011
    %3518 = vmatprep.subr.mxu0 %v3016
    %3519 = vmatpush1.msra.mxu0 %v3015
    %3520 = vmatprep.subr.mxu0 %v3020
    %3521 = vmatpush1.msra.mxu0 %v3019
    %3522 = vmatprep.subr.mxu0 %v3024
    %3523 = vmatpush1.msra.mxu0 %v3023
    %3524 = vmatprep.subr.mxu0 %v3028
    %3525 = vmatpush1.msra.mxu0 %v3027
    %3526 = vmatprep.subr.mxu0 %v3032
    %3527 = vmatpush1.msra.mxu0 %v3031
    %3528 = vmatprep.subr.mxu0 %v3036
    %3529 = vmatpush1.msra.mxu0 %v3035
    %3530 = vmatprep.subr.mxu0 %v3040
    %3531 = vmatpush1.msra.mxu0 %v3039
    %3532 = vmatprep.mubr.f32.mxu0 %v3467
    %3533 = vmatmul.mubr.f32.gmra.mrb[0].mxu0 %v3466
    %v3534 = vpop.f32.mrb[0].mxu0
    %v3535 = vadd.f32 0.0, %v3534
    %v3536 = vpop.f32.mrb[0].mxu0
    %v3537 = vadd.f32 0.0, %v3536
    %3538 = vdwg.mxu0
    %3539 = vmatprep.subr.mxu0 %v2918
    %3540 = vmatpush1.msra.mxu0 %v2917
    %3541 = vmatprep.subr.mxu0 %v2922
    %3542 = vmatpush1.msra.mxu0 %v2921
    %3543 = vmatprep.subr.mxu0 %v2926
    %3544 = vmatpush1.msra.mxu0 %v2925
    %3545 = vmatprep.subr.mxu0 %v2930
    %3546 = vmatpush1.msra.mxu0 %v2929
    %3547 = vmatprep.subr.mxu0 %v2934
    %3548 = vmatpush1.msra.mxu0 %v2933
    %3549 = vmatprep.subr.mxu0 %v2938
    %3550 = vmatpush1.msra.mxu0 %v2937
    %3551 = vmatprep.subr.mxu0 %v2942
    %3552 = vmatpush1.msra.mxu0 %v2941
    %3553 = vmatprep.subr.mxu0 %v2946
    %3554 = vmatpush1.msra.mxu0 %v2945
    %3555 = vmatprep.subr.mxu0 %v2950
    %3556 = vmatpush1.msra.mxu0 %v2949
    %3557 = vmatprep.subr.mxu0 %v2954
    %3558 = vmatpush1.msra.mxu0 %v2953
    %3559 = vmatprep.subr.mxu0 %v2958
    %3560 = vmatpush1.msra.mxu0 %v2957
    %3561 = vmatprep.subr.mxu0 %v2962
    %3562 = vmatpush1.msra.mxu0 %v2961
    %3563 = vmatprep.subr.mxu0 %v2966
    %3564 = vmatpush1.msra.mxu0 %v2965
    %3565 = vmatprep.subr.mxu0 %v2970
    %3566 = vmatpush1.msra.mxu0 %v2969
    %3567 = vmatprep.subr.mxu0 %v2974
    %3568 = vmatpush1.msra.mxu0 %v2973
    %3569 = vmatprep.subr.mxu0 %v2978
    %3570 = vmatpush1.msra.mxu0 %v2977
    %3571 = vmatprep.subr.mxu0 %v2982
    %3572 = vmatpush1.msra.mxu0 %v2981
    %3573 = vmatprep.subr.mxu0 %v2986
    %3574 = vmatpush1.msra.mxu0 %v2985
    %3575 = vmatprep.subr.mxu0 %v2990
    %3576 = vmatpush1.msra.mxu0 %v2989
    %3577 = vmatprep.subr.mxu0 %v2994
    %3578 = vmatpush1.msra.mxu0 %v2993
    %3579 = vmatprep.subr.mxu0 %v2998
    %3580 = vmatpush1.msra.mxu0 %v2997
    %3581 = vmatprep.subr.mxu0 %v3002
    %3582 = vmatpush1.msra.mxu0 %v3001
    %3583 = vmatprep.subr.mxu0 %v3006
    %3584 = vmatpush1.msra.mxu0 %v3005
    %3585 = vmatprep.subr.mxu0 %v3010
    %3586 = vmatpush1.msra.mxu0 %v3009
    %3587 = vmatprep.subr.mxu0 %v3014
    %3588 = vmatpush1.msra.mxu0 %v3013
    %3589 = vmatprep.subr.mxu0 %v3018
    %3590 = vmatpush1.msra.mxu0 %v3017
    %3591 = vmatprep.subr.mxu0 %v3022
    %3592 = vmatpush1.msra.mxu0 %v3021
    %3593 = vmatprep.subr.mxu0 %v3026
    %3594 = vmatpush1.msra.mxu0 %v3025
    %3595 = vmatprep.subr.mxu0 %v3030
    %3596 = vmatpush1.msra.mxu0 %v3029
    %3597 = vmatprep.subr.mxu0 %v3034
    %3598 = vmatpush1.msra.mxu0 %v3033
    %3599 = vmatprep.subr.mxu0 %v3038
    %3600 = vmatpush1.msra.mxu0 %v3037
    %3601 = vmatprep.subr.mxu0 %v3042
    %3602 = vmatpush1.msra.mxu0 %v3041
    %3603 = vmatprep.mubr.f32.mxu0 %v3467
    %3604 = vmatmul.mubr.f32.gmra.mrb[0].mxu0 %v3466
    %v3605 = vpop.f32.mrb[0].mxu0
    %v3606 = vadd.f32 0.0, %v3605
    %v3607 = vpop.f32.mrb[0].mxu0
    %v3608 = vadd.f32 0.0, %v3607
    %3609 = vdwg.mxu0
    %v3610 = vadd.f32 %v3606, %v3300
    %v3611 = vadd.f32 %v3608, %v3300
    %v3612 = vmax.f32 %v3610, 0.0
    %v3613 = vmax.f32 %v3611, 0.0
    %v3614 = vmul.f32 %v3612, %v3125
    %v3615 = vmul.f32 %v3613, %v3129
    %v3616 = vadd.f32 %v3535, %v3614
    %v3617 = vadd.f32 %v3537, %v3615
    %v3618 = vadd.f32 %v3616, %v3140
    %v3619 = vadd.f32 %v3617, %v3144
    %v3620 = vtanh.pop %v3618
    %v3621 = vtanh.pop %v3619
    %3622 = vmatprep.subr.mxu0 %v2918
    %3623 = vmatpush1.msra.mxu0 %v2917
    %3624 = vmatprep.subr.mxu0 %v2922
    %3625 = vmatpush1.msra.mxu0 %v2921
    %3626 = vmatprep.subr.mxu0 %v2926
    %3627 = vmatpush1.msra.mxu0 %v2925
    %3628 = vmatprep.subr.mxu0 %v2930
    %3629 = vmatpush1.msra.mxu0 %v2929
    %3630 = vmatprep.subr.mxu0 %v2934
    %3631 = vmatpush1.msra.mxu0 %v2933
    %3632 = vmatprep.subr.mxu0 %v2938
    %3633 = vmatpush1.msra.mxu0 %v2937
    %3634 = vmatprep.subr.mxu0 %v2942
    %3635 = vmatpush1.msra.mxu0 %v2941
    %3636 = vmatprep.subr.mxu0 %v2946
    %3637 = vmatpush1.msra.mxu0 %v2945
    %3638 = vmatprep.subr.mxu0 %v2950
    %3639 = vmatpush1.msra.mxu0 %v2949
    %3640 = vmatprep.subr.mxu0 %v2954
    %3641 = vmatpush1.msra.mxu0 %v2953
    %3642 = vmatprep.subr.mxu0 %v2958
    %3643 = vmatpush1.msra.mxu0 %v2957
    %3644 = vmatprep.subr.mxu0 %v2962
    %3645 = vmatpush1.msra.mxu0 %v2961
    %3646 = vmatprep.subr.mxu0 %v2966
    %3647 = vmatpush1.msra.mxu0 %v2965
    %3648 = vmatprep.subr.mxu0 %v2970
    %3649 = vmatpush1.msra.mxu0 %v2969
    %3650 = vmatprep.subr.mxu0 %v2974
    %3651 = vmatpush1.msra.mxu0 %v2973
    %3652 = vmatprep.subr.mxu0 %v2978
    %3653 = vmatpush1.msra.mxu0 %v2977
    %3654 = vmatprep.subr.mxu0 %v2982
    %3655 = vmatpush1.msra.mxu0 %v2981
    %3656 = vmatprep.subr.mxu0 %v2986
    %3657 = vmatpush1.msra.mxu0 %v2985
    %3658 = vmatprep.subr.mxu0 %v2990
    %3659 = vmatpush1.msra.mxu0 %v2989
    %3660 = vmatprep.subr.mxu0 %v2994
    %3661 = vmatpush1.msra.mxu0 %v2993
    %3662 = vmatprep.subr.mxu0 %v2998
    %3663 = vmatpush1.msra.mxu0 %v2997
    %3664 = vmatprep.subr.mxu0 %v3002
    %3665 = vmatpush1.msra.mxu0 %v3001
    %3666 = vmatprep.subr.mxu0 %v3006
    %3667 = vmatpush1.msra.mxu0 %v3005
    %3668 = vmatprep.subr.mxu0 %v3010
    %3669 = vmatpush1.msra.mxu0 %v3009
    %3670 = vmatprep.subr.mxu0 %v3014
    %3671 = vmatpush1.msra.mxu0 %v3013
    %3672 = vmatprep.subr.mxu0 %v3018
    %3673 = vmatpush1.msra.mxu0 %v3017
    %3674 = vmatprep.subr.mxu0 %v3022
    %3675 = vmatpush1.msra.mxu0 %v3021
    %3676 = vmatprep.subr.mxu0 %v3026
    %3677 = vmatpush1.msra.mxu0 %v3025
    %3678 = vmatprep.subr.mxu0 %v3030
    %3679 = vmatpush1.msra.mxu0 %v3029
    %3680 = vmatprep.subr.mxu0 %v3034
    %3681 = vmatpush1.msra.mxu0 %v3033
    %3682 = vmatprep.subr.mxu0 %v3038
    %3683 = vmatpush1.msra.mxu0 %v3037
    %3684 = vmatprep.subr.mxu0 %v3042
    %3685 = vmatpush1.msra.mxu0 %v3041
    %3686 = vmatprep.mubr.f32.mxu0 %v3621
    %3687 = vmatmul.mubr.f32.gmra.mrb[0].mxu0 %v3620
    %v3688 = vpop.f32.mrb[0].mxu0
    %v3689 = vadd.f32 %v3300, %v3688
    %v3690 = vpop.f32.mrb[0].mxu0
    %v3691 = vadd.f32 %v3300, %v3690
    %3692 = vdwg.mxu0
    %v3693 = vmax.f32 %v3689, 0.0
    %v3694 = vmax.f32 %v3691, 0.0
    %3695 = vst [vmem:[%s10] sm:$0xff] %v3304
    %3696 = vst [vmem:[%s10 + $0x8] sm:$0xff] %v3305
    %s3697 = scalar_lea.vmem %s10, 16
    %3698 = vst [vmem:[%s3697] sm:$0xff] %v3458
    %3699 = vst [vmem:[%s3697 + $0x8] sm:$0xff] %v3459
    %s3700 = scalar_lea.vmem %s10, 32
    %3701 = vst [vmem:[%s3700] sm:$0xff] %v3612
    %3702 = vst [vmem:[%s3700 + $0x8] sm:$0xff] %v3613
    %s3703 = scalar_lea.vmem %s10, 48
    %3704 = vst [vmem:[%s3703] sm:$0xff] %v3693
    %3705 = vst [vmem:[%s3703 + $0x8] sm:$0xff] %v3694
    // Predicated region
    $region50: #{lstm_seq2seq_forward.1} parent=1 // pred_check
      _
    $region51: #{lstm_seq2seq_forward.1} parent=1 // pred_check_branch
      %3707 = sbr.rel (0) target = $region53
    $region52: #{lstm_seq2seq_forward.1} parent=1 // pred_region
      _
    $region53: #{lstm_seq2seq_forward.1} parent=1 // pred_fallthru
      _
    // Predicated region
    $region54: #{lstm_seq2seq_forward.1} parent=1 // pred_check
      _
    $region55: #{lstm_seq2seq_forward.1} parent=1 // pred_check_branch
      %3709 = sbr.rel (0) target = $region57
    $region56: #{lstm_seq2seq_forward.1} parent=1 // pred_region
      _
    $region57: #{lstm_seq2seq_forward.1} parent=1 // pred_fallthru
      _
    %3710 = vsyncpa [#allocation5], 1
    %3711 = vsyncpa [#allocation7], 1

</llo_original>
